<compile_context>
chip_gen: v6e
topology: v6e:2x2x1
jax: 0.10.0
libtpu: 0.0.40
codegen_flags: <defaults>
</compile_context>

<pallas_src>
import jax
import jax.numpy as jnp
from jax.experimental import pallas as pl
from jax.experimental.pallas import tpu as pltpu

K = 3          # kernel_size
PAD = K // 2   # 'same' padding for the odd kernel


def _conv3x3_circular(x, w9, b):
    """Circular-padded 3x3 conv as 9 accumulating MXU dots on rolled taps.

    x  : (Bt, H, W, Cin)  float32
    w9 : (K*K, Cin, Cout) bfloat16, row t = kh*K + kw
    b  : (1, Cout)        float32
    returns (Bt, H, W, Cout) float32
    """
    Bt, H, W, C = x.shape
    acc = None
    for kh in range(K):
        xh = x if kh == PAD else jnp.roll(x, PAD - kh, axis=1)   # circular H shift
        for kw in range(K):
            tap = xh if kw == PAD else jnp.roll(xh, PAD - kw, axis=2)  # circular W shift
            t = kh * K + kw
            contrib = jnp.dot(
                tap.reshape(Bt * H * W, C).astype(jnp.bfloat16),  # cast at the dot
                w9[t],
                preferred_element_type=jnp.float32,
            )
            acc = contrib if acc is None else acc + contrib
    out = acc + b
    return out.reshape(Bt, H, W, -1)


def resblock_kernel(x_ref, w1_ref, b1_ref, w2_ref, b2_ref, o_ref):
    x = x_ref[...].astype(jnp.float32)          # (Bt, H, W, C)
    w1 = w1_ref[...]                            # (9, C, C) bf16 (pre-cast in wrapper)
    w2 = w2_ref[...]
    b1 = b1_ref[...]                            # (1, C) f32
    b2 = b2_ref[...]

    h = _conv3x3_circular(x, w1, b1)            # conv1 (circular 'same' pad)
    h = jnp.maximum(h, 0.0)                     # ReLU (f32 elementwise, v5e-safe)
    h = _conv3x3_circular(h, w2, b2)            # conv2 (circular 'same' pad)
    h = jnp.maximum(h + x, 0.0)                 # residual + ReLU
    o_ref[...] = h.astype(o_ref.dtype)


def _choose_bt(B, H, W, C, max_bytes=40 << 20):
    """Largest batch tile that (a) divides B, (b) keeps grid length >= 2 when
    B >= 2 (megacore on v7x), (c) keeps the VMEM working set under max_bytes."""
    per_elem = H * W * C * 4 * 14       # ~in/out double-buffers + f32/bf16 temporaries
    cap = max(1, min(8, B, max_bytes // max(per_elem, 1)))
    if B == 1:
        return 1
    for bt in range(cap, 0, -1):
        if B % bt == 0 and B // bt >= 2:
            return bt
    return 1


def resblock_pallas(x_nhwc, w1_oihw, b1, w2_oihw, b2, *, bt=None):
    """x_nhwc: (B, H, W, C); conv weights in torch OIHW layout; biases (C,)."""
    B, H, W, C = x_nhwc.shape
    bt = bt if bt is not None else _choose_bt(B, H, W, C)
    assert B % bt == 0
    grid = (B // bt,)

    # OIHW (Cout,Cin,kh,kw) -> (kh*K+kw, Cin, Cout); cast to bf16 once, outside the grid.
    def prep_w(w_oihw):
        return (jnp.transpose(w_oihw, (2, 3, 1, 0))
                .reshape(K * K, C, C).astype(jnp.bfloat16))

    w1p, w2p = prep_w(w1_oihw), prep_w(w2_oihw)
    b1r = b1.reshape(1, C).astype(jnp.float32)
    b2r = b2.reshape(1, C).astype(jnp.float32)

    img_spec = pl.BlockSpec((bt, H, W, C), lambda i: (i, 0, 0, 0))
    w_spec = pl.BlockSpec((K * K, C, C), lambda i: (0, 0, 0))
    b_spec = pl.BlockSpec((1, C), lambda i: (0, 0))

    blk_bytes = bt * H * W * C * 4
    # Double-buffered in/out blocks + in-kernel temporaries; cap at 48 MiB so it
    # also fits v7x's 64 MiB VMEM (v5e/v6e have 128 MiB).
    vmem_limit = int(min(max(14 * blk_bytes, 16 << 20), 48 << 20))

    return pl.pallas_call(
        resblock_kernel,
        grid=grid,
        out_shape=jax.ShapeDtypeStruct(x_nhwc.shape, x_nhwc.dtype),
        in_specs=[img_spec, w_spec, b_spec, w_spec, b_spec],
        out_specs=img_spec,
        compiler_params=pltpu.CompilerParams(
            dimension_semantics=("parallel",),   # batch tiles are independent
            vmem_limit_bytes=vmem_limit,
        ),
    )(x_nhwc, w1p, b1r, w2p, b2r)


def resblock_ref(x_nhwc, w1_oihw, b1, w2_oihw, b2):
    """Pure-JAX f32 reference implementing the PyTorch module math."""
    x = x_nhwc.astype(jnp.float32)
    H, W = x.shape[1], x.shape[2]

    def conv(inp, w_oihw, bias):
        xp = jnp.pad(inp, ((0, 0), (PAD, PAD), (PAD, PAD), (0, 0)), mode="wrap")
        acc = None
        for kh in range(K):
            for kw in range(K):
                c = jnp.einsum("bhwc,oc->bhwo",
                               xp[:, kh:kh + H, kw:kw + W, :],
                               w_oihw[:, :, kh, kw].astype(jnp.float32))
                acc = c if acc is None else acc + c
        return acc + bias

    h = jax.nn.relu(conv(x, w1_oihw, b1))
    h = conv(h, w2_oihw, b2) + x
    return jax.nn.relu(h)


if __name__ == "__main__":
    B, C, H, W = 2, 4, 16, 16   # small demo shapes (module default is C=64)

    key = jax.random.PRNGKey(0)
    kx, kw1, kb1, kw2, kb2 = jax.random.split(key, 5)

    # NHWC activations (layout kept NHWC end-to-end; a torch NCHW caller would
    # convert once at the model boundary instead of per ResBlock).
    x = jax.random.normal(kx, (B, H, W, C), dtype=jnp.float32)
    scale = 1.0 / (C * K * K) ** 0.5   # nn.Conv2d default init range
    w1 = jax.random.uniform(kw1, (C, C, K, K), jnp.float32, -scale, scale)
    b1 = jax.random.uniform(kb1, (C,), jnp.float32, -scale, scale)
    w2 = jax.random.uniform(kw2, (C, C, K, K), jnp.float32, -scale, scale)
    b2 = jax.random.uniform(kb2, (C,), jnp.float32, -scale, scale)

    out = jax.block_until_ready(resblock_pallas(x, w1, b1, w2, b2))
    ref = jax.block_until_ready(resblock_ref(x, w1, b1, w2, b2))

    assert out.shape == (B, H, W, C)
    # Matmul inputs are bf16 (f32 accumulation), so compare against the f32
    # reference with a bf16-appropriate tolerance.
    assert jnp.allclose(out, ref, atol=5e-2, rtol=5e-2), "mismatch vs reference"

    print("KERNEL_OK")
</pallas_src>

<mosaic_0001>
module attributes {stable_mosaic.version = 11 : i64} {
  func.func @resblock_kernel(%arg0: i32, %arg1: memref<1x16x16x4xf32, #tpu.memory_space<vmem>>, %arg2: memref<9x4x4xbf16, #tpu.memory_space<vmem>>, %arg3: memref<1x4xf32, #tpu.memory_space<vmem>>, %arg4: memref<9x4x4xbf16, #tpu.memory_space<vmem>>, %arg5: memref<1x4xf32, #tpu.memory_space<vmem>>, %arg6: memref<1x16x16x4xf32, #tpu.memory_space<vmem>>) attributes {dimension_semantics = [#tpu.dimension_semantics<parallel>], iteration_bounds = array<i64: 2>, scalar_prefetch = 0 : i64, scratch_operands = 0 : i64, tpu.core_type = #tpu.core_type<tc>, window_params = [{transform_indices = @transform_0, window_bounds = array<i64: 1, 16, 16, 4>}, {pipeline_mode = #tpu.pipeline_mode<synchronous>, transform_indices = @transform_1, window_bounds = array<i64: 9, 4, 4>}, {pipeline_mode = #tpu.pipeline_mode<synchronous>, transform_indices = @transform_2, window_bounds = array<i64: 1, 4>}, {pipeline_mode = #tpu.pipeline_mode<synchronous>, transform_indices = @transform_3, window_bounds = array<i64: 9, 4, 4>}, {pipeline_mode = #tpu.pipeline_mode<synchronous>, transform_indices = @transform_4, window_bounds = array<i64: 1, 4>}, {transform_indices = @transform_5, window_bounds = array<i64: 1, 16, 16, 4>}]} {
    %c0 = arith.constant 0 : index
    %c0_0 = arith.constant 0 : index
    %c0_1 = arith.constant 0 : index
    %c0_2 = arith.constant 0 : index
    %0 = vector.load %arg1[%c0, %c0_0, %c0_1, %c0_2] : memref<1x16x16x4xf32, #tpu.memory_space<vmem>>, vector<1x16x16x4xf32>
    %c0_3 = arith.constant 0 : index
    %c0_4 = arith.constant 0 : index
    %c0_5 = arith.constant 0 : index
    %1 = vector.load %arg2[%c0_3, %c0_4, %c0_5] : memref<9x4x4xbf16, #tpu.memory_space<vmem>>, vector<9x4x4xbf16>
    %c0_6 = arith.constant 0 : index
    %c0_7 = arith.constant 0 : index
    %c0_8 = arith.constant 0 : index
    %2 = vector.load %arg4[%c0_6, %c0_7, %c0_8] : memref<9x4x4xbf16, #tpu.memory_space<vmem>>, vector<9x4x4xbf16>
    %c0_9 = arith.constant 0 : index
    %c0_10 = arith.constant 0 : index
    %3 = vector.load %arg3[%c0_9, %c0_10] : memref<1x4xf32, #tpu.memory_space<vmem>>, vector<1x4xf32>
    %c0_11 = arith.constant 0 : index
    %c0_12 = arith.constant 0 : index
    %4 = vector.load %arg5[%c0_11, %c0_12] : memref<1x4xf32, #tpu.memory_space<vmem>>, vector<1x4xf32>
    %5 = vector.extract_strided_slice %0 {offsets = [0, 15, 0, 0], sizes = [1, 1, 16, 4], strides = [1, 1, 1, 1]} : vector<1x16x16x4xf32> to vector<1x1x16x4xf32>
    %6 = vector.extract_strided_slice %0 {offsets = [0, 0, 0, 0], sizes = [1, 15, 16, 4], strides = [1, 1, 1, 1]} : vector<1x16x16x4xf32> to vector<1x15x16x4xf32>
    %7 = tpu.concatenate %5, %6 in 1 : vector<1x1x16x4xf32>, vector<1x15x16x4xf32> -> vector<1x16x16x4xf32>
    %8 = vector.extract_strided_slice %7 {offsets = [0, 0, 15, 0], sizes = [1, 16, 1, 4], strides = [1, 1, 1, 1]} : vector<1x16x16x4xf32> to vector<1x16x1x4xf32>
    %9 = vector.extract_strided_slice %7 {offsets = [0, 0, 0, 0], sizes = [1, 16, 15, 4], strides = [1, 1, 1, 1]} : vector<1x16x16x4xf32> to vector<1x16x15x4xf32>
    %10 = tpu.concatenate %8, %9 in 2 : vector<1x16x1x4xf32>, vector<1x16x15x4xf32> -> vector<1x16x16x4xf32>
    %11 = vector.shape_cast %10 : vector<1x16x16x4xf32> to vector<256x4xf32>
    %12 = arith.truncf %11 : vector<256x4xf32> to vector<256x4xbf16>
    %13 = vector.extract_strided_slice %1 {offsets = [0, 0, 0], sizes = [1, 4, 4], strides = [1, 1, 1]} : vector<9x4x4xbf16> to vector<1x4x4xbf16>
    %14 = vector.shape_cast %13 : vector<1x4x4xbf16> to vector<4x4xbf16>
    %cst = arith.constant dense<0.000000e+00> : vector<256x4xf32>
    %15 = tpu.matmul %12, %14, %cst {dimension_numbers = #tpu.dot_dimension_numbers<[1], [0], [0], [1], [0, 0, 1, 1], [], []>} : vector<256x4xbf16>, vector<4x4xbf16>, vector<256x4xf32> -> vector<256x4xf32>
    %16 = vector.shape_cast %7 : vector<1x16x16x4xf32> to vector<256x4xf32>
    %17 = arith.truncf %16 : vector<256x4xf32> to vector<256x4xbf16>
    %18 = vector.extract_strided_slice %1 {offsets = [1, 0, 0], sizes = [1, 4, 4], strides = [1, 1, 1]} : vector<9x4x4xbf16> to vector<1x4x4xbf16>
    %19 = vector.shape_cast %18 : vector<1x4x4xbf16> to vector<4x4xbf16>
    %cst_13 = arith.constant dense<0.000000e+00> : vector<256x4xf32>
    %20 = tpu.matmul %17, %19, %cst_13 {dimension_numbers = #tpu.dot_dimension_numbers<[1], [0], [0], [1], [0, 0, 1, 1], [], []>} : vector<256x4xbf16>, vector<4x4xbf16>, vector<256x4xf32> -> vector<256x4xf32>
    %21 = arith.addf %15, %20 : vector<256x4xf32>
    %22 = vector.extract_strided_slice %7 {offsets = [0, 0, 1, 0], sizes = [1, 16, 15, 4], strides = [1, 1, 1, 1]} : vector<1x16x16x4xf32> to vector<1x16x15x4xf32>
    %23 = vector.extract_strided_slice %7 {offsets = [0, 0, 0, 0], sizes = [1, 16, 1, 4], strides = [1, 1, 1, 1]} : vector<1x16x16x4xf32> to vector<1x16x1x4xf32>
    %24 = tpu.concatenate %22, %23 in 2 : vector<1x16x15x4xf32>, vector<1x16x1x4xf32> -> vector<1x16x16x4xf32>
    %25 = vector.shape_cast %24 : vector<1x16x16x4xf32> to vector<256x4xf32>
    %26 = arith.truncf %25 : vector<256x4xf32> to vector<256x4xbf16>
    %27 = vector.extract_strided_slice %1 {offsets = [2, 0, 0], sizes = [1, 4, 4], strides = [1, 1, 1]} : vector<9x4x4xbf16> to vector<1x4x4xbf16>
    %28 = vector.shape_cast %27 : vector<1x4x4xbf16> to vector<4x4xbf16>
    %cst_14 = arith.constant dense<0.000000e+00> : vector<256x4xf32>
    %29 = tpu.matmul %26, %28, %cst_14 {dimension_numbers = #tpu.dot_dimension_numbers<[1], [0], [0], [1], [0, 0, 1, 1], [], []>} : vector<256x4xbf16>, vector<4x4xbf16>, vector<256x4xf32> -> vector<256x4xf32>
    %30 = arith.addf %21, %29 : vector<256x4xf32>
    %31 = vector.extract_strided_slice %0 {offsets = [0, 0, 15, 0], sizes = [1, 16, 1, 4], strides = [1, 1, 1, 1]} : vector<1x16x16x4xf32> to vector<1x16x1x4xf32>
    %32 = vector.extract_strided_slice %0 {offsets = [0, 0, 0, 0], sizes = [1, 16, 15, 4], strides = [1, 1, 1, 1]} : vector<1x16x16x4xf32> to vector<1x16x15x4xf32>
    %33 = tpu.concatenate %31, %32 in 2 : vector<1x16x1x4xf32>, vector<1x16x15x4xf32> -> vector<1x16x16x4xf32>
    %34 = vector.shape_cast %33 : vector<1x16x16x4xf32> to vector<256x4xf32>
    %35 = arith.truncf %34 : vector<256x4xf32> to vector<256x4xbf16>
    %36 = vector.extract_strided_slice %1 {offsets = [3, 0, 0], sizes = [1, 4, 4], strides = [1, 1, 1]} : vector<9x4x4xbf16> to vector<1x4x4xbf16>
    %37 = vector.shape_cast %36 : vector<1x4x4xbf16> to vector<4x4xbf16>
    %cst_15 = arith.constant dense<0.000000e+00> : vector<256x4xf32>
    %38 = tpu.matmul %35, %37, %cst_15 {dimension_numbers = #tpu.dot_dimension_numbers<[1], [0], [0], [1], [0, 0, 1, 1], [], []>} : vector<256x4xbf16>, vector<4x4xbf16>, vector<256x4xf32> -> vector<256x4xf32>
    %39 = arith.addf %30, %38 : vector<256x4xf32>
    %40 = vector.shape_cast %0 : vector<1x16x16x4xf32> to vector<256x4xf32>
    %41 = arith.truncf %40 : vector<256x4xf32> to vector<256x4xbf16>
    %42 = vector.extract_strided_slice %1 {offsets = [4, 0, 0], sizes = [1, 4, 4], strides = [1, 1, 1]} : vector<9x4x4xbf16> to vector<1x4x4xbf16>
    %43 = vector.shape_cast %42 : vector<1x4x4xbf16> to vector<4x4xbf16>
    %cst_16 = arith.constant dense<0.000000e+00> : vector<256x4xf32>
    %44 = tpu.matmul %41, %43, %cst_16 {dimension_numbers = #tpu.dot_dimension_numbers<[1], [0], [0], [1], [0, 0, 1, 1], [], []>} : vector<256x4xbf16>, vector<4x4xbf16>, vector<256x4xf32> -> vector<256x4xf32>
    %45 = arith.addf %39, %44 : vector<256x4xf32>
    %46 = vector.extract_strided_slice %0 {offsets = [0, 0, 1, 0], sizes = [1, 16, 15, 4], strides = [1, 1, 1, 1]} : vector<1x16x16x4xf32> to vector<1x16x15x4xf32>
    %47 = vector.extract_strided_slice %0 {offsets = [0, 0, 0, 0], sizes = [1, 16, 1, 4], strides = [1, 1, 1, 1]} : vector<1x16x16x4xf32> to vector<1x16x1x4xf32>
    %48 = tpu.concatenate %46, %47 in 2 : vector<1x16x15x4xf32>, vector<1x16x1x4xf32> -> vector<1x16x16x4xf32>
    %49 = vector.shape_cast %48 : vector<1x16x16x4xf32> to vector<256x4xf32>
    %50 = arith.truncf %49 : vector<256x4xf32> to vector<256x4xbf16>
    %51 = vector.extract_strided_slice %1 {offsets = [5, 0, 0], sizes = [1, 4, 4], strides = [1, 1, 1]} : vector<9x4x4xbf16> to vector<1x4x4xbf16>
    %52 = vector.shape_cast %51 : vector<1x4x4xbf16> to vector<4x4xbf16>
    %cst_17 = arith.constant dense<0.000000e+00> : vector<256x4xf32>
    %53 = tpu.matmul %50, %52, %cst_17 {dimension_numbers = #tpu.dot_dimension_numbers<[1], [0], [0], [1], [0, 0, 1, 1], [], []>} : vector<256x4xbf16>, vector<4x4xbf16>, vector<256x4xf32> -> vector<256x4xf32>
    %54 = arith.addf %45, %53 : vector<256x4xf32>
    %55 = vector.extract_strided_slice %0 {offsets = [0, 1, 0, 0], sizes = [1, 15, 16, 4], strides = [1, 1, 1, 1]} : vector<1x16x16x4xf32> to vector<1x15x16x4xf32>
    %56 = vector.extract_strided_slice %0 {offsets = [0, 0, 0, 0], sizes = [1, 1, 16, 4], strides = [1, 1, 1, 1]} : vector<1x16x16x4xf32> to vector<1x1x16x4xf32>
    %57 = tpu.concatenate %55, %56 in 1 : vector<1x15x16x4xf32>, vector<1x1x16x4xf32> -> vector<1x16x16x4xf32>
    %58 = vector.extract_strided_slice %57 {offsets = [0, 0, 15, 0], sizes = [1, 16, 1, 4], strides = [1, 1, 1, 1]} : vector<1x16x16x4xf32> to vector<1x16x1x4xf32>
    %59 = vector.extract_strided_slice %57 {offsets = [0, 0, 0, 0], sizes = [1, 16, 15, 4], strides = [1, 1, 1, 1]} : vector<1x16x16x4xf32> to vector<1x16x15x4xf32>
    %60 = tpu.concatenate %58, %59 in 2 : vector<1x16x1x4xf32>, vector<1x16x15x4xf32> -> vector<1x16x16x4xf32>
    %61 = vector.shape_cast %60 : vector<1x16x16x4xf32> to vector<256x4xf32>
    %62 = arith.truncf %61 : vector<256x4xf32> to vector<256x4xbf16>
    %63 = vector.extract_strided_slice %1 {offsets = [6, 0, 0], sizes = [1, 4, 4], strides = [1, 1, 1]} : vector<9x4x4xbf16> to vector<1x4x4xbf16>
    %64 = vector.shape_cast %63 : vector<1x4x4xbf16> to vector<4x4xbf16>
    %cst_18 = arith.constant dense<0.000000e+00> : vector<256x4xf32>
    %65 = tpu.matmul %62, %64, %cst_18 {dimension_numbers = #tpu.dot_dimension_numbers<[1], [0], [0], [1], [0, 0, 1, 1], [], []>} : vector<256x4xbf16>, vector<4x4xbf16>, vector<256x4xf32> -> vector<256x4xf32>
    %66 = arith.addf %54, %65 : vector<256x4xf32>
    %67 = vector.shape_cast %57 : vector<1x16x16x4xf32> to vector<256x4xf32>
    %68 = arith.truncf %67 : vector<256x4xf32> to vector<256x4xbf16>
    %69 = vector.extract_strided_slice %1 {offsets = [7, 0, 0], sizes = [1, 4, 4], strides = [1, 1, 1]} : vector<9x4x4xbf16> to vector<1x4x4xbf16>
    %70 = vector.shape_cast %69 : vector<1x4x4xbf16> to vector<4x4xbf16>
    %cst_19 = arith.constant dense<0.000000e+00> : vector<256x4xf32>
    %71 = tpu.matmul %68, %70, %cst_19 {dimension_numbers = #tpu.dot_dimension_numbers<[1], [0], [0], [1], [0, 0, 1, 1], [], []>} : vector<256x4xbf16>, vector<4x4xbf16>, vector<256x4xf32> -> vector<256x4xf32>
    %72 = arith.addf %66, %71 : vector<256x4xf32>
    %73 = vector.extract_strided_slice %57 {offsets = [0, 0, 1, 0], sizes = [1, 16, 15, 4], strides = [1, 1, 1, 1]} : vector<1x16x16x4xf32> to vector<1x16x15x4xf32>
    %74 = vector.extract_strided_slice %57 {offsets = [0, 0, 0, 0], sizes = [1, 16, 1, 4], strides = [1, 1, 1, 1]} : vector<1x16x16x4xf32> to vector<1x16x1x4xf32>
    %75 = tpu.concatenate %73, %74 in 2 : vector<1x16x15x4xf32>, vector<1x16x1x4xf32> -> vector<1x16x16x4xf32>
    %76 = vector.shape_cast %75 : vector<1x16x16x4xf32> to vector<256x4xf32>
    %77 = arith.truncf %76 : vector<256x4xf32> to vector<256x4xbf16>
    %78 = vector.extract_strided_slice %1 {offsets = [8, 0, 0], sizes = [1, 4, 4], strides = [1, 1, 1]} : vector<9x4x4xbf16> to vector<1x4x4xbf16>
    %79 = vector.shape_cast %78 : vector<1x4x4xbf16> to vector<4x4xbf16>
    %cst_20 = arith.constant dense<0.000000e+00> : vector<256x4xf32>
    %80 = tpu.matmul %77, %79, %cst_20 {dimension_numbers = #tpu.dot_dimension_numbers<[1], [0], [0], [1], [0, 0, 1, 1], [], []>} : vector<256x4xbf16>, vector<4x4xbf16>, vector<256x4xf32> -> vector<256x4xf32>
    %81 = arith.addf %72, %80 : vector<256x4xf32>
    %82 = vector.broadcast %3 : vector<1x4xf32> to vector<256x4xf32>
    %83 = arith.addf %81, %82 : vector<256x4xf32>
    %84 = vector.shape_cast %83 : vector<256x4xf32> to vector<1x16x16x4xf32>
    %cst_21 = arith.constant 0.000000e+00 : f32
    %85 = vector.broadcast %cst_21 : f32 to vector<1x16x16x4xf32>
    %86 = arith.maximumf %84, %85 : vector<1x16x16x4xf32>
    %87 = vector.extract_strided_slice %86 {offsets = [0, 15, 0, 0], sizes = [1, 1, 16, 4], strides = [1, 1, 1, 1]} : vector<1x16x16x4xf32> to vector<1x1x16x4xf32>
    %88 = vector.extract_strided_slice %86 {offsets = [0, 0, 0, 0], sizes = [1, 15, 16, 4], strides = [1, 1, 1, 1]} : vector<1x16x16x4xf32> to vector<1x15x16x4xf32>
    %89 = tpu.concatenate %87, %88 in 1 : vector<1x1x16x4xf32>, vector<1x15x16x4xf32> -> vector<1x16x16x4xf32>
    %90 = vector.extract_strided_slice %89 {offsets = [0, 0, 15, 0], sizes = [1, 16, 1, 4], strides = [1, 1, 1, 1]} : vector<1x16x16x4xf32> to vector<1x16x1x4xf32>
    %91 = vector.extract_strided_slice %89 {offsets = [0, 0, 0, 0], sizes = [1, 16, 15, 4], strides = [1, 1, 1, 1]} : vector<1x16x16x4xf32> to vector<1x16x15x4xf32>
    %92 = tpu.concatenate %90, %91 in 2 : vector<1x16x1x4xf32>, vector<1x16x15x4xf32> -> vector<1x16x16x4xf32>
    %93 = vector.shape_cast %92 : vector<1x16x16x4xf32> to vector<256x4xf32>
    %94 = arith.truncf %93 : vector<256x4xf32> to vector<256x4xbf16>
    %95 = vector.extract_strided_slice %2 {offsets = [0, 0, 0], sizes = [1, 4, 4], strides = [1, 1, 1]} : vector<9x4x4xbf16> to vector<1x4x4xbf16>
    %96 = vector.shape_cast %95 : vector<1x4x4xbf16> to vector<4x4xbf16>
    %cst_22 = arith.constant dense<0.000000e+00> : vector<256x4xf32>
    %97 = tpu.matmul %94, %96, %cst_22 {dimension_numbers = #tpu.dot_dimension_numbers<[1], [0], [0], [1], [0, 0, 1, 1], [], []>} : vector<256x4xbf16>, vector<4x4xbf16>, vector<256x4xf32> -> vector<256x4xf32>
    %98 = vector.shape_cast %89 : vector<1x16x16x4xf32> to vector<256x4xf32>
    %99 = arith.truncf %98 : vector<256x4xf32> to vector<256x4xbf16>
    %100 = vector.extract_strided_slice %2 {offsets = [1, 0, 0], sizes = [1, 4, 4], strides = [1, 1, 1]} : vector<9x4x4xbf16> to vector<1x4x4xbf16>
    %101 = vector.shape_cast %100 : vector<1x4x4xbf16> to vector<4x4xbf16>
    %cst_23 = arith.constant dense<0.000000e+00> : vector<256x4xf32>
    %102 = tpu.matmul %99, %101, %cst_23 {dimension_numbers = #tpu.dot_dimension_numbers<[1], [0], [0], [1], [0, 0, 1, 1], [], []>} : vector<256x4xbf16>, vector<4x4xbf16>, vector<256x4xf32> -> vector<256x4xf32>
    %103 = arith.addf %97, %102 : vector<256x4xf32>
    %104 = vector.extract_strided_slice %89 {offsets = [0, 0, 1, 0], sizes = [1, 16, 15, 4], strides = [1, 1, 1, 1]} : vector<1x16x16x4xf32> to vector<1x16x15x4xf32>
    %105 = vector.extract_strided_slice %89 {offsets = [0, 0, 0, 0], sizes = [1, 16, 1, 4], strides = [1, 1, 1, 1]} : vector<1x16x16x4xf32> to vector<1x16x1x4xf32>
    %106 = tpu.concatenate %104, %105 in 2 : vector<1x16x15x4xf32>, vector<1x16x1x4xf32> -> vector<1x16x16x4xf32>
    %107 = vector.shape_cast %106 : vector<1x16x16x4xf32> to vector<256x4xf32>
    %108 = arith.truncf %107 : vector<256x4xf32> to vector<256x4xbf16>
    %109 = vector.extract_strided_slice %2 {offsets = [2, 0, 0], sizes = [1, 4, 4], strides = [1, 1, 1]} : vector<9x4x4xbf16> to vector<1x4x4xbf16>
    %110 = vector.shape_cast %109 : vector<1x4x4xbf16> to vector<4x4xbf16>
    %cst_24 = arith.constant dense<0.000000e+00> : vector<256x4xf32>
    %111 = tpu.matmul %108, %110, %cst_24 {dimension_numbers = #tpu.dot_dimension_numbers<[1], [0], [0], [1], [0, 0, 1, 1], [], []>} : vector<256x4xbf16>, vector<4x4xbf16>, vector<256x4xf32> -> vector<256x4xf32>
    %112 = arith.addf %103, %111 : vector<256x4xf32>
    %113 = vector.extract_strided_slice %86 {offsets = [0, 0, 15, 0], sizes = [1, 16, 1, 4], strides = [1, 1, 1, 1]} : vector<1x16x16x4xf32> to vector<1x16x1x4xf32>
    %114 = vector.extract_strided_slice %86 {offsets = [0, 0, 0, 0], sizes = [1, 16, 15, 4], strides = [1, 1, 1, 1]} : vector<1x16x16x4xf32> to vector<1x16x15x4xf32>
    %115 = tpu.concatenate %113, %114 in 2 : vector<1x16x1x4xf32>, vector<1x16x15x4xf32> -> vector<1x16x16x4xf32>
    %116 = vector.shape_cast %115 : vector<1x16x16x4xf32> to vector<256x4xf32>
    %117 = arith.truncf %116 : vector<256x4xf32> to vector<256x4xbf16>
    %118 = vector.extract_strided_slice %2 {offsets = [3, 0, 0], sizes = [1, 4, 4], strides = [1, 1, 1]} : vector<9x4x4xbf16> to vector<1x4x4xbf16>
    %119 = vector.shape_cast %118 : vector<1x4x4xbf16> to vector<4x4xbf16>
    %cst_25 = arith.constant dense<0.000000e+00> : vector<256x4xf32>
    %120 = tpu.matmul %117, %119, %cst_25 {dimension_numbers = #tpu.dot_dimension_numbers<[1], [0], [0], [1], [0, 0, 1, 1], [], []>} : vector<256x4xbf16>, vector<4x4xbf16>, vector<256x4xf32> -> vector<256x4xf32>
    %121 = arith.addf %112, %120 : vector<256x4xf32>
    %122 = vector.shape_cast %86 : vector<1x16x16x4xf32> to vector<256x4xf32>
    %123 = arith.truncf %122 : vector<256x4xf32> to vector<256x4xbf16>
    %124 = vector.extract_strided_slice %2 {offsets = [4, 0, 0], sizes = [1, 4, 4], strides = [1, 1, 1]} : vector<9x4x4xbf16> to vector<1x4x4xbf16>
    %125 = vector.shape_cast %124 : vector<1x4x4xbf16> to vector<4x4xbf16>
    %cst_26 = arith.constant dense<0.000000e+00> : vector<256x4xf32>
    %126 = tpu.matmul %123, %125, %cst_26 {dimension_numbers = #tpu.dot_dimension_numbers<[1], [0], [0], [1], [0, 0, 1, 1], [], []>} : vector<256x4xbf16>, vector<4x4xbf16>, vector<256x4xf32> -> vector<256x4xf32>
    %127 = arith.addf %121, %126 : vector<256x4xf32>
    %128 = vector.extract_strided_slice %86 {offsets = [0, 0, 1, 0], sizes = [1, 16, 15, 4], strides = [1, 1, 1, 1]} : vector<1x16x16x4xf32> to vector<1x16x15x4xf32>
    %129 = vector.extract_strided_slice %86 {offsets = [0, 0, 0, 0], sizes = [1, 16, 1, 4], strides = [1, 1, 1, 1]} : vector<1x16x16x4xf32> to vector<1x16x1x4xf32>
    %130 = tpu.concatenate %128, %129 in 2 : vector<1x16x15x4xf32>, vector<1x16x1x4xf32> -> vector<1x16x16x4xf32>
    %131 = vector.shape_cast %130 : vector<1x16x16x4xf32> to vector<256x4xf32>
    %132 = arith.truncf %131 : vector<256x4xf32> to vector<256x4xbf16>
    %133 = vector.extract_strided_slice %2 {offsets = [5, 0, 0], sizes = [1, 4, 4], strides = [1, 1, 1]} : vector<9x4x4xbf16> to vector<1x4x4xbf16>
    %134 = vector.shape_cast %133 : vector<1x4x4xbf16> to vector<4x4xbf16>
    %cst_27 = arith.constant dense<0.000000e+00> : vector<256x4xf32>
    %135 = tpu.matmul %132, %134, %cst_27 {dimension_numbers = #tpu.dot_dimension_numbers<[1], [0], [0], [1], [0, 0, 1, 1], [], []>} : vector<256x4xbf16>, vector<4x4xbf16>, vector<256x4xf32> -> vector<256x4xf32>
    %136 = arith.addf %127, %135 : vector<256x4xf32>
    %137 = vector.extract_strided_slice %86 {offsets = [0, 1, 0, 0], sizes = [1, 15, 16, 4], strides = [1, 1, 1, 1]} : vector<1x16x16x4xf32> to vector<1x15x16x4xf32>
    %138 = vector.extract_strided_slice %86 {offsets = [0, 0, 0, 0], sizes = [1, 1, 16, 4], strides = [1, 1, 1, 1]} : vector<1x16x16x4xf32> to vector<1x1x16x4xf32>
    %139 = tpu.concatenate %137, %138 in 1 : vector<1x15x16x4xf32>, vector<1x1x16x4xf32> -> vector<1x16x16x4xf32>
    %140 = vector.extract_strided_slice %139 {offsets = [0, 0, 15, 0], sizes = [1, 16, 1, 4], strides = [1, 1, 1, 1]} : vector<1x16x16x4xf32> to vector<1x16x1x4xf32>
    %141 = vector.extract_strided_slice %139 {offsets = [0, 0, 0, 0], sizes = [1, 16, 15, 4], strides = [1, 1, 1, 1]} : vector<1x16x16x4xf32> to vector<1x16x15x4xf32>
    %142 = tpu.concatenate %140, %141 in 2 : vector<1x16x1x4xf32>, vector<1x16x15x4xf32> -> vector<1x16x16x4xf32>
    %143 = vector.shape_cast %142 : vector<1x16x16x4xf32> to vector<256x4xf32>
    %144 = arith.truncf %143 : vector<256x4xf32> to vector<256x4xbf16>
    %145 = vector.extract_strided_slice %2 {offsets = [6, 0, 0], sizes = [1, 4, 4], strides = [1, 1, 1]} : vector<9x4x4xbf16> to vector<1x4x4xbf16>
    %146 = vector.shape_cast %145 : vector<1x4x4xbf16> to vector<4x4xbf16>
    %cst_28 = arith.constant dense<0.000000e+00> : vector<256x4xf32>
    %147 = tpu.matmul %144, %146, %cst_28 {dimension_numbers = #tpu.dot_dimension_numbers<[1], [0], [0], [1], [0, 0, 1, 1], [], []>} : vector<256x4xbf16>, vector<4x4xbf16>, vector<256x4xf32> -> vector<256x4xf32>
    %148 = arith.addf %136, %147 : vector<256x4xf32>
    %149 = vector.shape_cast %139 : vector<1x16x16x4xf32> to vector<256x4xf32>
    %150 = arith.truncf %149 : vector<256x4xf32> to vector<256x4xbf16>
    %151 = vector.extract_strided_slice %2 {offsets = [7, 0, 0], sizes = [1, 4, 4], strides = [1, 1, 1]} : vector<9x4x4xbf16> to vector<1x4x4xbf16>
    %152 = vector.shape_cast %151 : vector<1x4x4xbf16> to vector<4x4xbf16>
    %cst_29 = arith.constant dense<0.000000e+00> : vector<256x4xf32>
    %153 = tpu.matmul %150, %152, %cst_29 {dimension_numbers = #tpu.dot_dimension_numbers<[1], [0], [0], [1], [0, 0, 1, 1], [], []>} : vector<256x4xbf16>, vector<4x4xbf16>, vector<256x4xf32> -> vector<256x4xf32>
    %154 = arith.addf %148, %153 : vector<256x4xf32>
    %155 = vector.extract_strided_slice %139 {offsets = [0, 0, 1, 0], sizes = [1, 16, 15, 4], strides = [1, 1, 1, 1]} : vector<1x16x16x4xf32> to vector<1x16x15x4xf32>
    %156 = vector.extract_strided_slice %139 {offsets = [0, 0, 0, 0], sizes = [1, 16, 1, 4], strides = [1, 1, 1, 1]} : vector<1x16x16x4xf32> to vector<1x16x1x4xf32>
    %157 = tpu.concatenate %155, %156 in 2 : vector<1x16x15x4xf32>, vector<1x16x1x4xf32> -> vector<1x16x16x4xf32>
    %158 = vector.shape_cast %157 : vector<1x16x16x4xf32> to vector<256x4xf32>
    %159 = arith.truncf %158 : vector<256x4xf32> to vector<256x4xbf16>
    %160 = vector.extract_strided_slice %2 {offsets = [8, 0, 0], sizes = [1, 4, 4], strides = [1, 1, 1]} : vector<9x4x4xbf16> to vector<1x4x4xbf16>
    %161 = vector.shape_cast %160 : vector<1x4x4xbf16> to vector<4x4xbf16>
    %cst_30 = arith.constant dense<0.000000e+00> : vector<256x4xf32>
    %162 = tpu.matmul %159, %161, %cst_30 {dimension_numbers = #tpu.dot_dimension_numbers<[1], [0], [0], [1], [0, 0, 1, 1], [], []>} : vector<256x4xbf16>, vector<4x4xbf16>, vector<256x4xf32> -> vector<256x4xf32>
    %163 = arith.addf %154, %162 : vector<256x4xf32>
    %164 = vector.broadcast %4 : vector<1x4xf32> to vector<256x4xf32>
    %165 = arith.addf %163, %164 : vector<256x4xf32>
    %166 = vector.shape_cast %165 : vector<256x4xf32> to vector<1x16x16x4xf32>
    %167 = arith.addf %166, %0 : vector<1x16x16x4xf32>
    %cst_31 = arith.constant 0.000000e+00 : f32
    %168 = vector.broadcast %cst_31 : f32 to vector<1x16x16x4xf32>
    %169 = arith.maximumf %167, %168 : vector<1x16x16x4xf32>
    %c0_32 = arith.constant 0 : index
    %c0_33 = arith.constant 0 : index
    %c0_34 = arith.constant 0 : index
    %c0_35 = arith.constant 0 : index
    %170 = vector.load %arg6[%c0_32, %c0_33, %c0_34, %c0_35] : memref<1x16x16x4xf32, #tpu.memory_space<vmem>>, vector<1x16x16x4xf32>
    tpu.vector_store %arg6[%c0_32, %c0_33, %c0_34, %c0_35], %169 {strides = array<i32>} : memref<1x16x16x4xf32, #tpu.memory_space<vmem>>, vector<1x16x16x4xf32>,
    return
  }
  func.func @transform_0(%arg0: i32) -> (i32, i32, i32, i32) {
    %c0_i32 = arith.constant 0 : i32
    %c0_i32_0 = arith.constant 0 : i32
    %c0_i32_1 = arith.constant 0 : i32
    %c0_i32_2 = arith.constant 0 : i32
    return %arg0, %c0_i32, %c0_i32_0, %c0_i32_1 : i32, i32, i32, i32
  }
  func.func @transform_1(%arg0: i32) -> (i32, i32, i32) {
    %c0_i32 = arith.constant 0 : i32
    %c0_i32_0 = arith.constant 0 : i32
    %c0_i32_1 = arith.constant 0 : i32
    %c0_i32_2 = arith.constant 0 : i32
    return %c0_i32, %c0_i32_0, %c0_i32_1 : i32, i32, i32
  }
  func.func @transform_2(%arg0: i32) -> (i32, i32) {
    %c0_i32 = arith.constant 0 : i32
    %c0_i32_0 = arith.constant 0 : i32
    %c0_i32_1 = arith.constant 0 : i32
    return %c0_i32, %c0_i32_0 : i32, i32
  }
  func.func @transform_3(%arg0: i32) -> (i32, i32, i32) {
    %c0_i32 = arith.constant 0 : i32
    %c0_i32_0 = arith.constant 0 : i32
    %c0_i32_1 = arith.constant 0 : i32
    %c0_i32_2 = arith.constant 0 : i32
    return %c0_i32, %c0_i32_0, %c0_i32_1 : i32, i32, i32
  }
  func.func @transform_4(%arg0: i32) -> (i32, i32) {
    %c0_i32 = arith.constant 0 : i32
    %c0_i32_0 = arith.constant 0 : i32
    %c0_i32_1 = arith.constant 0 : i32
    return %c0_i32, %c0_i32_0 : i32, i32
  }
  func.func @transform_5(%arg0: i32) -> (i32, i32, i32, i32) {
    %c0_i32 = arith.constant 0 : i32
    %c0_i32_0 = arith.constant 0 : i32
    %c0_i32_1 = arith.constant 0 : i32
    %c0_i32_2 = arith.constant 0 : i32
    return %arg0, %c0_i32, %c0_i32_0, %c0_i32_1 : i32, i32, i32, i32
  }
}

</mosaic_0001>

<llo_original>
// kernel: tpu_custom_call.1
$region0: #{tpu_custom_call.1}
  #allocation0 [shape = 'u32[]', space=smem, size = 0x4, offset = 0x4, fixed_abs, tag = 'smem constant byte address 0x4 - core index']
  #allocation1 [shape = 'u32[144,128]{1,0:T(1,128)}', space=vmem, size = 0x12000, scoped, tag = 'internal scratch']
  %s0 = inlined_call_operand.vmem [shape: f32[2,16,16,4], index: 0, kind: input, shape index: {}]
  %s1 = inlined_call_operand.vmem [shape: bf16[9,4,4], index: 1, kind: input, shape index: {}]
  %s2 = inlined_call_operand.vmem [shape: f32[1,4], index: 2, kind: input, shape index: {}]
  %s3 = inlined_call_operand.vmem [shape: bf16[9,4,4], index: 3, kind: input, shape index: {}]
  %s4 = inlined_call_operand.vmem [shape: f32[1,4], index: 4, kind: input, shape index: {}]
  %s5 = inlined_call_operand.vmem [shape: f32[2,16,16,4], index: 5, kind: output, shape index: {}]
  %s6 = sld [smem:[#allocation0]]
  $region53: #{tpu_custom_call.1} parent=0
    _
  %s8 = ssub.s32 1, %s6
  %s9 = scalar_select 0, %s8, %s6
  loop: start=0, step=1, limit=4
  $region2: #{tpu_custom_call.1} parent=0 // loop_pre_header
    _
  $region3: #{tpu_custom_call.1} parent=0 // loop_header
    %s11 = sphi 0, %s15
    %p12 = scmp.ge.s32.totalorder %s11, 4
    %s21 = sphi 0, %s23
    %s24 = sphi 0, %s21
    %s25 = sphi 0, %s24
    %s41 = sphi 0, %s25
    %s45 = sphi 0, %s45
    %s47 = sphi 0, %s45
    %s48 = sphi 0, %s47
    %s62 = sphi 0, %s48
    %s66 = sphi 0, %s66
    %s68 = sphi 0, %s66
    %s69 = sphi 0, %s68
    %s83 = sphi 0, %s69
    %s87 = sphi 0, %s87
    %s89 = sphi 0, %s87
    %s90 = sphi 0, %s89
    %s104 = sphi 0, %s90
    %s108 = sphi 0, %s108
    %s110 = sphi 0, %s108
    %s111 = sphi 0, %s110
    %s125 = sphi 0, %s111
    %s131 = sphi 0, %s133
    %s134 = sphi 0, %s131
    %s135 = sphi 0, %s134
    %s151 = sphi 0, %s135
  $region4: #{tpu_custom_call.1} parent=0 // loop_header_branch
    %14 = sbr.rel (%p12) target = $region8
  $region5: #{tpu_custom_call.1} parent=0 // loop_body
    %s16 = ssub.s32 %s11, 1
    %s17 = ssub.s32 %s11, 2
    %s18 = sadd.s32 %s11, 1
    %s19 = ssub.s32 %s11, %s18
    %p20 = scmp.eq.s32.totalorder %s19, 0
    %s22 = sadd.s32 %s21, 1
    %s23 = scalar_select %p20, %s21, %s22
    %p26 = pneg %p20
    %p27 = scmp.eq.s32.totalorder %s11, 1
    %p28 = por %p26, %p27
    %p29 = scmp.ne.s32.totalorder %s21, %s24
    %p30 = scmp.eq.s32.totalorder %s11, 0
    %p31 = por %p29, %p30
    %p32 = scmp.ne.s32.totalorder %s21, %s24
    %p33 = scmp.eq.s32.totalorder %s16, 1
    %p34 = por %p32, %p33
    %p35 = scmp.ne.s32.totalorder %s24, %s25
    %p36 = scmp.eq.s32.totalorder %s16, 0
    %p37 = por %p35, %p36
    %p38 = scmp.ne.s32.totalorder %s24, %s25
    %p39 = scmp.eq.s32.totalorder %s17, 1
    %p40 = por %p38, %p39
    %p42 = scmp.ne.s32.totalorder %s25, %s41
    %p43 = scmp.eq.s32.totalorder %s17, 0
    %p44 = por %p42, %p43
    %s46 = sadd.s32 %s45, 1
    %p49 = scmp.eq.s32.totalorder %s11, 1
    %p50 = scmp.ne.s32.totalorder %s45, %s47
    %p51 = scmp.eq.s32.totalorder %s11, 0
    %p52 = por %p50, %p51
    %p53 = scmp.ne.s32.totalorder %s45, %s47
    %p54 = scmp.eq.s32.totalorder %s16, 1
    %p55 = por %p53, %p54
    %p56 = scmp.ne.s32.totalorder %s47, %s48
    %p57 = scmp.eq.s32.totalorder %s16, 0
    %p58 = por %p56, %p57
    %p59 = scmp.ne.s32.totalorder %s47, %s48
    %p60 = scmp.eq.s32.totalorder %s17, 1
    %p61 = por %p59, %p60
    %p63 = scmp.ne.s32.totalorder %s48, %s62
    %p64 = scmp.eq.s32.totalorder %s17, 0
    %p65 = por %p63, %p64
    %s67 = sadd.s32 %s66, 1
    %p70 = scmp.eq.s32.totalorder %s11, 1
    %p71 = scmp.ne.s32.totalorder %s66, %s68
    %p72 = scmp.eq.s32.totalorder %s11, 0
    %p73 = por %p71, %p72
    %p74 = scmp.ne.s32.totalorder %s66, %s68
    %p75 = scmp.eq.s32.totalorder %s16, 1
    %p76 = por %p74, %p75
    %p77 = scmp.ne.s32.totalorder %s68, %s69
    %p78 = scmp.eq.s32.totalorder %s16, 0
    %p79 = por %p77, %p78
    %p80 = scmp.ne.s32.totalorder %s68, %s69
    %p81 = scmp.eq.s32.totalorder %s17, 1
    %p82 = por %p80, %p81
    %p84 = scmp.ne.s32.totalorder %s69, %s83
    %p85 = scmp.eq.s32.totalorder %s17, 0
    %p86 = por %p84, %p85
    %s88 = sadd.s32 %s87, 1
    %p91 = scmp.eq.s32.totalorder %s11, 1
    %p92 = scmp.ne.s32.totalorder %s87, %s89
    %p93 = scmp.eq.s32.totalorder %s11, 0
    %p94 = por %p92, %p93
    %p95 = scmp.ne.s32.totalorder %s87, %s89
    %p96 = scmp.eq.s32.totalorder %s16, 1
    %p97 = por %p95, %p96
    %p98 = scmp.ne.s32.totalorder %s89, %s90
    %p99 = scmp.eq.s32.totalorder %s16, 0
    %p100 = por %p98, %p99
    %p101 = scmp.ne.s32.totalorder %s89, %s90
    %p102 = scmp.eq.s32.totalorder %s17, 1
    %p103 = por %p101, %p102
    %p105 = scmp.ne.s32.totalorder %s90, %s104
    %p106 = scmp.eq.s32.totalorder %s17, 0
    %p107 = por %p105, %p106
    %s109 = sadd.s32 %s108, 1
    %p112 = scmp.eq.s32.totalorder %s11, 1
    %p113 = scmp.ne.s32.totalorder %s108, %s110
    %p114 = scmp.eq.s32.totalorder %s11, 0
    %p115 = por %p113, %p114
    %p116 = scmp.ne.s32.totalorder %s108, %s110
    %p117 = scmp.eq.s32.totalorder %s16, 1
    %p118 = por %p116, %p117
    %p119 = scmp.ne.s32.totalorder %s110, %s111
    %p120 = scmp.eq.s32.totalorder %s16, 0
    %p121 = por %p119, %p120
    %p122 = scmp.ne.s32.totalorder %s110, %s111
    %p123 = scmp.eq.s32.totalorder %s17, 1
    %p124 = por %p122, %p123
    %p126 = scmp.ne.s32.totalorder %s111, %s125
    %p127 = scmp.eq.s32.totalorder %s17, 0
    %p128 = por %p126, %p127
    %s129 = ssub.s32 %s11, %s18
    %p130 = scmp.eq.s32.totalorder %s129, 0
    %s132 = sadd.s32 %s131, 1
    %s133 = scalar_select %p130, %s131, %s132
    %p136 = pneg %p130
    %p137 = scmp.eq.s32.totalorder %s11, 1
    %p138 = por %p136, %p137
    %p139 = scmp.ne.s32.totalorder %s131, %s134
    %p140 = scmp.eq.s32.totalorder %s11, 0
    %p141 = por %p139, %p140
    %p142 = scmp.ne.s32.totalorder %s131, %s134
    %p143 = scmp.eq.s32.totalorder %s16, 1
    %p144 = por %p142, %p143
    %p145 = scmp.ne.s32.totalorder %s134, %s135
    %p146 = scmp.eq.s32.totalorder %s16, 0
    %p147 = por %p145, %p146
    %p148 = scmp.ne.s32.totalorder %s134, %s135
    %p149 = scmp.eq.s32.totalorder %s17, 1
    %p150 = por %p148, %p149
    %p152 = scmp.ne.s32.totalorder %s135, %s151
    %p153 = scmp.eq.s32.totalorder %s17, 0
    %p154 = por %p152, %p153
    %p155 = scmp.le.s32.totalorder 1, %s11
    %p156 = scmp.lt.s32.totalorder %s11, 3
    %p157 = pnand %p155, %p156
    %p158 = pneg %p157
    // Predicated region
    $region9: #{tpu_custom_call.1} parent=5 // pred_check
      _
    $region10: #{tpu_custom_call.1} parent=5 // pred_check_branch
      %160 = sbr.rel (%p157) target = $region12
    $region11: #{tpu_custom_call.1} parent=5 // pred_region
      %s161 = ssub.s32 %s11, 1
      // Predicated region
      $region13: #{tpu_custom_call.1} parent=11 // pred_check
        %p162 = pneg %p58
      $region14: #{tpu_custom_call.1} parent=11 // pred_check_branch
        %164 = sbr.rel (%p162) target = $region16
      $region15: #{tpu_custom_call.1} parent=11 // pred_region
        _
      $region16: #{tpu_custom_call.1} parent=11 // pred_fallthru
        _
      // Predicated region
      $region17: #{tpu_custom_call.1} parent=11 // pred_check
        %p165 = pneg %p79
      $region18: #{tpu_custom_call.1} parent=11 // pred_check_branch
        %167 = sbr.rel (%p165) target = $region20
      $region19: #{tpu_custom_call.1} parent=11 // pred_region
        _
      $region20: #{tpu_custom_call.1} parent=11 // pred_fallthru
        _
      // Predicated region
      $region21: #{tpu_custom_call.1} parent=11 // pred_check
        %p168 = pneg %p100
      $region22: #{tpu_custom_call.1} parent=11 // pred_check_branch
        %170 = sbr.rel (%p168) target = $region24
      $region23: #{tpu_custom_call.1} parent=11 // pred_region
        _
      $region24: #{tpu_custom_call.1} parent=11 // pred_fallthru
        _
      // Predicated region
      $region25: #{tpu_custom_call.1} parent=11 // pred_check
        %p171 = pneg %p121
      $region26: #{tpu_custom_call.1} parent=11 // pred_check_branch
        %173 = sbr.rel (%p171) target = $region28
      $region27: #{tpu_custom_call.1} parent=11 // pred_region
        _
      $region28: #{tpu_custom_call.1} parent=11 // pred_fallthru
        _
    $region12: #{tpu_custom_call.1} parent=5 // pred_fallthru
      _
    %p174 = scmp.lt.s32.totalorder %s11, 2
    // Predicated region
    $region29: #{tpu_custom_call.1} parent=5 // pred_check
      %p175 = pneg %p174
    $region30: #{tpu_custom_call.1} parent=5 // pred_check_branch
      %177 = sbr.rel (%p175) target = $region32
    $region31: #{tpu_custom_call.1} parent=5 // pred_region
      // Predicated region
      $region33: #{tpu_custom_call.1} parent=31 // pred_check
        %p178 = pneg %p31
      $region34: #{tpu_custom_call.1} parent=31 // pred_check_branch
        %180 = sbr.rel (%p178) target = $region36
      $region35: #{tpu_custom_call.1} parent=31 // pred_region
        %p181 = scmp.lt.s32.totalorder %s11, 1
        %s182 = scalar_select %p181, %s11, 1
        %s183 = smul.addr %s182, 32
        %s184 = smul.addr %s183, 8
        %s185 = scalar_lea.vmem %s0, %s184
      $region36: #{tpu_custom_call.1} parent=31 // pred_fallthru
        _
    $region32: #{tpu_custom_call.1} parent=5 // pred_fallthru
      _
    %p186 = scmp.le.s32.totalorder 1, %s11
    %p187 = scmp.lt.s32.totalorder %s11, 3
    %p188 = pnand %p186, %p187
    %p189 = pneg %p188
    // Predicated region
    $region37: #{tpu_custom_call.1} parent=5 // pred_check
      _
    $region38: #{tpu_custom_call.1} parent=5 // pred_check_branch
      %191 = sbr.rel (%p188) target = $region40
    $region39: #{tpu_custom_call.1} parent=5 // pred_region
      %s192 = ssub.s32 %s11, 1
      %p193 = scmp.lt.s32.totalorder %s16, 1
      %s194 = scalar_select %p193, %s16, 1
      %s195 = smul.addr %s194, 32
      %s196 = smul.addr %s195, 8
      %s197 = scalar_lea.vmem %s0, %s196
      %p198 = pneg %p37
      %p199 = pneg %p34
      %p200 = pneg %p58
      %p201 = pneg %p55
      %p202 = pneg %p79
      %p203 = pneg %p76
      %p204 = pneg %p100
      %p205 = pneg %p97
      %p206 = pneg %p121
      %p207 = pneg %p118
      %p208 = pneg %p147
      %p209 = pneg %p144
      %p210 = scmp.lt.s32.totalorder %s16, 1
      %s211 = scalar_select %p210, %s16, 1
      %s212 = smul.addr %s211, 32
      %s213 = smul.addr %s212, 8
      %s214 = scalar_lea.vmem %s5, %s213
      %p215 = scmp.lt.s32.totalorder %s16, 1
      %s216 = scalar_select %p215, %s16, 1
      %s217 = smul.addr %s216, 32
      %s218 = smul.addr %s217, 8
      %s219 = scalar_lea.vmem %s0, %s218
      %p220 = scmp.lt.s32.totalorder %s16, 1
      %s221 = scalar_select %p220, %s16, 1
      %s222 = smul.addr %s221, 32
      %s223 = smul.addr %s222, 8
      %s224 = scalar_lea.vmem %s5, %s223
      %v226 = vld [vmem:[%s219] sm:$0xff]
      %v227 = vld [vmem:[%s219 + $0x8] sm:$0xff]
      %v228 = vld [vmem:[%s219 + $0x10] sm:$0xff]
      %v229 = vld [vmem:[%s219 + $0x18] sm:$0xff]
      %v230 = vld [vmem:[%s219 + $0x20] sm:$0xff]
      %v231 = vld [vmem:[%s219 + $0x28] sm:$0xff]
      %v232 = vld [vmem:[%s219 + $0x30] sm:$0xff]
      %v233 = vld [vmem:[%s219 + $0x38] sm:$0xff]
      %v234 = vld [vmem:[%s219 + $0x40] sm:$0xff]
      %v235 = vld [vmem:[%s219 + $0x48] sm:$0xff]
      %v236 = vld [vmem:[%s219 + $0x50] sm:$0xff]
      %v237 = vld [vmem:[%s219 + $0x58] sm:$0xff]
      %v238 = vld [vmem:[%s219 + $0x60] sm:$0xff]
      %v239 = vld [vmem:[%s219 + $0x68] sm:$0xff]
      %v240 = vld [vmem:[%s219 + $0x70] sm:$0xff]
      %v241 = vld [vmem:[%s219 + $0x78] sm:$0xff]
      %v242 = vld [vmem:[%s219 + $0x80] sm:$0xff]
      %v243 = vld [vmem:[%s219 + $0x88] sm:$0xff]
      %v244 = vld [vmem:[%s219 + $0x90] sm:$0xff]
      %v245 = vld [vmem:[%s219 + $0x98] sm:$0xff]
      %v246 = vld [vmem:[%s219 + $0xa0] sm:$0xff]
      %v247 = vld [vmem:[%s219 + $0xa8] sm:$0xff]
      %v248 = vld [vmem:[%s219 + $0xb0] sm:$0xff]
      %v249 = vld [vmem:[%s219 + $0xb8] sm:$0xff]
      %v250 = vld [vmem:[%s219 + $0xc0] sm:$0xff]
      %v251 = vld [vmem:[%s219 + $0xc8] sm:$0xff]
      %v252 = vld [vmem:[%s219 + $0xd0] sm:$0xff]
      %v253 = vld [vmem:[%s219 + $0xd8] sm:$0xff]
      %v254 = vld [vmem:[%s219 + $0xe0] sm:$0xff]
      %v255 = vld [vmem:[%s219 + $0xe8] sm:$0xff]
      %v256 = vld [vmem:[%s219 + $0xf0] sm:$0xff]
      %v257 = vld [vmem:[%s219 + $0xf8] sm:$0xff]
      %v258 = vld [vmem:[%s1] sm:$0x3]
      %v259 = vld [vmem:[%s1 + $0x2] sm:$0x3]
      %v260 = vld [vmem:[%s1 + $0x4] sm:$0x3]
      %v261 = vld [vmem:[%s1 + $0x6] sm:$0x3]
      %v262 = vld [vmem:[%s1 + $0x8] sm:$0x3]
      %v263 = vld [vmem:[%s1 + $0xa] sm:$0x3]
      %v264 = vld [vmem:[%s1 + $0xc] sm:$0x3]
      %v265 = vld [vmem:[%s1 + $0xe] sm:$0x3]
      %v266 = vld [vmem:[%s1 + $0x10] sm:$0x3]
      %v267 = vld [vmem:[%s3] sm:$0x3]
      %v268 = vld [vmem:[%s3 + $0x2] sm:$0x3]
      %v269 = vld [vmem:[%s3 + $0x4] sm:$0x3]
      %v270 = vld [vmem:[%s3 + $0x6] sm:$0x3]
      %v271 = vld [vmem:[%s3 + $0x8] sm:$0x3]
      %v272 = vld [vmem:[%s3 + $0xa] sm:$0x3]
      %v273 = vld [vmem:[%s3 + $0xc] sm:$0x3]
      %v274 = vld [vmem:[%s3 + $0xe] sm:$0x3]
      %v275 = vld [vmem:[%s3 + $0x10] sm:$0x3]
      %v276 = vld [vmem:[%s2] sm:$0x1]
      %v277 = vld [vmem:[%s4] sm:$0x1]
      %v294 = vrot.slane %v257, 7
      %v295 = vrot.slane %v227, 7
      %v296 = vrot.slane %v229, 7
      %v297 = vrot.slane %v231, 7
      %v298 = vrot.slane %v233, 7
      %v299 = vrot.slane %v235, 7
      %v300 = vrot.slane %v237, 7
      %v301 = vrot.slane %v239, 7
      %v302 = vrot.slane %v241, 7
      %v303 = vrot.slane %v243, 7
      %v304 = vrot.slane %v245, 7
      %v305 = vrot.slane %v247, 7
      %v306 = vrot.slane %v249, 7
      %v307 = vrot.slane %v251, 7
      %v308 = vrot.slane %v253, 7
      %v309 = vrot.slane %v255, 7
      %vm342 = vcmask 1040384
      %v343 = vrot.slane %v256, 7
      %v344 = vsel %vm342, %v343, %v294
      %v345 = vrot.slane %v226, 7
      %v346 = vsel %vm342, %v345, %v295
      %v347 = vrot.slane %v228, 7
      %v348 = vsel %vm342, %v347, %v296
      %v349 = vrot.slane %v230, 7
      %v350 = vsel %vm342, %v349, %v297
      %v351 = vrot.slane %v232, 7
      %v352 = vsel %vm342, %v351, %v298
      %v353 = vrot.slane %v234, 7
      %v354 = vsel %vm342, %v353, %v299
      %v355 = vrot.slane %v236, 7
      %v356 = vsel %vm342, %v355, %v300
      %v357 = vrot.slane %v238, 7
      %v358 = vsel %vm342, %v357, %v301
      %v359 = vrot.slane %v240, 7
      %v360 = vsel %vm342, %v359, %v302
      %v361 = vrot.slane %v242, 7
      %v362 = vsel %vm342, %v361, %v303
      %v363 = vrot.slane %v244, 7
      %v364 = vsel %vm342, %v363, %v304
      %v365 = vrot.slane %v246, 7
      %v366 = vsel %vm342, %v365, %v305
      %v367 = vrot.slane %v248, 7
      %v368 = vsel %vm342, %v367, %v306
      %v369 = vrot.slane %v250, 7
      %v370 = vsel %vm342, %v369, %v307
      %v371 = vrot.slane %v252, 7
      %v372 = vsel %vm342, %v371, %v308
      %v373 = vrot.slane %v254, 7
      %v374 = vsel %vm342, %v373, %v309
      %v407 = vsel %vm342, %v294, %v343
      %v408 = vsel %vm342, %v295, %v345
      %v409 = vsel %vm342, %v296, %v347
      %v410 = vsel %vm342, %v297, %v349
      %v411 = vsel %vm342, %v298, %v351
      %v412 = vsel %vm342, %v299, %v353
      %v413 = vsel %vm342, %v300, %v355
      %v414 = vsel %vm342, %v301, %v357
      %v415 = vsel %vm342, %v302, %v359
      %v416 = vsel %vm342, %v303, %v361
      %v417 = vsel %vm342, %v304, %v363
      %v418 = vsel %vm342, %v305, %v365
      %v419 = vsel %vm342, %v306, %v367
      %v420 = vsel %vm342, %v307, %v369
      %v421 = vsel %vm342, %v308, %v371
      %v422 = vsel %vm342, %v309, %v373
      %v423 = vpack.c.bf16 %v344, %v407
      %v424 = vpack.c.bf16 %v346, %v408
      %v425 = vpack.c.bf16 %v348, %v409
      %v426 = vpack.c.bf16 %v350, %v410
      %v427 = vpack.c.bf16 %v352, %v411
      %v428 = vpack.c.bf16 %v354, %v412
      %v429 = vpack.c.bf16 %v356, %v413
      %v430 = vpack.c.bf16 %v358, %v414
      %v431 = vpack.c.bf16 %v360, %v415
      %v432 = vpack.c.bf16 %v362, %v416
      %v433 = vpack.c.bf16 %v364, %v417
      %v434 = vpack.c.bf16 %v366, %v418
      %v435 = vpack.c.bf16 %v368, %v419
      %v436 = vpack.c.bf16 %v370, %v420
      %v437 = vpack.c.bf16 %v372, %v421
      %v438 = vpack.c.bf16 %v374, %v422
      %v439 = vpack.c.bf16 %v257, %v256
      %v440 = vpack.c.bf16 %v227, %v226
      %v441 = vpack.c.bf16 %v229, %v228
      %v442 = vpack.c.bf16 %v231, %v230
      %v443 = vpack.c.bf16 %v233, %v232
      %v444 = vpack.c.bf16 %v235, %v234
      %v445 = vpack.c.bf16 %v237, %v236
      %v446 = vpack.c.bf16 %v239, %v238
      %v447 = vpack.c.bf16 %v241, %v240
      %v448 = vpack.c.bf16 %v243, %v242
      %v449 = vpack.c.bf16 %v245, %v244
      %v450 = vpack.c.bf16 %v247, %v246
      %v451 = vpack.c.bf16 %v249, %v248
      %v452 = vpack.c.bf16 %v251, %v250
      %v453 = vpack.c.bf16 %v253, %v252
      %v454 = vpack.c.bf16 %v255, %v254
      %vm455 = vcmask 31744
      %v457 = vsel %vm455, %v439, 0
      %v460 = vsel %vm455, %v440, 0
      %v463 = vsel %vm455, %v441, 0
      %v466 = vsel %vm455, %v442, 0
      %v469 = vsel %vm455, %v443, 0
      %v472 = vsel %vm455, %v444, 0
      %v475 = vsel %vm455, %v445, 0
      %v478 = vsel %vm455, %v446, 0
      %v481 = vsel %vm455, %v447, 0
      %v484 = vsel %vm455, %v448, 0
      %v487 = vsel %vm455, %v449, 0
      %v490 = vsel %vm455, %v450, 0
      %v493 = vsel %vm455, %v451, 0
      %v496 = vsel %vm455, %v452, 0
      %v499 = vsel %vm455, %v453, 0
      %v502 = vsel %vm455, %v454, 0
      %vm504 = vcmask 1041408
      %v506 = vsel %vm504, %v259, 0
      %508 = vmatprep.subr.bf16.mxu0 0
      %509 = vmatpush1.bf16.msra.mxu0 0
      %510 = vmatprep.subr.bf16.mxu0 0
      %511 = vmatpush1.bf16.msra.mxu0 0
      %512 = vmatprep.subr.bf16.mxu0 0
      %513 = vmatpush1.bf16.msra.mxu0 0
      %514 = vmatprep.subr.bf16.mxu0 0
      %515 = vmatpush1.bf16.msra.mxu0 0
      %516 = vmatprep.subr.bf16.mxu0 0
      %517 = vmatpush1.bf16.msra.mxu0 0
      %518 = vmatprep.subr.bf16.mxu0 0
      %519 = vmatpush1.bf16.msra.mxu0 0
      %520 = vmatprep.subr.bf16.mxu0 0
      %521 = vmatpush1.bf16.msra.mxu0 0
      %522 = vmatprep.subr.bf16.mxu0 0
      %523 = vmatpush1.bf16.msra.mxu0 %v506
      %524 = vmatprep.subr.bf16.mxu0 0
      %525 = vmatpush2.bf16.msra.mxu0 0
      %526 = vmatprep.subr.bf16.mxu0 0
      %527 = vmatpush2.bf16.msra.mxu0 0
      %528 = vmatprep.subr.bf16.mxu0 0
      %529 = vmatpush2.bf16.msra.mxu0 0
      %530 = vmatprep.subr.bf16.mxu0 0
      %531 = vmatpush2.bf16.msra.mxu0 0
      %532 = vmatprep.subr.bf16.mxu0 0
      %533 = vmatpush2.bf16.msra.mxu0 0
      %534 = vmatprep.subr.bf16.mxu0 0
      %535 = vmatpush2.bf16.msra.mxu0 0
      %536 = vmatprep.subr.bf16.mxu0 0
      %537 = vmatpush2.bf16.msra.mxu0 0
      %538 = vmatprep.subr.bf16.mxu0 0
      %539 = vmatpush2.bf16.msra.mxu0 0
      %540 = vmatprep.mubr.bf16.mxu0 0
      %541 = vmatmul.mubr.bf16.gmra.mxu0 %v457
      %v542 = vpop.f32.mrf.mxu0
      %v543 = vadd.f32 0.0, %v542
      %v544 = vpop.f32.mrf.mxu0
      %v545 = vpop.f32.mrf.mxu0
      %v546 = vadd.f32 0.0, %v545
      %v547 = vpop.f32.mrf.mxu0
      %548 = vmatprep.mubr.bf16.mxu0 0
      %549 = vmatmul.mubr.bf16.gmra.mxu0 %v460
      %v550 = vpop.f32.mrf.mxu0
      %v551 = vadd.f32 0.0, %v550
      %v552 = vpop.f32.mrf.mxu0
      %v553 = vpop.f32.mrf.mxu0
      %v554 = vadd.f32 0.0, %v553
      %v555 = vpop.f32.mrf.mxu0
      %556 = vmatprep.mubr.bf16.mxu0 0
      %557 = vmatmul.mubr.bf16.gmra.mxu0 %v463
      %v558 = vpop.f32.mrf.mxu0
      %v559 = vadd.f32 0.0, %v558
      %v560 = vpop.f32.mrf.mxu0
      %v561 = vpop.f32.mrf.mxu0
      %v562 = vadd.f32 0.0, %v561
      %v563 = vpop.f32.mrf.mxu0
      %564 = vmatprep.mubr.bf16.mxu0 0
      %565 = vmatmul.mubr.bf16.gmra.mxu0 %v466
      %v566 = vpop.f32.mrf.mxu0
      %v567 = vadd.f32 0.0, %v566
      %v568 = vpop.f32.mrf.mxu0
      %v569 = vpop.f32.mrf.mxu0
      %v570 = vadd.f32 0.0, %v569
      %v571 = vpop.f32.mrf.mxu0
      %572 = vmatprep.mubr.bf16.mxu0 0
      %573 = vmatmul.mubr.bf16.gmra.mxu0 %v469
      %v574 = vpop.f32.mrf.mxu0
      %v575 = vadd.f32 0.0, %v574
      %v576 = vpop.f32.mrf.mxu0
      %v577 = vpop.f32.mrf.mxu0
      %v578 = vadd.f32 0.0, %v577
      %v579 = vpop.f32.mrf.mxu0
      %580 = vmatprep.mubr.bf16.mxu0 0
      %581 = vmatmul.mubr.bf16.gmra.mxu0 %v472
      %v582 = vpop.f32.mrf.mxu0
      %v583 = vadd.f32 0.0, %v582
      %v584 = vpop.f32.mrf.mxu0
      %v585 = vpop.f32.mrf.mxu0
      %v586 = vadd.f32 0.0, %v585
      %v587 = vpop.f32.mrf.mxu0
      %588 = vmatprep.mubr.bf16.mxu0 0
      %589 = vmatmul.mubr.bf16.gmra.mxu0 %v475
      %v590 = vpop.f32.mrf.mxu0
      %v591 = vadd.f32 0.0, %v590
      %v592 = vpop.f32.mrf.mxu0
      %v593 = vpop.f32.mrf.mxu0
      %v594 = vadd.f32 0.0, %v593
      %v595 = vpop.f32.mrf.mxu0
      %596 = vmatprep.mubr.bf16.mxu0 0
      %597 = vmatmul.mubr.bf16.gmra.mxu0 %v478
      %v598 = vpop.f32.mrf.mxu0
      %v599 = vadd.f32 0.0, %v598
      %v600 = vpop.f32.mrf.mxu0
      %v601 = vpop.f32.mrf.mxu0
      %v602 = vadd.f32 0.0, %v601
      %v603 = vpop.f32.mrf.mxu0
      %604 = vmatprep.mubr.bf16.mxu0 0
      %605 = vmatmul.mubr.bf16.gmra.mxu0 %v481
      %v606 = vpop.f32.mrf.mxu0
      %v607 = vadd.f32 0.0, %v606
      %v608 = vpop.f32.mrf.mxu0
      %v609 = vpop.f32.mrf.mxu0
      %v610 = vadd.f32 0.0, %v609
      %v611 = vpop.f32.mrf.mxu0
      %612 = vmatprep.mubr.bf16.mxu0 0
      %613 = vmatmul.mubr.bf16.gmra.mxu0 %v484
      %v614 = vpop.f32.mrf.mxu0
      %v615 = vadd.f32 0.0, %v614
      %v616 = vpop.f32.mrf.mxu0
      %v617 = vpop.f32.mrf.mxu0
      %v618 = vadd.f32 0.0, %v617
      %v619 = vpop.f32.mrf.mxu0
      %620 = vmatprep.mubr.bf16.mxu0 0
      %621 = vmatmul.mubr.bf16.gmra.mxu0 %v487
      %v622 = vpop.f32.mrf.mxu0
      %v623 = vadd.f32 0.0, %v622
      %v624 = vpop.f32.mrf.mxu0
      %v625 = vpop.f32.mrf.mxu0
      %v626 = vadd.f32 0.0, %v625
      %v627 = vpop.f32.mrf.mxu0
      %628 = vmatprep.mubr.bf16.mxu0 0
      %629 = vmatmul.mubr.bf16.gmra.mxu0 %v490
      %v630 = vpop.f32.mrf.mxu0
      %v631 = vadd.f32 0.0, %v630
      %v632 = vpop.f32.mrf.mxu0
      %v633 = vpop.f32.mrf.mxu0
      %v634 = vadd.f32 0.0, %v633
      %v635 = vpop.f32.mrf.mxu0
      %636 = vmatprep.mubr.bf16.mxu0 0
      %637 = vmatmul.mubr.bf16.gmra.mxu0 %v493
      %v638 = vpop.f32.mrf.mxu0
      %v639 = vadd.f32 0.0, %v638
      %v640 = vpop.f32.mrf.mxu0
      %v641 = vpop.f32.mrf.mxu0
      %v642 = vadd.f32 0.0, %v641
      %v643 = vpop.f32.mrf.mxu0
      %644 = vmatprep.mubr.bf16.mxu0 0
      %645 = vmatmul.mubr.bf16.gmra.mxu0 %v496
      %v646 = vpop.f32.mrf.mxu0
      %v647 = vadd.f32 0.0, %v646
      %v648 = vpop.f32.mrf.mxu0
      %v649 = vpop.f32.mrf.mxu0
      %v650 = vadd.f32 0.0, %v649
      %v651 = vpop.f32.mrf.mxu0
      %652 = vmatprep.mubr.bf16.mxu0 0
      %653 = vmatmul.mubr.bf16.gmra.mxu0 %v499
      %v654 = vpop.f32.mrf.mxu0
      %v655 = vadd.f32 0.0, %v654
      %v656 = vpop.f32.mrf.mxu0
      %v657 = vpop.f32.mrf.mxu0
      %v658 = vadd.f32 0.0, %v657
      %v659 = vpop.f32.mrf.mxu0
      %660 = vmatprep.mubr.bf16.mxu0 0
      %661 = vmatmul.mubr.bf16.gmra.mxu0 %v502
      %v662 = vpop.f32.mrf.mxu0
      %v663 = vadd.f32 0.0, %v662
      %v664 = vpop.f32.mrf.mxu0
      %v665 = vpop.f32.mrf.mxu0
      %v666 = vadd.f32 0.0, %v665
      %v667 = vpop.f32.mrf.mxu0
      %668 = vdwg.mxu0
      %v670 = vsel %vm455, %v423, 0
      %v673 = vsel %vm455, %v424, 0
      %v676 = vsel %vm455, %v425, 0
      %v679 = vsel %vm455, %v426, 0
      %v682 = vsel %vm455, %v427, 0
      %v685 = vsel %vm455, %v428, 0
      %v688 = vsel %vm455, %v429, 0
      %v691 = vsel %vm455, %v430, 0
      %v694 = vsel %vm455, %v431, 0
      %v697 = vsel %vm455, %v432, 0
      %v700 = vsel %vm455, %v433, 0
      %v703 = vsel %vm455, %v434, 0
      %v706 = vsel %vm455, %v435, 0
      %v709 = vsel %vm455, %v436, 0
      %v712 = vsel %vm455, %v437, 0
      %v715 = vsel %vm455, %v438, 0
      %v718 = vsel %vm504, %v258, 0
      %720 = vmatprep.subr.bf16.mxu0 0
      %721 = vmatpush1.bf16.msra.mxu0 0
      %722 = vmatprep.subr.bf16.mxu0 0
      %723 = vmatpush1.bf16.msra.mxu0 0
      %724 = vmatprep.subr.bf16.mxu0 0
      %725 = vmatpush1.bf16.msra.mxu0 0
      %726 = vmatprep.subr.bf16.mxu0 0
      %727 = vmatpush1.bf16.msra.mxu0 0
      %728 = vmatprep.subr.bf16.mxu0 0
      %729 = vmatpush1.bf16.msra.mxu0 0
      %730 = vmatprep.subr.bf16.mxu0 0
      %731 = vmatpush1.bf16.msra.mxu0 0
      %732 = vmatprep.subr.bf16.mxu0 0
      %733 = vmatpush1.bf16.msra.mxu0 0
      %734 = vmatprep.subr.bf16.mxu0 0
      %735 = vmatpush1.bf16.msra.mxu0 %v718
      %736 = vmatprep.subr.bf16.mxu0 0
      %737 = vmatpush2.bf16.msra.mxu0 0
      %738 = vmatprep.subr.bf16.mxu0 0
      %739 = vmatpush2.bf16.msra.mxu0 0
      %740 = vmatprep.subr.bf16.mxu0 0
      %741 = vmatpush2.bf16.msra.mxu0 0
      %742 = vmatprep.subr.bf16.mxu0 0
      %743 = vmatpush2.bf16.msra.mxu0 0
      %744 = vmatprep.subr.bf16.mxu0 0
      %745 = vmatpush2.bf16.msra.mxu0 0
      %746 = vmatprep.subr.bf16.mxu0 0
      %747 = vmatpush2.bf16.msra.mxu0 0
      %748 = vmatprep.subr.bf16.mxu0 0
      %749 = vmatpush2.bf16.msra.mxu0 0
      %750 = vmatprep.subr.bf16.mxu0 0
      %751 = vmatpush2.bf16.msra.mxu0 0
      %752 = vmatprep.mubr.bf16.mxu0 0
      %753 = vmatmul.mubr.bf16.gmra.mxu0 %v670
      %v754 = vpop.f32.mrf.mxu0
      %v755 = vadd.f32 %v543, %v754
      %v756 = vpop.f32.mrf.mxu0
      %v757 = vpop.f32.mrf.mxu0
      %v758 = vadd.f32 %v546, %v757
      %v759 = vpop.f32.mrf.mxu0
      %760 = vmatprep.mubr.bf16.mxu0 0
      %761 = vmatmul.mubr.bf16.gmra.mxu0 %v673
      %v762 = vpop.f32.mrf.mxu0
      %v763 = vadd.f32 %v551, %v762
      %v764 = vpop.f32.mrf.mxu0
      %v765 = vpop.f32.mrf.mxu0
      %v766 = vadd.f32 %v554, %v765
      %v767 = vpop.f32.mrf.mxu0
      %768 = vmatprep.mubr.bf16.mxu0 0
      %769 = vmatmul.mubr.bf16.gmra.mxu0 %v676
      %v770 = vpop.f32.mrf.mxu0
      %v771 = vadd.f32 %v559, %v770
      %v772 = vpop.f32.mrf.mxu0
      %v773 = vpop.f32.mrf.mxu0
      %v774 = vadd.f32 %v562, %v773
      %v775 = vpop.f32.mrf.mxu0
      %776 = vmatprep.mubr.bf16.mxu0 0
      %777 = vmatmul.mubr.bf16.gmra.mxu0 %v679
      %v778 = vpop.f32.mrf.mxu0
      %v779 = vadd.f32 %v567, %v778
      %v780 = vpop.f32.mrf.mxu0
      %v781 = vpop.f32.mrf.mxu0
      %v782 = vadd.f32 %v570, %v781
      %v783 = vpop.f32.mrf.mxu0
      %784 = vmatprep.mubr.bf16.mxu0 0
      %785 = vmatmul.mubr.bf16.gmra.mxu0 %v682
      %v786 = vpop.f32.mrf.mxu0
      %v787 = vadd.f32 %v575, %v786
      %v788 = vpop.f32.mrf.mxu0
      %v789 = vpop.f32.mrf.mxu0
      %v790 = vadd.f32 %v578, %v789
      %v791 = vpop.f32.mrf.mxu0
      %792 = vmatprep.mubr.bf16.mxu0 0
      %793 = vmatmul.mubr.bf16.gmra.mxu0 %v685
      %v794 = vpop.f32.mrf.mxu0
      %v795 = vadd.f32 %v583, %v794
      %v796 = vpop.f32.mrf.mxu0
      %v797 = vpop.f32.mrf.mxu0
      %v798 = vadd.f32 %v586, %v797
      %v799 = vpop.f32.mrf.mxu0
      %800 = vmatprep.mubr.bf16.mxu0 0
      %801 = vmatmul.mubr.bf16.gmra.mxu0 %v688
      %v802 = vpop.f32.mrf.mxu0
      %v803 = vadd.f32 %v591, %v802
      %v804 = vpop.f32.mrf.mxu0
      %v805 = vpop.f32.mrf.mxu0
      %v806 = vadd.f32 %v594, %v805
      %v807 = vpop.f32.mrf.mxu0
      %808 = vmatprep.mubr.bf16.mxu0 0
      %809 = vmatmul.mubr.bf16.gmra.mxu0 %v691
      %v810 = vpop.f32.mrf.mxu0
      %v811 = vadd.f32 %v599, %v810
      %v812 = vpop.f32.mrf.mxu0
      %v813 = vpop.f32.mrf.mxu0
      %v814 = vadd.f32 %v602, %v813
      %v815 = vpop.f32.mrf.mxu0
      %816 = vmatprep.mubr.bf16.mxu0 0
      %817 = vmatmul.mubr.bf16.gmra.mxu0 %v694
      %v818 = vpop.f32.mrf.mxu0
      %v819 = vadd.f32 %v607, %v818
      %v820 = vpop.f32.mrf.mxu0
      %v821 = vpop.f32.mrf.mxu0
      %v822 = vadd.f32 %v610, %v821
      %v823 = vpop.f32.mrf.mxu0
      %824 = vmatprep.mubr.bf16.mxu0 0
      %825 = vmatmul.mubr.bf16.gmra.mxu0 %v697
      %v826 = vpop.f32.mrf.mxu0
      %v827 = vadd.f32 %v615, %v826
      %v828 = vpop.f32.mrf.mxu0
      %v829 = vpop.f32.mrf.mxu0
      %v830 = vadd.f32 %v618, %v829
      %v831 = vpop.f32.mrf.mxu0
      %832 = vmatprep.mubr.bf16.mxu0 0
      %833 = vmatmul.mubr.bf16.gmra.mxu0 %v700
      %v834 = vpop.f32.mrf.mxu0
      %v835 = vadd.f32 %v623, %v834
      %v836 = vpop.f32.mrf.mxu0
      %v837 = vpop.f32.mrf.mxu0
      %v838 = vadd.f32 %v626, %v837
      %v839 = vpop.f32.mrf.mxu0
      %840 = vmatprep.mubr.bf16.mxu0 0
      %841 = vmatmul.mubr.bf16.gmra.mxu0 %v703
      %v842 = vpop.f32.mrf.mxu0
      %v843 = vadd.f32 %v631, %v842
      %v844 = vpop.f32.mrf.mxu0
      %v845 = vpop.f32.mrf.mxu0
      %v846 = vadd.f32 %v634, %v845
      %v847 = vpop.f32.mrf.mxu0
      %848 = vmatprep.mubr.bf16.mxu0 0
      %849 = vmatmul.mubr.bf16.gmra.mxu0 %v706
      %v850 = vpop.f32.mrf.mxu0
      %v851 = vadd.f32 %v639, %v850
      %v852 = vpop.f32.mrf.mxu0
      %v853 = vpop.f32.mrf.mxu0
      %v854 = vadd.f32 %v642, %v853
      %v855 = vpop.f32.mrf.mxu0
      %856 = vmatprep.mubr.bf16.mxu0 0
      %857 = vmatmul.mubr.bf16.gmra.mxu0 %v709
      %v858 = vpop.f32.mrf.mxu0
      %v859 = vadd.f32 %v647, %v858
      %v860 = vpop.f32.mrf.mxu0
      %v861 = vpop.f32.mrf.mxu0
      %v862 = vadd.f32 %v650, %v861
      %v863 = vpop.f32.mrf.mxu0
      %864 = vmatprep.mubr.bf16.mxu0 0
      %865 = vmatmul.mubr.bf16.gmra.mxu0 %v712
      %v866 = vpop.f32.mrf.mxu0
      %v867 = vadd.f32 %v655, %v866
      %v868 = vpop.f32.mrf.mxu0
      %v869 = vpop.f32.mrf.mxu0
      %v870 = vadd.f32 %v658, %v869
      %v871 = vpop.f32.mrf.mxu0
      %872 = vmatprep.mubr.bf16.mxu0 0
      %873 = vmatmul.mubr.bf16.gmra.mxu0 %v715
      %v874 = vpop.f32.mrf.mxu0
      %v875 = vadd.f32 %v663, %v874
      %v876 = vpop.f32.mrf.mxu0
      %v877 = vpop.f32.mrf.mxu0
      %v878 = vadd.f32 %v666, %v877
      %v879 = vpop.f32.mrf.mxu0
      %880 = vdwg.mxu0
      %vm881 = vcmask 1046528
      %v882 = vrot.slane %v256, 1
      %v883 = vrot.slane %v257, 1
      %v884 = vsel %vm881, %v882, %v883
      %v885 = vrot.slane %v226, 1
      %v886 = vrot.slane %v227, 1
      %v887 = vsel %vm881, %v885, %v886
      %v888 = vrot.slane %v228, 1
      %v889 = vrot.slane %v229, 1
      %v890 = vsel %vm881, %v888, %v889
      %v891 = vrot.slane %v230, 1
      %v892 = vrot.slane %v231, 1
      %v893 = vsel %vm881, %v891, %v892
      %v894 = vrot.slane %v232, 1
      %v895 = vrot.slane %v233, 1
      %v896 = vsel %vm881, %v894, %v895
      %v897 = vrot.slane %v234, 1
      %v898 = vrot.slane %v235, 1
      %v899 = vsel %vm881, %v897, %v898
      %v900 = vrot.slane %v236, 1
      %v901 = vrot.slane %v237, 1
      %v902 = vsel %vm881, %v900, %v901
      %v903 = vrot.slane %v238, 1
      %v904 = vrot.slane %v239, 1
      %v905 = vsel %vm881, %v903, %v904
      %v906 = vrot.slane %v240, 1
      %v907 = vrot.slane %v241, 1
      %v908 = vsel %vm881, %v906, %v907
      %v909 = vrot.slane %v242, 1
      %v910 = vrot.slane %v243, 1
      %v911 = vsel %vm881, %v909, %v910
      %v912 = vrot.slane %v244, 1
      %v913 = vrot.slane %v245, 1
      %v914 = vsel %vm881, %v912, %v913
      %v915 = vrot.slane %v246, 1
      %v916 = vrot.slane %v247, 1
      %v917 = vsel %vm881, %v915, %v916
      %v918 = vrot.slane %v248, 1
      %v919 = vrot.slane %v249, 1
      %v920 = vsel %vm881, %v918, %v919
      %v921 = vrot.slane %v250, 1
      %v922 = vrot.slane %v251, 1
      %v923 = vsel %vm881, %v921, %v922
      %v924 = vrot.slane %v252, 1
      %v925 = vrot.slane %v253, 1
      %v926 = vsel %vm881, %v924, %v925
      %v927 = vrot.slane %v254, 1
      %v928 = vrot.slane %v255, 1
      %v929 = vsel %vm881, %v927, %v928
      %v978 = vsel %vm881, %v883, %v882
      %v979 = vsel %vm881, %v886, %v885
      %v980 = vsel %vm881, %v889, %v888
      %v981 = vsel %vm881, %v892, %v891
      %v982 = vsel %vm881, %v895, %v894
      %v983 = vsel %vm881, %v898, %v897
      %v984 = vsel %vm881, %v901, %v900
      %v985 = vsel %vm881, %v904, %v903
      %v986 = vsel %vm881, %v907, %v906
      %v987 = vsel %vm881, %v910, %v909
      %v988 = vsel %vm881, %v913, %v912
      %v989 = vsel %vm881, %v916, %v915
      %v990 = vsel %vm881, %v919, %v918
      %v991 = vsel %vm881, %v922, %v921
      %v992 = vsel %vm881, %v925, %v924
      %v993 = vsel %vm881, %v928, %v927
      %v994 = vpack.c.bf16 %v978, %v884
      %v995 = vpack.c.bf16 %v979, %v887
      %v996 = vpack.c.bf16 %v980, %v890
      %v997 = vpack.c.bf16 %v981, %v893
      %v998 = vpack.c.bf16 %v982, %v896
      %v999 = vpack.c.bf16 %v983, %v899
      %v1000 = vpack.c.bf16 %v984, %v902
      %v1001 = vpack.c.bf16 %v985, %v905
      %v1002 = vpack.c.bf16 %v986, %v908
      %v1003 = vpack.c.bf16 %v987, %v911
      %v1004 = vpack.c.bf16 %v988, %v914
      %v1005 = vpack.c.bf16 %v989, %v917
      %v1006 = vpack.c.bf16 %v990, %v920
      %v1007 = vpack.c.bf16 %v991, %v923
      %v1008 = vpack.c.bf16 %v992, %v926
      %v1009 = vpack.c.bf16 %v993, %v929
      %v1011 = vsel %vm455, %v994, 0
      %v1014 = vsel %vm455, %v995, 0
      %v1017 = vsel %vm455, %v996, 0
      %v1020 = vsel %vm455, %v997, 0
      %v1023 = vsel %vm455, %v998, 0
      %v1026 = vsel %vm455, %v999, 0
      %v1029 = vsel %vm455, %v1000, 0
      %v1032 = vsel %vm455, %v1001, 0
      %v1035 = vsel %vm455, %v1002, 0
      %v1038 = vsel %vm455, %v1003, 0
      %v1041 = vsel %vm455, %v1004, 0
      %v1044 = vsel %vm455, %v1005, 0
      %v1047 = vsel %vm455, %v1006, 0
      %v1050 = vsel %vm455, %v1007, 0
      %v1053 = vsel %vm455, %v1008, 0
      %v1056 = vsel %vm455, %v1009, 0
      %v1059 = vsel %vm504, %v260, 0
      %1061 = vmatprep.subr.bf16.mxu0 0
      %1062 = vmatpush1.bf16.msra.mxu0 0
      %1063 = vmatprep.subr.bf16.mxu0 0
      %1064 = vmatpush1.bf16.msra.mxu0 0
      %1065 = vmatprep.subr.bf16.mxu0 0
      %1066 = vmatpush1.bf16.msra.mxu0 0
      %1067 = vmatprep.subr.bf16.mxu0 0
      %1068 = vmatpush1.bf16.msra.mxu0 0
      %1069 = vmatprep.subr.bf16.mxu0 0
      %1070 = vmatpush1.bf16.msra.mxu0 0
      %1071 = vmatprep.subr.bf16.mxu0 0
      %1072 = vmatpush1.bf16.msra.mxu0 0
      %1073 = vmatprep.subr.bf16.mxu0 0
      %1074 = vmatpush1.bf16.msra.mxu0 0
      %1075 = vmatprep.subr.bf16.mxu0 0
      %1076 = vmatpush1.bf16.msra.mxu0 %v1059
      %1077 = vmatprep.subr.bf16.mxu0 0
      %1078 = vmatpush2.bf16.msra.mxu0 0
      %1079 = vmatprep.subr.bf16.mxu0 0
      %1080 = vmatpush2.bf16.msra.mxu0 0
      %1081 = vmatprep.subr.bf16.mxu0 0
      %1082 = vmatpush2.bf16.msra.mxu0 0
      %1083 = vmatprep.subr.bf16.mxu0 0
      %1084 = vmatpush2.bf16.msra.mxu0 0
      %1085 = vmatprep.subr.bf16.mxu0 0
      %1086 = vmatpush2.bf16.msra.mxu0 0
      %1087 = vmatprep.subr.bf16.mxu0 0
      %1088 = vmatpush2.bf16.msra.mxu0 0
      %1089 = vmatprep.subr.bf16.mxu0 0
      %1090 = vmatpush2.bf16.msra.mxu0 0
      %1091 = vmatprep.subr.bf16.mxu0 0
      %1092 = vmatpush2.bf16.msra.mxu0 0
      %1093 = vmatprep.mubr.bf16.mxu0 0
      %1094 = vmatmul.mubr.bf16.gmra.mxu0 %v1011
      %v1095 = vpop.f32.mrf.mxu0
      %v1096 = vadd.f32 0.0, %v1095
      %v1097 = vpop.f32.mrf.mxu0
      %v1098 = vpop.f32.mrf.mxu0
      %v1099 = vadd.f32 0.0, %v1098
      %v1100 = vpop.f32.mrf.mxu0
      %1101 = vmatprep.mubr.bf16.mxu0 0
      %1102 = vmatmul.mubr.bf16.gmra.mxu0 %v1014
      %v1103 = vpop.f32.mrf.mxu0
      %v1104 = vadd.f32 0.0, %v1103
      %v1105 = vpop.f32.mrf.mxu0
      %v1106 = vpop.f32.mrf.mxu0
      %v1107 = vadd.f32 0.0, %v1106
      %v1108 = vpop.f32.mrf.mxu0
      %1109 = vmatprep.mubr.bf16.mxu0 0
      %1110 = vmatmul.mubr.bf16.gmra.mxu0 %v1017
      %v1111 = vpop.f32.mrf.mxu0
      %v1112 = vadd.f32 0.0, %v1111
      %v1113 = vpop.f32.mrf.mxu0
      %v1114 = vpop.f32.mrf.mxu0
      %v1115 = vadd.f32 0.0, %v1114
      %v1116 = vpop.f32.mrf.mxu0
      %1117 = vmatprep.mubr.bf16.mxu0 0
      %1118 = vmatmul.mubr.bf16.gmra.mxu0 %v1020
      %v1119 = vpop.f32.mrf.mxu0
      %v1120 = vadd.f32 0.0, %v1119
      %v1121 = vpop.f32.mrf.mxu0
      %v1122 = vpop.f32.mrf.mxu0
      %v1123 = vadd.f32 0.0, %v1122
      %v1124 = vpop.f32.mrf.mxu0
      %1125 = vmatprep.mubr.bf16.mxu0 0
      %1126 = vmatmul.mubr.bf16.gmra.mxu0 %v1023
      %v1127 = vpop.f32.mrf.mxu0
      %v1128 = vadd.f32 0.0, %v1127
      %v1129 = vpop.f32.mrf.mxu0
      %v1130 = vpop.f32.mrf.mxu0
      %v1131 = vadd.f32 0.0, %v1130
      %v1132 = vpop.f32.mrf.mxu0
      %1133 = vmatprep.mubr.bf16.mxu0 0
      %1134 = vmatmul.mubr.bf16.gmra.mxu0 %v1026
      %v1135 = vpop.f32.mrf.mxu0
      %v1136 = vadd.f32 0.0, %v1135
      %v1137 = vpop.f32.mrf.mxu0
      %v1138 = vpop.f32.mrf.mxu0
      %v1139 = vadd.f32 0.0, %v1138
      %v1140 = vpop.f32.mrf.mxu0
      %1141 = vmatprep.mubr.bf16.mxu0 0
      %1142 = vmatmul.mubr.bf16.gmra.mxu0 %v1029
      %v1143 = vpop.f32.mrf.mxu0
      %v1144 = vadd.f32 0.0, %v1143
      %v1145 = vpop.f32.mrf.mxu0
      %v1146 = vpop.f32.mrf.mxu0
      %v1147 = vadd.f32 0.0, %v1146
      %v1148 = vpop.f32.mrf.mxu0
      %1149 = vmatprep.mubr.bf16.mxu0 0
      %1150 = vmatmul.mubr.bf16.gmra.mxu0 %v1032
      %v1151 = vpop.f32.mrf.mxu0
      %v1152 = vadd.f32 0.0, %v1151
      %v1153 = vpop.f32.mrf.mxu0
      %v1154 = vpop.f32.mrf.mxu0
      %v1155 = vadd.f32 0.0, %v1154
      %v1156 = vpop.f32.mrf.mxu0
      %1157 = vmatprep.mubr.bf16.mxu0 0
      %1158 = vmatmul.mubr.bf16.gmra.mxu0 %v1035
      %v1159 = vpop.f32.mrf.mxu0
      %v1160 = vadd.f32 0.0, %v1159
      %v1161 = vpop.f32.mrf.mxu0
      %v1162 = vpop.f32.mrf.mxu0
      %v1163 = vadd.f32 0.0, %v1162
      %v1164 = vpop.f32.mrf.mxu0
      %1165 = vmatprep.mubr.bf16.mxu0 0
      %1166 = vmatmul.mubr.bf16.gmra.mxu0 %v1038
      %v1167 = vpop.f32.mrf.mxu0
      %v1168 = vadd.f32 0.0, %v1167
      %v1169 = vpop.f32.mrf.mxu0
      %v1170 = vpop.f32.mrf.mxu0
      %v1171 = vadd.f32 0.0, %v1170
      %v1172 = vpop.f32.mrf.mxu0
      %1173 = vmatprep.mubr.bf16.mxu0 0
      %1174 = vmatmul.mubr.bf16.gmra.mxu0 %v1041
      %v1175 = vpop.f32.mrf.mxu0
      %v1176 = vadd.f32 0.0, %v1175
      %v1177 = vpop.f32.mrf.mxu0
      %v1178 = vpop.f32.mrf.mxu0
      %v1179 = vadd.f32 0.0, %v1178
      %v1180 = vpop.f32.mrf.mxu0
      %1181 = vmatprep.mubr.bf16.mxu0 0
      %1182 = vmatmul.mubr.bf16.gmra.mxu0 %v1044
      %v1183 = vpop.f32.mrf.mxu0
      %v1184 = vadd.f32 0.0, %v1183
      %v1185 = vpop.f32.mrf.mxu0
      %v1186 = vpop.f32.mrf.mxu0
      %v1187 = vadd.f32 0.0, %v1186
      %v1188 = vpop.f32.mrf.mxu0
      %1189 = vmatprep.mubr.bf16.mxu0 0
      %1190 = vmatmul.mubr.bf16.gmra.mxu0 %v1047
      %v1191 = vpop.f32.mrf.mxu0
      %v1192 = vadd.f32 0.0, %v1191
      %v1193 = vpop.f32.mrf.mxu0
      %v1194 = vpop.f32.mrf.mxu0
      %v1195 = vadd.f32 0.0, %v1194
      %v1196 = vpop.f32.mrf.mxu0
      %1197 = vmatprep.mubr.bf16.mxu0 0
      %1198 = vmatmul.mubr.bf16.gmra.mxu0 %v1050
      %v1199 = vpop.f32.mrf.mxu0
      %v1200 = vadd.f32 0.0, %v1199
      %v1201 = vpop.f32.mrf.mxu0
      %v1202 = vpop.f32.mrf.mxu0
      %v1203 = vadd.f32 0.0, %v1202
      %v1204 = vpop.f32.mrf.mxu0
      %1205 = vmatprep.mubr.bf16.mxu0 0
      %1206 = vmatmul.mubr.bf16.gmra.mxu0 %v1053
      %v1207 = vpop.f32.mrf.mxu0
      %v1208 = vadd.f32 0.0, %v1207
      %v1209 = vpop.f32.mrf.mxu0
      %v1210 = vpop.f32.mrf.mxu0
      %v1211 = vadd.f32 0.0, %v1210
      %v1212 = vpop.f32.mrf.mxu0
      %1213 = vmatprep.mubr.bf16.mxu0 0
      %1214 = vmatmul.mubr.bf16.gmra.mxu0 %v1056
      %v1215 = vpop.f32.mrf.mxu0
      %v1216 = vadd.f32 0.0, %v1215
      %v1217 = vpop.f32.mrf.mxu0
      %v1218 = vpop.f32.mrf.mxu0
      %v1219 = vadd.f32 0.0, %v1218
      %v1220 = vpop.f32.mrf.mxu0
      %1221 = vdwg.mxu0
      %v1222 = vadd.f32 %v755, %v1096
      %v1223 = vadd.f32 %v758, %v1099
      %v1224 = vadd.f32 %v763, %v1104
      %v1225 = vadd.f32 %v766, %v1107
      %v1226 = vadd.f32 %v771, %v1112
      %v1227 = vadd.f32 %v774, %v1115
      %v1228 = vadd.f32 %v779, %v1120
      %v1229 = vadd.f32 %v782, %v1123
      %v1230 = vadd.f32 %v787, %v1128
      %v1231 = vadd.f32 %v790, %v1131
      %v1232 = vadd.f32 %v795, %v1136
      %v1233 = vadd.f32 %v798, %v1139
      %v1234 = vadd.f32 %v803, %v1144
      %v1235 = vadd.f32 %v806, %v1147
      %v1236 = vadd.f32 %v811, %v1152
      %v1237 = vadd.f32 %v814, %v1155
      %v1238 = vadd.f32 %v819, %v1160
      %v1239 = vadd.f32 %v822, %v1163
      %v1240 = vadd.f32 %v827, %v1168
      %v1241 = vadd.f32 %v830, %v1171
      %v1242 = vadd.f32 %v835, %v1176
      %v1243 = vadd.f32 %v838, %v1179
      %v1244 = vadd.f32 %v843, %v1184
      %v1245 = vadd.f32 %v846, %v1187
      %v1246 = vadd.f32 %v851, %v1192
      %v1247 = vadd.f32 %v854, %v1195
      %v1248 = vadd.f32 %v859, %v1200
      %v1249 = vadd.f32 %v862, %v1203
      %v1250 = vadd.f32 %v867, %v1208
      %v1251 = vadd.f32 %v870, %v1211
      %v1252 = vadd.f32 %v875, %v1216
      %v1253 = vadd.f32 %v878, %v1219
      %v1255 = vsel %vm504, %v261, 0
      %1257 = vmatprep.subr.bf16.mxu0 0
      %1258 = vmatpush1.bf16.msra.mxu0 0
      %1259 = vmatprep.subr.bf16.mxu0 0
      %1260 = vmatpush1.bf16.msra.mxu0 0
      %1261 = vmatprep.subr.bf16.mxu0 0
      %1262 = vmatpush1.bf16.msra.mxu0 0
      %1263 = vmatprep.subr.bf16.mxu0 0
      %1264 = vmatpush1.bf16.msra.mxu0 0
      %1265 = vmatprep.subr.bf16.mxu0 0
      %1266 = vmatpush1.bf16.msra.mxu0 0
      %1267 = vmatprep.subr.bf16.mxu0 0
      %1268 = vmatpush1.bf16.msra.mxu0 0
      %1269 = vmatprep.subr.bf16.mxu0 0
      %1270 = vmatpush1.bf16.msra.mxu0 0
      %1271 = vmatprep.subr.bf16.mxu0 0
      %1272 = vmatpush1.bf16.msra.mxu0 %v1255
      %1273 = vmatprep.subr.bf16.mxu0 0
      %1274 = vmatpush2.bf16.msra.mxu0 0
      %1275 = vmatprep.subr.bf16.mxu0 0
      %1276 = vmatpush2.bf16.msra.mxu0 0
      %1277 = vmatprep.subr.bf16.mxu0 0
      %1278 = vmatpush2.bf16.msra.mxu0 0
      %1279 = vmatprep.subr.bf16.mxu0 0
      %1280 = vmatpush2.bf16.msra.mxu0 0
      %1281 = vmatprep.subr.bf16.mxu0 0
      %1282 = vmatpush2.bf16.msra.mxu0 0
      %1283 = vmatprep.subr.bf16.mxu0 0
      %1284 = vmatpush2.bf16.msra.mxu0 0
      %1285 = vmatprep.subr.bf16.mxu0 0
      %1286 = vmatpush2.bf16.msra.mxu0 0
      %1287 = vmatprep.subr.bf16.mxu0 0
      %1288 = vmatpush2.bf16.msra.mxu0 0
      %1289 = vmatprep.mubr.bf16.mxu0 0
      %1290 = vmatmul.mubr.bf16.gmra.mxu0 %v673
      %v1291 = vpop.f32.mrf.mxu0
      %v1292 = vadd.f32 0.0, %v1291
      %v1293 = vpop.f32.mrf.mxu0
      %v1294 = vpop.f32.mrf.mxu0
      %v1295 = vadd.f32 0.0, %v1294
      %v1296 = vpop.f32.mrf.mxu0
      %1297 = vmatprep.mubr.bf16.mxu0 0
      %1298 = vmatmul.mubr.bf16.gmra.mxu0 %v676
      %v1299 = vpop.f32.mrf.mxu0
      %v1300 = vadd.f32 0.0, %v1299
      %v1301 = vpop.f32.mrf.mxu0
      %v1302 = vpop.f32.mrf.mxu0
      %v1303 = vadd.f32 0.0, %v1302
      %v1304 = vpop.f32.mrf.mxu0
      %1305 = vmatprep.mubr.bf16.mxu0 0
      %1306 = vmatmul.mubr.bf16.gmra.mxu0 %v679
      %v1307 = vpop.f32.mrf.mxu0
      %v1308 = vadd.f32 0.0, %v1307
      %v1309 = vpop.f32.mrf.mxu0
      %v1310 = vpop.f32.mrf.mxu0
      %v1311 = vadd.f32 0.0, %v1310
      %v1312 = vpop.f32.mrf.mxu0
      %1313 = vmatprep.mubr.bf16.mxu0 0
      %1314 = vmatmul.mubr.bf16.gmra.mxu0 %v682
      %v1315 = vpop.f32.mrf.mxu0
      %v1316 = vadd.f32 0.0, %v1315
      %v1317 = vpop.f32.mrf.mxu0
      %v1318 = vpop.f32.mrf.mxu0
      %v1319 = vadd.f32 0.0, %v1318
      %v1320 = vpop.f32.mrf.mxu0
      %1321 = vmatprep.mubr.bf16.mxu0 0
      %1322 = vmatmul.mubr.bf16.gmra.mxu0 %v685
      %v1323 = vpop.f32.mrf.mxu0
      %v1324 = vadd.f32 0.0, %v1323
      %v1325 = vpop.f32.mrf.mxu0
      %v1326 = vpop.f32.mrf.mxu0
      %v1327 = vadd.f32 0.0, %v1326
      %v1328 = vpop.f32.mrf.mxu0
      %1329 = vmatprep.mubr.bf16.mxu0 0
      %1330 = vmatmul.mubr.bf16.gmra.mxu0 %v688
      %v1331 = vpop.f32.mrf.mxu0
      %v1332 = vadd.f32 0.0, %v1331
      %v1333 = vpop.f32.mrf.mxu0
      %v1334 = vpop.f32.mrf.mxu0
      %v1335 = vadd.f32 0.0, %v1334
      %v1336 = vpop.f32.mrf.mxu0
      %1337 = vmatprep.mubr.bf16.mxu0 0
      %1338 = vmatmul.mubr.bf16.gmra.mxu0 %v691
      %v1339 = vpop.f32.mrf.mxu0
      %v1340 = vadd.f32 0.0, %v1339
      %v1341 = vpop.f32.mrf.mxu0
      %v1342 = vpop.f32.mrf.mxu0
      %v1343 = vadd.f32 0.0, %v1342
      %v1344 = vpop.f32.mrf.mxu0
      %1345 = vmatprep.mubr.bf16.mxu0 0
      %1346 = vmatmul.mubr.bf16.gmra.mxu0 %v694
      %v1347 = vpop.f32.mrf.mxu0
      %v1348 = vadd.f32 0.0, %v1347
      %v1349 = vpop.f32.mrf.mxu0
      %v1350 = vpop.f32.mrf.mxu0
      %v1351 = vadd.f32 0.0, %v1350
      %v1352 = vpop.f32.mrf.mxu0
      %1353 = vmatprep.mubr.bf16.mxu0 0
      %1354 = vmatmul.mubr.bf16.gmra.mxu0 %v697
      %v1355 = vpop.f32.mrf.mxu0
      %v1356 = vadd.f32 0.0, %v1355
      %v1357 = vpop.f32.mrf.mxu0
      %v1358 = vpop.f32.mrf.mxu0
      %v1359 = vadd.f32 0.0, %v1358
      %v1360 = vpop.f32.mrf.mxu0
      %1361 = vmatprep.mubr.bf16.mxu0 0
      %1362 = vmatmul.mubr.bf16.gmra.mxu0 %v700
      %v1363 = vpop.f32.mrf.mxu0
      %v1364 = vadd.f32 0.0, %v1363
      %v1365 = vpop.f32.mrf.mxu0
      %v1366 = vpop.f32.mrf.mxu0
      %v1367 = vadd.f32 0.0, %v1366
      %v1368 = vpop.f32.mrf.mxu0
      %1369 = vmatprep.mubr.bf16.mxu0 0
      %1370 = vmatmul.mubr.bf16.gmra.mxu0 %v703
      %v1371 = vpop.f32.mrf.mxu0
      %v1372 = vadd.f32 0.0, %v1371
      %v1373 = vpop.f32.mrf.mxu0
      %v1374 = vpop.f32.mrf.mxu0
      %v1375 = vadd.f32 0.0, %v1374
      %v1376 = vpop.f32.mrf.mxu0
      %1377 = vmatprep.mubr.bf16.mxu0 0
      %1378 = vmatmul.mubr.bf16.gmra.mxu0 %v706
      %v1379 = vpop.f32.mrf.mxu0
      %v1380 = vadd.f32 0.0, %v1379
      %v1381 = vpop.f32.mrf.mxu0
      %v1382 = vpop.f32.mrf.mxu0
      %v1383 = vadd.f32 0.0, %v1382
      %v1384 = vpop.f32.mrf.mxu0
      %1385 = vmatprep.mubr.bf16.mxu0 0
      %1386 = vmatmul.mubr.bf16.gmra.mxu0 %v709
      %v1387 = vpop.f32.mrf.mxu0
      %v1388 = vadd.f32 0.0, %v1387
      %v1389 = vpop.f32.mrf.mxu0
      %v1390 = vpop.f32.mrf.mxu0
      %v1391 = vadd.f32 0.0, %v1390
      %v1392 = vpop.f32.mrf.mxu0
      %1393 = vmatprep.mubr.bf16.mxu0 0
      %1394 = vmatmul.mubr.bf16.gmra.mxu0 %v712
      %v1395 = vpop.f32.mrf.mxu0
      %v1396 = vadd.f32 0.0, %v1395
      %v1397 = vpop.f32.mrf.mxu0
      %v1398 = vpop.f32.mrf.mxu0
      %v1399 = vadd.f32 0.0, %v1398
      %v1400 = vpop.f32.mrf.mxu0
      %1401 = vmatprep.mubr.bf16.mxu0 0
      %1402 = vmatmul.mubr.bf16.gmra.mxu0 %v715
      %v1403 = vpop.f32.mrf.mxu0
      %v1404 = vadd.f32 0.0, %v1403
      %v1405 = vpop.f32.mrf.mxu0
      %v1406 = vpop.f32.mrf.mxu0
      %v1407 = vadd.f32 0.0, %v1406
      %v1408 = vpop.f32.mrf.mxu0
      %1409 = vmatprep.mubr.bf16.mxu0 0
      %1410 = vmatmul.mubr.bf16.gmra.mxu0 %v670
      %v1411 = vpop.f32.mrf.mxu0
      %v1412 = vadd.f32 0.0, %v1411
      %v1413 = vpop.f32.mrf.mxu0
      %v1414 = vpop.f32.mrf.mxu0
      %v1415 = vadd.f32 0.0, %v1414
      %v1416 = vpop.f32.mrf.mxu0
      %1417 = vdwg.mxu0
      %v1418 = vadd.f32 %v1222, %v1292
      %v1419 = vadd.f32 %v1223, %v1295
      %v1420 = vadd.f32 %v1224, %v1300
      %v1421 = vadd.f32 %v1225, %v1303
      %v1422 = vadd.f32 %v1226, %v1308
      %v1423 = vadd.f32 %v1227, %v1311
      %v1424 = vadd.f32 %v1228, %v1316
      %v1425 = vadd.f32 %v1229, %v1319
      %v1426 = vadd.f32 %v1230, %v1324
      %v1427 = vadd.f32 %v1231, %v1327
      %v1428 = vadd.f32 %v1232, %v1332
      %v1429 = vadd.f32 %v1233, %v1335
      %v1430 = vadd.f32 %v1234, %v1340
      %v1431 = vadd.f32 %v1235, %v1343
      %v1432 = vadd.f32 %v1236, %v1348
      %v1433 = vadd.f32 %v1237, %v1351
      %v1434 = vadd.f32 %v1238, %v1356
      %v1435 = vadd.f32 %v1239, %v1359
      %v1436 = vadd.f32 %v1240, %v1364
      %v1437 = vadd.f32 %v1241, %v1367
      %v1438 = vadd.f32 %v1242, %v1372
      %v1439 = vadd.f32 %v1243, %v1375
      %v1440 = vadd.f32 %v1244, %v1380
      %v1441 = vadd.f32 %v1245, %v1383
      %v1442 = vadd.f32 %v1246, %v1388
      %v1443 = vadd.f32 %v1247, %v1391
      %v1444 = vadd.f32 %v1248, %v1396
      %v1445 = vadd.f32 %v1249, %v1399
      %v1446 = vadd.f32 %v1250, %v1404
      %v1447 = vadd.f32 %v1251, %v1407
      %v1448 = vadd.f32 %v1252, %v1412
      %v1449 = vadd.f32 %v1253, %v1415
      %v1451 = vsel %vm504, %v262, 0
      %1453 = vmatprep.subr.bf16.mxu0 0
      %1454 = vmatpush1.bf16.msra.mxu0 0
      %1455 = vmatprep.subr.bf16.mxu0 0
      %1456 = vmatpush1.bf16.msra.mxu0 0
      %1457 = vmatprep.subr.bf16.mxu0 0
      %1458 = vmatpush1.bf16.msra.mxu0 0
      %1459 = vmatprep.subr.bf16.mxu0 0
      %1460 = vmatpush1.bf16.msra.mxu0 0
      %1461 = vmatprep.subr.bf16.mxu0 0
      %1462 = vmatpush1.bf16.msra.mxu0 0
      %1463 = vmatprep.subr.bf16.mxu0 0
      %1464 = vmatpush1.bf16.msra.mxu0 0
      %1465 = vmatprep.subr.bf16.mxu0 0
      %1466 = vmatpush1.bf16.msra.mxu0 0
      %1467 = vmatprep.subr.bf16.mxu0 0
      %1468 = vmatpush1.bf16.msra.mxu0 %v1451
      %1469 = vmatprep.subr.bf16.mxu0 0
      %1470 = vmatpush2.bf16.msra.mxu0 0
      %1471 = vmatprep.subr.bf16.mxu0 0
      %1472 = vmatpush2.bf16.msra.mxu0 0
      %1473 = vmatprep.subr.bf16.mxu0 0
      %1474 = vmatpush2.bf16.msra.mxu0 0
      %1475 = vmatprep.subr.bf16.mxu0 0
      %1476 = vmatpush2.bf16.msra.mxu0 0
      %1477 = vmatprep.subr.bf16.mxu0 0
      %1478 = vmatpush2.bf16.msra.mxu0 0
      %1479 = vmatprep.subr.bf16.mxu0 0
      %1480 = vmatpush2.bf16.msra.mxu0 0
      %1481 = vmatprep.subr.bf16.mxu0 0
      %1482 = vmatpush2.bf16.msra.mxu0 0
      %1483 = vmatprep.subr.bf16.mxu0 0
      %1484 = vmatpush2.bf16.msra.mxu0 0
      %1485 = vmatprep.mubr.bf16.mxu0 0
      %1486 = vmatmul.mubr.bf16.gmra.mxu0 %v460
      %v1487 = vpop.f32.mrf.mxu0
      %v1488 = vadd.f32 0.0, %v1487
      %v1489 = vpop.f32.mrf.mxu0
      %v1490 = vpop.f32.mrf.mxu0
      %v1491 = vadd.f32 0.0, %v1490
      %v1492 = vpop.f32.mrf.mxu0
      %1493 = vmatprep.mubr.bf16.mxu0 0
      %1494 = vmatmul.mubr.bf16.gmra.mxu0 %v463
      %v1495 = vpop.f32.mrf.mxu0
      %v1496 = vadd.f32 0.0, %v1495
      %v1497 = vpop.f32.mrf.mxu0
      %v1498 = vpop.f32.mrf.mxu0
      %v1499 = vadd.f32 0.0, %v1498
      %v1500 = vpop.f32.mrf.mxu0
      %1501 = vmatprep.mubr.bf16.mxu0 0
      %1502 = vmatmul.mubr.bf16.gmra.mxu0 %v466
      %v1503 = vpop.f32.mrf.mxu0
      %v1504 = vadd.f32 0.0, %v1503
      %v1505 = vpop.f32.mrf.mxu0
      %v1506 = vpop.f32.mrf.mxu0
      %v1507 = vadd.f32 0.0, %v1506
      %v1508 = vpop.f32.mrf.mxu0
      %1509 = vmatprep.mubr.bf16.mxu0 0
      %1510 = vmatmul.mubr.bf16.gmra.mxu0 %v469
      %v1511 = vpop.f32.mrf.mxu0
      %v1512 = vadd.f32 0.0, %v1511
      %v1513 = vpop.f32.mrf.mxu0
      %v1514 = vpop.f32.mrf.mxu0
      %v1515 = vadd.f32 0.0, %v1514
      %v1516 = vpop.f32.mrf.mxu0
      %1517 = vmatprep.mubr.bf16.mxu0 0
      %1518 = vmatmul.mubr.bf16.gmra.mxu0 %v472
      %v1519 = vpop.f32.mrf.mxu0
      %v1520 = vadd.f32 0.0, %v1519
      %v1521 = vpop.f32.mrf.mxu0
      %v1522 = vpop.f32.mrf.mxu0
      %v1523 = vadd.f32 0.0, %v1522
      %v1524 = vpop.f32.mrf.mxu0
      %1525 = vmatprep.mubr.bf16.mxu0 0
      %1526 = vmatmul.mubr.bf16.gmra.mxu0 %v475
      %v1527 = vpop.f32.mrf.mxu0
      %v1528 = vadd.f32 0.0, %v1527
      %v1529 = vpop.f32.mrf.mxu0
      %v1530 = vpop.f32.mrf.mxu0
      %v1531 = vadd.f32 0.0, %v1530
      %v1532 = vpop.f32.mrf.mxu0
      %1533 = vmatprep.mubr.bf16.mxu0 0
      %1534 = vmatmul.mubr.bf16.gmra.mxu0 %v478
      %v1535 = vpop.f32.mrf.mxu0
      %v1536 = vadd.f32 0.0, %v1535
      %v1537 = vpop.f32.mrf.mxu0
      %v1538 = vpop.f32.mrf.mxu0
      %v1539 = vadd.f32 0.0, %v1538
      %v1540 = vpop.f32.mrf.mxu0
      %1541 = vmatprep.mubr.bf16.mxu0 0
      %1542 = vmatmul.mubr.bf16.gmra.mxu0 %v481
      %v1543 = vpop.f32.mrf.mxu0
      %v1544 = vadd.f32 0.0, %v1543
      %v1545 = vpop.f32.mrf.mxu0
      %v1546 = vpop.f32.mrf.mxu0
      %v1547 = vadd.f32 0.0, %v1546
      %v1548 = vpop.f32.mrf.mxu0
      %1549 = vmatprep.mubr.bf16.mxu0 0
      %1550 = vmatmul.mubr.bf16.gmra.mxu0 %v484
      %v1551 = vpop.f32.mrf.mxu0
      %v1552 = vadd.f32 0.0, %v1551
      %v1553 = vpop.f32.mrf.mxu0
      %v1554 = vpop.f32.mrf.mxu0
      %v1555 = vadd.f32 0.0, %v1554
      %v1556 = vpop.f32.mrf.mxu0
      %1557 = vmatprep.mubr.bf16.mxu0 0
      %1558 = vmatmul.mubr.bf16.gmra.mxu0 %v487
      %v1559 = vpop.f32.mrf.mxu0
      %v1560 = vadd.f32 0.0, %v1559
      %v1561 = vpop.f32.mrf.mxu0
      %v1562 = vpop.f32.mrf.mxu0
      %v1563 = vadd.f32 0.0, %v1562
      %v1564 = vpop.f32.mrf.mxu0
      %1565 = vmatprep.mubr.bf16.mxu0 0
      %1566 = vmatmul.mubr.bf16.gmra.mxu0 %v490
      %v1567 = vpop.f32.mrf.mxu0
      %v1568 = vadd.f32 0.0, %v1567
      %v1569 = vpop.f32.mrf.mxu0
      %v1570 = vpop.f32.mrf.mxu0
      %v1571 = vadd.f32 0.0, %v1570
      %v1572 = vpop.f32.mrf.mxu0
      %1573 = vmatprep.mubr.bf16.mxu0 0
      %1574 = vmatmul.mubr.bf16.gmra.mxu0 %v493
      %v1575 = vpop.f32.mrf.mxu0
      %v1576 = vadd.f32 0.0, %v1575
      %v1577 = vpop.f32.mrf.mxu0
      %v1578 = vpop.f32.mrf.mxu0
      %v1579 = vadd.f32 0.0, %v1578
      %v1580 = vpop.f32.mrf.mxu0
      %1581 = vmatprep.mubr.bf16.mxu0 0
      %1582 = vmatmul.mubr.bf16.gmra.mxu0 %v496
      %v1583 = vpop.f32.mrf.mxu0
      %v1584 = vadd.f32 0.0, %v1583
      %v1585 = vpop.f32.mrf.mxu0
      %v1586 = vpop.f32.mrf.mxu0
      %v1587 = vadd.f32 0.0, %v1586
      %v1588 = vpop.f32.mrf.mxu0
      %1589 = vmatprep.mubr.bf16.mxu0 0
      %1590 = vmatmul.mubr.bf16.gmra.mxu0 %v499
      %v1591 = vpop.f32.mrf.mxu0
      %v1592 = vadd.f32 0.0, %v1591
      %v1593 = vpop.f32.mrf.mxu0
      %v1594 = vpop.f32.mrf.mxu0
      %v1595 = vadd.f32 0.0, %v1594
      %v1596 = vpop.f32.mrf.mxu0
      %1597 = vmatprep.mubr.bf16.mxu0 0
      %1598 = vmatmul.mubr.bf16.gmra.mxu0 %v502
      %v1599 = vpop.f32.mrf.mxu0
      %v1600 = vadd.f32 0.0, %v1599
      %v1601 = vpop.f32.mrf.mxu0
      %v1602 = vpop.f32.mrf.mxu0
      %v1603 = vadd.f32 0.0, %v1602
      %v1604 = vpop.f32.mrf.mxu0
      %1605 = vmatprep.mubr.bf16.mxu0 0
      %1606 = vmatmul.mubr.bf16.gmra.mxu0 %v457
      %v1607 = vpop.f32.mrf.mxu0
      %v1608 = vadd.f32 0.0, %v1607
      %v1609 = vpop.f32.mrf.mxu0
      %v1610 = vpop.f32.mrf.mxu0
      %v1611 = vadd.f32 0.0, %v1610
      %v1612 = vpop.f32.mrf.mxu0
      %1613 = vdwg.mxu0
      %v1614 = vadd.f32 %v1418, %v1488
      %v1615 = vadd.f32 %v1419, %v1491
      %v1616 = vadd.f32 %v1420, %v1496
      %v1617 = vadd.f32 %v1421, %v1499
      %v1618 = vadd.f32 %v1422, %v1504
      %v1619 = vadd.f32 %v1423, %v1507
      %v1620 = vadd.f32 %v1424, %v1512
      %v1621 = vadd.f32 %v1425, %v1515
      %v1622 = vadd.f32 %v1426, %v1520
      %v1623 = vadd.f32 %v1427, %v1523
      %v1624 = vadd.f32 %v1428, %v1528
      %v1625 = vadd.f32 %v1429, %v1531
      %v1626 = vadd.f32 %v1430, %v1536
      %v1627 = vadd.f32 %v1431, %v1539
      %v1628 = vadd.f32 %v1432, %v1544
      %v1629 = vadd.f32 %v1433, %v1547
      %v1630 = vadd.f32 %v1434, %v1552
      %v1631 = vadd.f32 %v1435, %v1555
      %v1632 = vadd.f32 %v1436, %v1560
      %v1633 = vadd.f32 %v1437, %v1563
      %v1634 = vadd.f32 %v1438, %v1568
      %v1635 = vadd.f32 %v1439, %v1571
      %v1636 = vadd.f32 %v1440, %v1576
      %v1637 = vadd.f32 %v1441, %v1579
      %v1638 = vadd.f32 %v1442, %v1584
      %v1639 = vadd.f32 %v1443, %v1587
      %v1640 = vadd.f32 %v1444, %v1592
      %v1641 = vadd.f32 %v1445, %v1595
      %v1642 = vadd.f32 %v1446, %v1600
      %v1643 = vadd.f32 %v1447, %v1603
      %v1644 = vadd.f32 %v1448, %v1608
      %v1645 = vadd.f32 %v1449, %v1611
      %v1647 = vsel %vm504, %v263, 0
      %1649 = vmatprep.subr.bf16.mxu0 0
      %1650 = vmatpush1.bf16.msra.mxu0 0
      %1651 = vmatprep.subr.bf16.mxu0 0
      %1652 = vmatpush1.bf16.msra.mxu0 0
      %1653 = vmatprep.subr.bf16.mxu0 0
      %1654 = vmatpush1.bf16.msra.mxu0 0
      %1655 = vmatprep.subr.bf16.mxu0 0
      %1656 = vmatpush1.bf16.msra.mxu0 0
      %1657 = vmatprep.subr.bf16.mxu0 0
      %1658 = vmatpush1.bf16.msra.mxu0 0
      %1659 = vmatprep.subr.bf16.mxu0 0
      %1660 = vmatpush1.bf16.msra.mxu0 0
      %1661 = vmatprep.subr.bf16.mxu0 0
      %1662 = vmatpush1.bf16.msra.mxu0 0
      %1663 = vmatprep.subr.bf16.mxu0 0
      %1664 = vmatpush1.bf16.msra.mxu0 %v1647
      %1665 = vmatprep.subr.bf16.mxu0 0
      %1666 = vmatpush2.bf16.msra.mxu0 0
      %1667 = vmatprep.subr.bf16.mxu0 0
      %1668 = vmatpush2.bf16.msra.mxu0 0
      %1669 = vmatprep.subr.bf16.mxu0 0
      %1670 = vmatpush2.bf16.msra.mxu0 0
      %1671 = vmatprep.subr.bf16.mxu0 0
      %1672 = vmatpush2.bf16.msra.mxu0 0
      %1673 = vmatprep.subr.bf16.mxu0 0
      %1674 = vmatpush2.bf16.msra.mxu0 0
      %1675 = vmatprep.subr.bf16.mxu0 0
      %1676 = vmatpush2.bf16.msra.mxu0 0
      %1677 = vmatprep.subr.bf16.mxu0 0
      %1678 = vmatpush2.bf16.msra.mxu0 0
      %1679 = vmatprep.subr.bf16.mxu0 0
      %1680 = vmatpush2.bf16.msra.mxu0 0
      %1681 = vmatprep.mubr.bf16.mxu0 0
      %1682 = vmatmul.mubr.bf16.gmra.mxu0 %v1014
      %v1683 = vpop.f32.mrf.mxu0
      %v1684 = vadd.f32 0.0, %v1683
      %v1685 = vpop.f32.mrf.mxu0
      %v1686 = vpop.f32.mrf.mxu0
      %v1687 = vadd.f32 0.0, %v1686
      %v1688 = vpop.f32.mrf.mxu0
      %1689 = vmatprep.mubr.bf16.mxu0 0
      %1690 = vmatmul.mubr.bf16.gmra.mxu0 %v1017
      %v1691 = vpop.f32.mrf.mxu0
      %v1692 = vadd.f32 0.0, %v1691
      %v1693 = vpop.f32.mrf.mxu0
      %v1694 = vpop.f32.mrf.mxu0
      %v1695 = vadd.f32 0.0, %v1694
      %v1696 = vpop.f32.mrf.mxu0
      %1697 = vmatprep.mubr.bf16.mxu0 0
      %1698 = vmatmul.mubr.bf16.gmra.mxu0 %v1020
      %v1699 = vpop.f32.mrf.mxu0
      %v1700 = vadd.f32 0.0, %v1699
      %v1701 = vpop.f32.mrf.mxu0
      %v1702 = vpop.f32.mrf.mxu0
      %v1703 = vadd.f32 0.0, %v1702
      %v1704 = vpop.f32.mrf.mxu0
      %1705 = vmatprep.mubr.bf16.mxu0 0
      %1706 = vmatmul.mubr.bf16.gmra.mxu0 %v1023
      %v1707 = vpop.f32.mrf.mxu0
      %v1708 = vadd.f32 0.0, %v1707
      %v1709 = vpop.f32.mrf.mxu0
      %v1710 = vpop.f32.mrf.mxu0
      %v1711 = vadd.f32 0.0, %v1710
      %v1712 = vpop.f32.mrf.mxu0
      %1713 = vmatprep.mubr.bf16.mxu0 0
      %1714 = vmatmul.mubr.bf16.gmra.mxu0 %v1026
      %v1715 = vpop.f32.mrf.mxu0
      %v1716 = vadd.f32 0.0, %v1715
      %v1717 = vpop.f32.mrf.mxu0
      %v1718 = vpop.f32.mrf.mxu0
      %v1719 = vadd.f32 0.0, %v1718
      %v1720 = vpop.f32.mrf.mxu0
      %1721 = vmatprep.mubr.bf16.mxu0 0
      %1722 = vmatmul.mubr.bf16.gmra.mxu0 %v1029
      %v1723 = vpop.f32.mrf.mxu0
      %v1724 = vadd.f32 0.0, %v1723
      %v1725 = vpop.f32.mrf.mxu0
      %v1726 = vpop.f32.mrf.mxu0
      %v1727 = vadd.f32 0.0, %v1726
      %v1728 = vpop.f32.mrf.mxu0
      %1729 = vmatprep.mubr.bf16.mxu0 0
      %1730 = vmatmul.mubr.bf16.gmra.mxu0 %v1032
      %v1731 = vpop.f32.mrf.mxu0
      %v1732 = vadd.f32 0.0, %v1731
      %v1733 = vpop.f32.mrf.mxu0
      %v1734 = vpop.f32.mrf.mxu0
      %v1735 = vadd.f32 0.0, %v1734
      %v1736 = vpop.f32.mrf.mxu0
      %1737 = vmatprep.mubr.bf16.mxu0 0
      %1738 = vmatmul.mubr.bf16.gmra.mxu0 %v1035
      %v1739 = vpop.f32.mrf.mxu0
      %v1740 = vadd.f32 0.0, %v1739
      %v1741 = vpop.f32.mrf.mxu0
      %v1742 = vpop.f32.mrf.mxu0
      %v1743 = vadd.f32 0.0, %v1742
      %v1744 = vpop.f32.mrf.mxu0
      %1745 = vmatprep.mubr.bf16.mxu0 0
      %1746 = vmatmul.mubr.bf16.gmra.mxu0 %v1038
      %v1747 = vpop.f32.mrf.mxu0
      %v1748 = vadd.f32 0.0, %v1747
      %v1749 = vpop.f32.mrf.mxu0
      %v1750 = vpop.f32.mrf.mxu0
      %v1751 = vadd.f32 0.0, %v1750
      %v1752 = vpop.f32.mrf.mxu0
      %1753 = vmatprep.mubr.bf16.mxu0 0
      %1754 = vmatmul.mubr.bf16.gmra.mxu0 %v1041
      %v1755 = vpop.f32.mrf.mxu0
      %v1756 = vadd.f32 0.0, %v1755
      %v1757 = vpop.f32.mrf.mxu0
      %v1758 = vpop.f32.mrf.mxu0
      %v1759 = vadd.f32 0.0, %v1758
      %v1760 = vpop.f32.mrf.mxu0
      %1761 = vmatprep.mubr.bf16.mxu0 0
      %1762 = vmatmul.mubr.bf16.gmra.mxu0 %v1044
      %v1763 = vpop.f32.mrf.mxu0
      %v1764 = vadd.f32 0.0, %v1763
      %v1765 = vpop.f32.mrf.mxu0
      %v1766 = vpop.f32.mrf.mxu0
      %v1767 = vadd.f32 0.0, %v1766
      %v1768 = vpop.f32.mrf.mxu0
      %1769 = vmatprep.mubr.bf16.mxu0 0
      %1770 = vmatmul.mubr.bf16.gmra.mxu0 %v1047
      %v1771 = vpop.f32.mrf.mxu0
      %v1772 = vadd.f32 0.0, %v1771
      %v1773 = vpop.f32.mrf.mxu0
      %v1774 = vpop.f32.mrf.mxu0
      %v1775 = vadd.f32 0.0, %v1774
      %v1776 = vpop.f32.mrf.mxu0
      %1777 = vmatprep.mubr.bf16.mxu0 0
      %1778 = vmatmul.mubr.bf16.gmra.mxu0 %v1050
      %v1779 = vpop.f32.mrf.mxu0
      %v1780 = vadd.f32 0.0, %v1779
      %v1781 = vpop.f32.mrf.mxu0
      %v1782 = vpop.f32.mrf.mxu0
      %v1783 = vadd.f32 0.0, %v1782
      %v1784 = vpop.f32.mrf.mxu0
      %1785 = vmatprep.mubr.bf16.mxu0 0
      %1786 = vmatmul.mubr.bf16.gmra.mxu0 %v1053
      %v1787 = vpop.f32.mrf.mxu0
      %v1788 = vadd.f32 0.0, %v1787
      %v1789 = vpop.f32.mrf.mxu0
      %v1790 = vpop.f32.mrf.mxu0
      %v1791 = vadd.f32 0.0, %v1790
      %v1792 = vpop.f32.mrf.mxu0
      %1793 = vmatprep.mubr.bf16.mxu0 0
      %1794 = vmatmul.mubr.bf16.gmra.mxu0 %v1056
      %v1795 = vpop.f32.mrf.mxu0
      %v1796 = vadd.f32 0.0, %v1795
      %v1797 = vpop.f32.mrf.mxu0
      %v1798 = vpop.f32.mrf.mxu0
      %v1799 = vadd.f32 0.0, %v1798
      %v1800 = vpop.f32.mrf.mxu0
      %1801 = vmatprep.mubr.bf16.mxu0 0
      %1802 = vmatmul.mubr.bf16.gmra.mxu0 %v1011
      %v1803 = vpop.f32.mrf.mxu0
      %v1804 = vadd.f32 0.0, %v1803
      %v1805 = vpop.f32.mrf.mxu0
      %v1806 = vpop.f32.mrf.mxu0
      %v1807 = vadd.f32 0.0, %v1806
      %v1808 = vpop.f32.mrf.mxu0
      %1809 = vdwg.mxu0
      %v1810 = vadd.f32 %v1614, %v1684
      %v1811 = vadd.f32 %v1615, %v1687
      %v1812 = vadd.f32 %v1616, %v1692
      %v1813 = vadd.f32 %v1617, %v1695
      %v1814 = vadd.f32 %v1618, %v1700
      %v1815 = vadd.f32 %v1619, %v1703
      %v1816 = vadd.f32 %v1620, %v1708
      %v1817 = vadd.f32 %v1621, %v1711
      %v1818 = vadd.f32 %v1622, %v1716
      %v1819 = vadd.f32 %v1623, %v1719
      %v1820 = vadd.f32 %v1624, %v1724
      %v1821 = vadd.f32 %v1625, %v1727
      %v1822 = vadd.f32 %v1626, %v1732
      %v1823 = vadd.f32 %v1627, %v1735
      %v1824 = vadd.f32 %v1628, %v1740
      %v1825 = vadd.f32 %v1629, %v1743
      %v1826 = vadd.f32 %v1630, %v1748
      %v1827 = vadd.f32 %v1631, %v1751
      %v1828 = vadd.f32 %v1632, %v1756
      %v1829 = vadd.f32 %v1633, %v1759
      %v1830 = vadd.f32 %v1634, %v1764
      %v1831 = vadd.f32 %v1635, %v1767
      %v1832 = vadd.f32 %v1636, %v1772
      %v1833 = vadd.f32 %v1637, %v1775
      %v1834 = vadd.f32 %v1638, %v1780
      %v1835 = vadd.f32 %v1639, %v1783
      %v1836 = vadd.f32 %v1640, %v1788
      %v1837 = vadd.f32 %v1641, %v1791
      %v1838 = vadd.f32 %v1642, %v1796
      %v1839 = vadd.f32 %v1643, %v1799
      %v1840 = vadd.f32 %v1644, %v1804
      %v1841 = vadd.f32 %v1645, %v1807
      %v1843 = vsel %vm504, %v264, 0
      %1845 = vmatprep.subr.bf16.mxu0 0
      %1846 = vmatpush1.bf16.msra.mxu0 0
      %1847 = vmatprep.subr.bf16.mxu0 0
      %1848 = vmatpush1.bf16.msra.mxu0 0
      %1849 = vmatprep.subr.bf16.mxu0 0
      %1850 = vmatpush1.bf16.msra.mxu0 0
      %1851 = vmatprep.subr.bf16.mxu0 0
      %1852 = vmatpush1.bf16.msra.mxu0 0
      %1853 = vmatprep.subr.bf16.mxu0 0
      %1854 = vmatpush1.bf16.msra.mxu0 0
      %1855 = vmatprep.subr.bf16.mxu0 0
      %1856 = vmatpush1.bf16.msra.mxu0 0
      %1857 = vmatprep.subr.bf16.mxu0 0
      %1858 = vmatpush1.bf16.msra.mxu0 0
      %1859 = vmatprep.subr.bf16.mxu0 0
      %1860 = vmatpush1.bf16.msra.mxu0 %v1843
      %1861 = vmatprep.subr.bf16.mxu0 0
      %1862 = vmatpush2.bf16.msra.mxu0 0
      %1863 = vmatprep.subr.bf16.mxu0 0
      %1864 = vmatpush2.bf16.msra.mxu0 0
      %1865 = vmatprep.subr.bf16.mxu0 0
      %1866 = vmatpush2.bf16.msra.mxu0 0
      %1867 = vmatprep.subr.bf16.mxu0 0
      %1868 = vmatpush2.bf16.msra.mxu0 0
      %1869 = vmatprep.subr.bf16.mxu0 0
      %1870 = vmatpush2.bf16.msra.mxu0 0
      %1871 = vmatprep.subr.bf16.mxu0 0
      %1872 = vmatpush2.bf16.msra.mxu0 0
      %1873 = vmatprep.subr.bf16.mxu0 0
      %1874 = vmatpush2.bf16.msra.mxu0 0
      %1875 = vmatprep.subr.bf16.mxu0 0
      %1876 = vmatpush2.bf16.msra.mxu0 0
      %1877 = vmatprep.mubr.bf16.mxu0 0
      %1878 = vmatmul.mubr.bf16.gmra.mxu0 %v676
      %v1879 = vpop.f32.mrf.mxu0
      %v1880 = vadd.f32 0.0, %v1879
      %v1881 = vpop.f32.mrf.mxu0
      %v1882 = vpop.f32.mrf.mxu0
      %v1883 = vadd.f32 0.0, %v1882
      %v1884 = vpop.f32.mrf.mxu0
      %1885 = vmatprep.mubr.bf16.mxu0 0
      %1886 = vmatmul.mubr.bf16.gmra.mxu0 %v679
      %v1887 = vpop.f32.mrf.mxu0
      %v1888 = vadd.f32 0.0, %v1887
      %v1889 = vpop.f32.mrf.mxu0
      %v1890 = vpop.f32.mrf.mxu0
      %v1891 = vadd.f32 0.0, %v1890
      %v1892 = vpop.f32.mrf.mxu0
      %1893 = vmatprep.mubr.bf16.mxu0 0
      %1894 = vmatmul.mubr.bf16.gmra.mxu0 %v682
      %v1895 = vpop.f32.mrf.mxu0
      %v1896 = vadd.f32 0.0, %v1895
      %v1897 = vpop.f32.mrf.mxu0
      %v1898 = vpop.f32.mrf.mxu0
      %v1899 = vadd.f32 0.0, %v1898
      %v1900 = vpop.f32.mrf.mxu0
      %1901 = vmatprep.mubr.bf16.mxu0 0
      %1902 = vmatmul.mubr.bf16.gmra.mxu0 %v685
      %v1903 = vpop.f32.mrf.mxu0
      %v1904 = vadd.f32 0.0, %v1903
      %v1905 = vpop.f32.mrf.mxu0
      %v1906 = vpop.f32.mrf.mxu0
      %v1907 = vadd.f32 0.0, %v1906
      %v1908 = vpop.f32.mrf.mxu0
      %1909 = vmatprep.mubr.bf16.mxu0 0
      %1910 = vmatmul.mubr.bf16.gmra.mxu0 %v688
      %v1911 = vpop.f32.mrf.mxu0
      %v1912 = vadd.f32 0.0, %v1911
      %v1913 = vpop.f32.mrf.mxu0
      %v1914 = vpop.f32.mrf.mxu0
      %v1915 = vadd.f32 0.0, %v1914
      %v1916 = vpop.f32.mrf.mxu0
      %1917 = vmatprep.mubr.bf16.mxu0 0
      %1918 = vmatmul.mubr.bf16.gmra.mxu0 %v691
      %v1919 = vpop.f32.mrf.mxu0
      %v1920 = vadd.f32 0.0, %v1919
      %v1921 = vpop.f32.mrf.mxu0
      %v1922 = vpop.f32.mrf.mxu0
      %v1923 = vadd.f32 0.0, %v1922
      %v1924 = vpop.f32.mrf.mxu0
      %1925 = vmatprep.mubr.bf16.mxu0 0
      %1926 = vmatmul.mubr.bf16.gmra.mxu0 %v694
      %v1927 = vpop.f32.mrf.mxu0
      %v1928 = vadd.f32 0.0, %v1927
      %v1929 = vpop.f32.mrf.mxu0
      %v1930 = vpop.f32.mrf.mxu0
      %v1931 = vadd.f32 0.0, %v1930
      %v1932 = vpop.f32.mrf.mxu0
      %1933 = vmatprep.mubr.bf16.mxu0 0
      %1934 = vmatmul.mubr.bf16.gmra.mxu0 %v697
      %v1935 = vpop.f32.mrf.mxu0
      %v1936 = vadd.f32 0.0, %v1935
      %v1937 = vpop.f32.mrf.mxu0
      %v1938 = vpop.f32.mrf.mxu0
      %v1939 = vadd.f32 0.0, %v1938
      %v1940 = vpop.f32.mrf.mxu0
      %1941 = vmatprep.mubr.bf16.mxu0 0
      %1942 = vmatmul.mubr.bf16.gmra.mxu0 %v700
      %v1943 = vpop.f32.mrf.mxu0
      %v1944 = vadd.f32 0.0, %v1943
      %v1945 = vpop.f32.mrf.mxu0
      %v1946 = vpop.f32.mrf.mxu0
      %v1947 = vadd.f32 0.0, %v1946
      %v1948 = vpop.f32.mrf.mxu0
      %1949 = vmatprep.mubr.bf16.mxu0 0
      %1950 = vmatmul.mubr.bf16.gmra.mxu0 %v703
      %v1951 = vpop.f32.mrf.mxu0
      %v1952 = vadd.f32 0.0, %v1951
      %v1953 = vpop.f32.mrf.mxu0
      %v1954 = vpop.f32.mrf.mxu0
      %v1955 = vadd.f32 0.0, %v1954
      %v1956 = vpop.f32.mrf.mxu0
      %1957 = vmatprep.mubr.bf16.mxu0 0
      %1958 = vmatmul.mubr.bf16.gmra.mxu0 %v706
      %v1959 = vpop.f32.mrf.mxu0
      %v1960 = vadd.f32 0.0, %v1959
      %v1961 = vpop.f32.mrf.mxu0
      %v1962 = vpop.f32.mrf.mxu0
      %v1963 = vadd.f32 0.0, %v1962
      %v1964 = vpop.f32.mrf.mxu0
      %1965 = vmatprep.mubr.bf16.mxu0 0
      %1966 = vmatmul.mubr.bf16.gmra.mxu0 %v709
      %v1967 = vpop.f32.mrf.mxu0
      %v1968 = vadd.f32 0.0, %v1967
      %v1969 = vpop.f32.mrf.mxu0
      %v1970 = vpop.f32.mrf.mxu0
      %v1971 = vadd.f32 0.0, %v1970
      %v1972 = vpop.f32.mrf.mxu0
      %1973 = vmatprep.mubr.bf16.mxu0 0
      %1974 = vmatmul.mubr.bf16.gmra.mxu0 %v712
      %v1975 = vpop.f32.mrf.mxu0
      %v1976 = vadd.f32 0.0, %v1975
      %v1977 = vpop.f32.mrf.mxu0
      %v1978 = vpop.f32.mrf.mxu0
      %v1979 = vadd.f32 0.0, %v1978
      %v1980 = vpop.f32.mrf.mxu0
      %1981 = vmatprep.mubr.bf16.mxu0 0
      %1982 = vmatmul.mubr.bf16.gmra.mxu0 %v715
      %v1983 = vpop.f32.mrf.mxu0
      %v1984 = vadd.f32 0.0, %v1983
      %v1985 = vpop.f32.mrf.mxu0
      %v1986 = vpop.f32.mrf.mxu0
      %v1987 = vadd.f32 0.0, %v1986
      %v1988 = vpop.f32.mrf.mxu0
      %1989 = vmatprep.mubr.bf16.mxu0 0
      %1990 = vmatmul.mubr.bf16.gmra.mxu0 %v670
      %v1991 = vpop.f32.mrf.mxu0
      %v1992 = vadd.f32 0.0, %v1991
      %v1993 = vpop.f32.mrf.mxu0
      %v1994 = vpop.f32.mrf.mxu0
      %v1995 = vadd.f32 0.0, %v1994
      %v1996 = vpop.f32.mrf.mxu0
      %1997 = vmatprep.mubr.bf16.mxu0 0
      %1998 = vmatmul.mubr.bf16.gmra.mxu0 %v673
      %v1999 = vpop.f32.mrf.mxu0
      %v2000 = vadd.f32 0.0, %v1999
      %v2001 = vpop.f32.mrf.mxu0
      %v2002 = vpop.f32.mrf.mxu0
      %v2003 = vadd.f32 0.0, %v2002
      %v2004 = vpop.f32.mrf.mxu0
      %2005 = vdwg.mxu0
      %v2006 = vadd.f32 %v1810, %v1880
      %v2007 = vadd.f32 %v1811, %v1883
      %v2008 = vadd.f32 %v1812, %v1888
      %v2009 = vadd.f32 %v1813, %v1891
      %v2010 = vadd.f32 %v1814, %v1896
      %v2011 = vadd.f32 %v1815, %v1899
      %v2012 = vadd.f32 %v1816, %v1904
      %v2013 = vadd.f32 %v1817, %v1907
      %v2014 = vadd.f32 %v1818, %v1912
      %v2015 = vadd.f32 %v1819, %v1915
      %v2016 = vadd.f32 %v1820, %v1920
      %v2017 = vadd.f32 %v1821, %v1923
      %v2018 = vadd.f32 %v1822, %v1928
      %v2019 = vadd.f32 %v1823, %v1931
      %v2020 = vadd.f32 %v1824, %v1936
      %v2021 = vadd.f32 %v1825, %v1939
      %v2022 = vadd.f32 %v1826, %v1944
      %v2023 = vadd.f32 %v1827, %v1947
      %v2024 = vadd.f32 %v1828, %v1952
      %v2025 = vadd.f32 %v1829, %v1955
      %v2026 = vadd.f32 %v1830, %v1960
      %v2027 = vadd.f32 %v1831, %v1963
      %v2028 = vadd.f32 %v1832, %v1968
      %v2029 = vadd.f32 %v1833, %v1971
      %v2030 = vadd.f32 %v1834, %v1976
      %v2031 = vadd.f32 %v1835, %v1979
      %v2032 = vadd.f32 %v1836, %v1984
      %v2033 = vadd.f32 %v1837, %v1987
      %v2034 = vadd.f32 %v1838, %v1992
      %v2035 = vadd.f32 %v1839, %v1995
      %v2036 = vadd.f32 %v1840, %v2000
      %v2037 = vadd.f32 %v1841, %v2003
      %v2039 = vsel %vm504, %v265, 0
      %2041 = vmatprep.subr.bf16.mxu0 0
      %2042 = vmatpush1.bf16.msra.mxu0 0
      %2043 = vmatprep.subr.bf16.mxu0 0
      %2044 = vmatpush1.bf16.msra.mxu0 0
      %2045 = vmatprep.subr.bf16.mxu0 0
      %2046 = vmatpush1.bf16.msra.mxu0 0
      %2047 = vmatprep.subr.bf16.mxu0 0
      %2048 = vmatpush1.bf16.msra.mxu0 0
      %2049 = vmatprep.subr.bf16.mxu0 0
      %2050 = vmatpush1.bf16.msra.mxu0 0
      %2051 = vmatprep.subr.bf16.mxu0 0
      %2052 = vmatpush1.bf16.msra.mxu0 0
      %2053 = vmatprep.subr.bf16.mxu0 0
      %2054 = vmatpush1.bf16.msra.mxu0 0
      %2055 = vmatprep.subr.bf16.mxu0 0
      %2056 = vmatpush1.bf16.msra.mxu0 %v2039
      %2057 = vmatprep.subr.bf16.mxu0 0
      %2058 = vmatpush2.bf16.msra.mxu0 0
      %2059 = vmatprep.subr.bf16.mxu0 0
      %2060 = vmatpush2.bf16.msra.mxu0 0
      %2061 = vmatprep.subr.bf16.mxu0 0
      %2062 = vmatpush2.bf16.msra.mxu0 0
      %2063 = vmatprep.subr.bf16.mxu0 0
      %2064 = vmatpush2.bf16.msra.mxu0 0
      %2065 = vmatprep.subr.bf16.mxu0 0
      %2066 = vmatpush2.bf16.msra.mxu0 0
      %2067 = vmatprep.subr.bf16.mxu0 0
      %2068 = vmatpush2.bf16.msra.mxu0 0
      %2069 = vmatprep.subr.bf16.mxu0 0
      %2070 = vmatpush2.bf16.msra.mxu0 0
      %2071 = vmatprep.subr.bf16.mxu0 0
      %2072 = vmatpush2.bf16.msra.mxu0 0
      %2073 = vmatprep.mubr.bf16.mxu0 0
      %2074 = vmatmul.mubr.bf16.gmra.mxu0 %v463
      %v2075 = vpop.f32.mrf.mxu0
      %v2076 = vadd.f32 0.0, %v2075
      %v2077 = vpop.f32.mrf.mxu0
      %v2078 = vpop.f32.mrf.mxu0
      %v2079 = vadd.f32 0.0, %v2078
      %v2080 = vpop.f32.mrf.mxu0
      %2081 = vmatprep.mubr.bf16.mxu0 0
      %2082 = vmatmul.mubr.bf16.gmra.mxu0 %v466
      %v2083 = vpop.f32.mrf.mxu0
      %v2084 = vadd.f32 0.0, %v2083
      %v2085 = vpop.f32.mrf.mxu0
      %v2086 = vpop.f32.mrf.mxu0
      %v2087 = vadd.f32 0.0, %v2086
      %v2088 = vpop.f32.mrf.mxu0
      %2089 = vmatprep.mubr.bf16.mxu0 0
      %2090 = vmatmul.mubr.bf16.gmra.mxu0 %v469
      %v2091 = vpop.f32.mrf.mxu0
      %v2092 = vadd.f32 0.0, %v2091
      %v2093 = vpop.f32.mrf.mxu0
      %v2094 = vpop.f32.mrf.mxu0
      %v2095 = vadd.f32 0.0, %v2094
      %v2096 = vpop.f32.mrf.mxu0
      %2097 = vmatprep.mubr.bf16.mxu0 0
      %2098 = vmatmul.mubr.bf16.gmra.mxu0 %v472
      %v2099 = vpop.f32.mrf.mxu0
      %v2100 = vadd.f32 0.0, %v2099
      %v2101 = vpop.f32.mrf.mxu0
      %v2102 = vpop.f32.mrf.mxu0
      %v2103 = vadd.f32 0.0, %v2102
      %v2104 = vpop.f32.mrf.mxu0
      %2105 = vmatprep.mubr.bf16.mxu0 0
      %2106 = vmatmul.mubr.bf16.gmra.mxu0 %v475
      %v2107 = vpop.f32.mrf.mxu0
      %v2108 = vadd.f32 0.0, %v2107
      %v2109 = vpop.f32.mrf.mxu0
      %v2110 = vpop.f32.mrf.mxu0
      %v2111 = vadd.f32 0.0, %v2110
      %v2112 = vpop.f32.mrf.mxu0
      %2113 = vmatprep.mubr.bf16.mxu0 0
      %2114 = vmatmul.mubr.bf16.gmra.mxu0 %v478
      %v2115 = vpop.f32.mrf.mxu0
      %v2116 = vadd.f32 0.0, %v2115
      %v2117 = vpop.f32.mrf.mxu0
      %v2118 = vpop.f32.mrf.mxu0
      %v2119 = vadd.f32 0.0, %v2118
      %v2120 = vpop.f32.mrf.mxu0
      %2121 = vmatprep.mubr.bf16.mxu0 0
      %2122 = vmatmul.mubr.bf16.gmra.mxu0 %v481
      %v2123 = vpop.f32.mrf.mxu0
      %v2124 = vadd.f32 0.0, %v2123
      %v2125 = vpop.f32.mrf.mxu0
      %v2126 = vpop.f32.mrf.mxu0
      %v2127 = vadd.f32 0.0, %v2126
      %v2128 = vpop.f32.mrf.mxu0
      %2129 = vmatprep.mubr.bf16.mxu0 0
      %2130 = vmatmul.mubr.bf16.gmra.mxu0 %v484
      %v2131 = vpop.f32.mrf.mxu0
      %v2132 = vadd.f32 0.0, %v2131
      %v2133 = vpop.f32.mrf.mxu0
      %v2134 = vpop.f32.mrf.mxu0
      %v2135 = vadd.f32 0.0, %v2134
      %v2136 = vpop.f32.mrf.mxu0
      %2137 = vmatprep.mubr.bf16.mxu0 0
      %2138 = vmatmul.mubr.bf16.gmra.mxu0 %v487
      %v2139 = vpop.f32.mrf.mxu0
      %v2140 = vadd.f32 0.0, %v2139
      %v2141 = vpop.f32.mrf.mxu0
      %v2142 = vpop.f32.mrf.mxu0
      %v2143 = vadd.f32 0.0, %v2142
      %v2144 = vpop.f32.mrf.mxu0
      %2145 = vmatprep.mubr.bf16.mxu0 0
      %2146 = vmatmul.mubr.bf16.gmra.mxu0 %v490
      %v2147 = vpop.f32.mrf.mxu0
      %v2148 = vadd.f32 0.0, %v2147
      %v2149 = vpop.f32.mrf.mxu0
      %v2150 = vpop.f32.mrf.mxu0
      %v2151 = vadd.f32 0.0, %v2150
      %v2152 = vpop.f32.mrf.mxu0
      %2153 = vmatprep.mubr.bf16.mxu0 0
      %2154 = vmatmul.mubr.bf16.gmra.mxu0 %v493
      %v2155 = vpop.f32.mrf.mxu0
      %v2156 = vadd.f32 0.0, %v2155
      %v2157 = vpop.f32.mrf.mxu0
      %v2158 = vpop.f32.mrf.mxu0
      %v2159 = vadd.f32 0.0, %v2158
      %v2160 = vpop.f32.mrf.mxu0
      %2161 = vmatprep.mubr.bf16.mxu0 0
      %2162 = vmatmul.mubr.bf16.gmra.mxu0 %v496
      %v2163 = vpop.f32.mrf.mxu0
      %v2164 = vadd.f32 0.0, %v2163
      %v2165 = vpop.f32.mrf.mxu0
      %v2166 = vpop.f32.mrf.mxu0
      %v2167 = vadd.f32 0.0, %v2166
      %v2168 = vpop.f32.mrf.mxu0
      %2169 = vmatprep.mubr.bf16.mxu0 0
      %2170 = vmatmul.mubr.bf16.gmra.mxu0 %v499
      %v2171 = vpop.f32.mrf.mxu0
      %v2172 = vadd.f32 0.0, %v2171
      %v2173 = vpop.f32.mrf.mxu0
      %v2174 = vpop.f32.mrf.mxu0
      %v2175 = vadd.f32 0.0, %v2174
      %v2176 = vpop.f32.mrf.mxu0
      %2177 = vmatprep.mubr.bf16.mxu0 0
      %2178 = vmatmul.mubr.bf16.gmra.mxu0 %v502
      %v2179 = vpop.f32.mrf.mxu0
      %v2180 = vadd.f32 0.0, %v2179
      %v2181 = vpop.f32.mrf.mxu0
      %v2182 = vpop.f32.mrf.mxu0
      %v2183 = vadd.f32 0.0, %v2182
      %v2184 = vpop.f32.mrf.mxu0
      %2185 = vmatprep.mubr.bf16.mxu0 0
      %2186 = vmatmul.mubr.bf16.gmra.mxu0 %v457
      %v2187 = vpop.f32.mrf.mxu0
      %v2188 = vadd.f32 0.0, %v2187
      %v2189 = vpop.f32.mrf.mxu0
      %v2190 = vpop.f32.mrf.mxu0
      %v2191 = vadd.f32 0.0, %v2190
      %v2192 = vpop.f32.mrf.mxu0
      %2193 = vmatprep.mubr.bf16.mxu0 0
      %2194 = vmatmul.mubr.bf16.gmra.mxu0 %v460
      %v2195 = vpop.f32.mrf.mxu0
      %v2196 = vadd.f32 0.0, %v2195
      %v2197 = vpop.f32.mrf.mxu0
      %v2198 = vpop.f32.mrf.mxu0
      %v2199 = vadd.f32 0.0, %v2198
      %v2200 = vpop.f32.mrf.mxu0
      %2201 = vdwg.mxu0
      %v2202 = vadd.f32 %v2006, %v2076
      %v2203 = vadd.f32 %v2007, %v2079
      %v2204 = vadd.f32 %v2008, %v2084
      %v2205 = vadd.f32 %v2009, %v2087
      %v2206 = vadd.f32 %v2010, %v2092
      %v2207 = vadd.f32 %v2011, %v2095
      %v2208 = vadd.f32 %v2012, %v2100
      %v2209 = vadd.f32 %v2013, %v2103
      %v2210 = vadd.f32 %v2014, %v2108
      %v2211 = vadd.f32 %v2015, %v2111
      %v2212 = vadd.f32 %v2016, %v2116
      %v2213 = vadd.f32 %v2017, %v2119
      %v2214 = vadd.f32 %v2018, %v2124
      %v2215 = vadd.f32 %v2019, %v2127
      %v2216 = vadd.f32 %v2020, %v2132
      %v2217 = vadd.f32 %v2021, %v2135
      %v2218 = vadd.f32 %v2022, %v2140
      %v2219 = vadd.f32 %v2023, %v2143
      %v2220 = vadd.f32 %v2024, %v2148
      %v2221 = vadd.f32 %v2025, %v2151
      %v2222 = vadd.f32 %v2026, %v2156
      %v2223 = vadd.f32 %v2027, %v2159
      %v2224 = vadd.f32 %v2028, %v2164
      %v2225 = vadd.f32 %v2029, %v2167
      %v2226 = vadd.f32 %v2030, %v2172
      %v2227 = vadd.f32 %v2031, %v2175
      %v2228 = vadd.f32 %v2032, %v2180
      %v2229 = vadd.f32 %v2033, %v2183
      %v2230 = vadd.f32 %v2034, %v2188
      %v2231 = vadd.f32 %v2035, %v2191
      %v2232 = vadd.f32 %v2036, %v2196
      %v2233 = vadd.f32 %v2037, %v2199
      %v2235 = vsel %vm504, %v266, 0
      %2237 = vmatprep.subr.bf16.mxu0 0
      %2238 = vmatpush1.bf16.msra.mxu0 0
      %2239 = vmatprep.subr.bf16.mxu0 0
      %2240 = vmatpush1.bf16.msra.mxu0 0
      %2241 = vmatprep.subr.bf16.mxu0 0
      %2242 = vmatpush1.bf16.msra.mxu0 0
      %2243 = vmatprep.subr.bf16.mxu0 0
      %2244 = vmatpush1.bf16.msra.mxu0 0
      %2245 = vmatprep.subr.bf16.mxu0 0
      %2246 = vmatpush1.bf16.msra.mxu0 0
      %2247 = vmatprep.subr.bf16.mxu0 0
      %2248 = vmatpush1.bf16.msra.mxu0 0
      %2249 = vmatprep.subr.bf16.mxu0 0
      %2250 = vmatpush1.bf16.msra.mxu0 0
      %2251 = vmatprep.subr.bf16.mxu0 0
      %2252 = vmatpush1.bf16.msra.mxu0 %v2235
      %2253 = vmatprep.subr.bf16.mxu0 0
      %2254 = vmatpush2.bf16.msra.mxu0 0
      %2255 = vmatprep.subr.bf16.mxu0 0
      %2256 = vmatpush2.bf16.msra.mxu0 0
      %2257 = vmatprep.subr.bf16.mxu0 0
      %2258 = vmatpush2.bf16.msra.mxu0 0
      %2259 = vmatprep.subr.bf16.mxu0 0
      %2260 = vmatpush2.bf16.msra.mxu0 0
      %2261 = vmatprep.subr.bf16.mxu0 0
      %2262 = vmatpush2.bf16.msra.mxu0 0
      %2263 = vmatprep.subr.bf16.mxu0 0
      %2264 = vmatpush2.bf16.msra.mxu0 0
      %2265 = vmatprep.subr.bf16.mxu0 0
      %2266 = vmatpush2.bf16.msra.mxu0 0
      %2267 = vmatprep.subr.bf16.mxu0 0
      %2268 = vmatpush2.bf16.msra.mxu0 0
      %2269 = vmatprep.mubr.bf16.mxu0 0
      %2270 = vmatmul.mubr.bf16.gmra.mxu0 %v1017
      %v2271 = vpop.f32.mrf.mxu0
      %v2272 = vadd.f32 0.0, %v2271
      %v2273 = vpop.f32.mrf.mxu0
      %v2274 = vpop.f32.mrf.mxu0
      %v2275 = vadd.f32 0.0, %v2274
      %v2276 = vpop.f32.mrf.mxu0
      %2277 = vmatprep.mubr.bf16.mxu0 0
      %2278 = vmatmul.mubr.bf16.gmra.mxu0 %v1020
      %v2279 = vpop.f32.mrf.mxu0
      %v2280 = vadd.f32 0.0, %v2279
      %v2281 = vpop.f32.mrf.mxu0
      %v2282 = vpop.f32.mrf.mxu0
      %v2283 = vadd.f32 0.0, %v2282
      %v2284 = vpop.f32.mrf.mxu0
      %2285 = vmatprep.mubr.bf16.mxu0 0
      %2286 = vmatmul.mubr.bf16.gmra.mxu0 %v1023
      %v2287 = vpop.f32.mrf.mxu0
      %v2288 = vadd.f32 0.0, %v2287
      %v2289 = vpop.f32.mrf.mxu0
      %v2290 = vpop.f32.mrf.mxu0
      %v2291 = vadd.f32 0.0, %v2290
      %v2292 = vpop.f32.mrf.mxu0
      %2293 = vmatprep.mubr.bf16.mxu0 0
      %2294 = vmatmul.mubr.bf16.gmra.mxu0 %v1026
      %v2295 = vpop.f32.mrf.mxu0
      %v2296 = vadd.f32 0.0, %v2295
      %v2297 = vpop.f32.mrf.mxu0
      %v2298 = vpop.f32.mrf.mxu0
      %v2299 = vadd.f32 0.0, %v2298
      %v2300 = vpop.f32.mrf.mxu0
      %2301 = vmatprep.mubr.bf16.mxu0 0
      %2302 = vmatmul.mubr.bf16.gmra.mxu0 %v1029
      %v2303 = vpop.f32.mrf.mxu0
      %v2304 = vadd.f32 0.0, %v2303
      %v2305 = vpop.f32.mrf.mxu0
      %v2306 = vpop.f32.mrf.mxu0
      %v2307 = vadd.f32 0.0, %v2306
      %v2308 = vpop.f32.mrf.mxu0
      %2309 = vmatprep.mubr.bf16.mxu0 0
      %2310 = vmatmul.mubr.bf16.gmra.mxu0 %v1032
      %v2311 = vpop.f32.mrf.mxu0
      %v2312 = vadd.f32 0.0, %v2311
      %v2313 = vpop.f32.mrf.mxu0
      %v2314 = vpop.f32.mrf.mxu0
      %v2315 = vadd.f32 0.0, %v2314
      %v2316 = vpop.f32.mrf.mxu0
      %2317 = vmatprep.mubr.bf16.mxu0 0
      %2318 = vmatmul.mubr.bf16.gmra.mxu0 %v1035
      %v2319 = vpop.f32.mrf.mxu0
      %v2320 = vadd.f32 0.0, %v2319
      %v2321 = vpop.f32.mrf.mxu0
      %v2322 = vpop.f32.mrf.mxu0
      %v2323 = vadd.f32 0.0, %v2322
      %v2324 = vpop.f32.mrf.mxu0
      %2325 = vmatprep.mubr.bf16.mxu0 0
      %2326 = vmatmul.mubr.bf16.gmra.mxu0 %v1038
      %v2327 = vpop.f32.mrf.mxu0
      %v2328 = vadd.f32 0.0, %v2327
      %v2329 = vpop.f32.mrf.mxu0
      %v2330 = vpop.f32.mrf.mxu0
      %v2331 = vadd.f32 0.0, %v2330
      %v2332 = vpop.f32.mrf.mxu0
      %2333 = vmatprep.mubr.bf16.mxu0 0
      %2334 = vmatmul.mubr.bf16.gmra.mxu0 %v1041
      %v2335 = vpop.f32.mrf.mxu0
      %v2336 = vadd.f32 0.0, %v2335
      %v2337 = vpop.f32.mrf.mxu0
      %v2338 = vpop.f32.mrf.mxu0
      %v2339 = vadd.f32 0.0, %v2338
      %v2340 = vpop.f32.mrf.mxu0
      %2341 = vmatprep.mubr.bf16.mxu0 0
      %2342 = vmatmul.mubr.bf16.gmra.mxu0 %v1044
      %v2343 = vpop.f32.mrf.mxu0
      %v2344 = vadd.f32 0.0, %v2343
      %v2345 = vpop.f32.mrf.mxu0
      %v2346 = vpop.f32.mrf.mxu0
      %v2347 = vadd.f32 0.0, %v2346
      %v2348 = vpop.f32.mrf.mxu0
      %2349 = vmatprep.mubr.bf16.mxu0 0
      %2350 = vmatmul.mubr.bf16.gmra.mxu0 %v1047
      %v2351 = vpop.f32.mrf.mxu0
      %v2352 = vadd.f32 0.0, %v2351
      %v2353 = vpop.f32.mrf.mxu0
      %v2354 = vpop.f32.mrf.mxu0
      %v2355 = vadd.f32 0.0, %v2354
      %v2356 = vpop.f32.mrf.mxu0
      %2357 = vmatprep.mubr.bf16.mxu0 0
      %2358 = vmatmul.mubr.bf16.gmra.mxu0 %v1050
      %v2359 = vpop.f32.mrf.mxu0
      %v2360 = vadd.f32 0.0, %v2359
      %v2361 = vpop.f32.mrf.mxu0
      %v2362 = vpop.f32.mrf.mxu0
      %v2363 = vadd.f32 0.0, %v2362
      %v2364 = vpop.f32.mrf.mxu0
      %2365 = vmatprep.mubr.bf16.mxu0 0
      %2366 = vmatmul.mubr.bf16.gmra.mxu0 %v1053
      %v2367 = vpop.f32.mrf.mxu0
      %v2368 = vadd.f32 0.0, %v2367
      %v2369 = vpop.f32.mrf.mxu0
      %v2370 = vpop.f32.mrf.mxu0
      %v2371 = vadd.f32 0.0, %v2370
      %v2372 = vpop.f32.mrf.mxu0
      %2373 = vmatprep.mubr.bf16.mxu0 0
      %2374 = vmatmul.mubr.bf16.gmra.mxu0 %v1056
      %v2375 = vpop.f32.mrf.mxu0
      %v2376 = vadd.f32 0.0, %v2375
      %v2377 = vpop.f32.mrf.mxu0
      %v2378 = vpop.f32.mrf.mxu0
      %v2379 = vadd.f32 0.0, %v2378
      %v2380 = vpop.f32.mrf.mxu0
      %2381 = vmatprep.mubr.bf16.mxu0 0
      %2382 = vmatmul.mubr.bf16.gmra.mxu0 %v1011
      %v2383 = vpop.f32.mrf.mxu0
      %v2384 = vadd.f32 0.0, %v2383
      %v2385 = vpop.f32.mrf.mxu0
      %v2386 = vpop.f32.mrf.mxu0
      %v2387 = vadd.f32 0.0, %v2386
      %v2388 = vpop.f32.mrf.mxu0
      %2389 = vmatprep.mubr.bf16.mxu0 0
      %2390 = vmatmul.mubr.bf16.gmra.mxu0 %v1014
      %v2391 = vpop.f32.mrf.mxu0
      %v2392 = vadd.f32 0.0, %v2391
      %v2393 = vpop.f32.mrf.mxu0
      %v2394 = vpop.f32.mrf.mxu0
      %v2395 = vadd.f32 0.0, %v2394
      %v2396 = vpop.f32.mrf.mxu0
      %2397 = vdwg.mxu0
      %v2398 = vadd.f32 %v2202, %v2272
      %v2399 = vadd.f32 %v2203, %v2275
      %v2400 = vadd.f32 %v2204, %v2280
      %v2401 = vadd.f32 %v2205, %v2283
      %v2402 = vadd.f32 %v2206, %v2288
      %v2403 = vadd.f32 %v2207, %v2291
      %v2404 = vadd.f32 %v2208, %v2296
      %v2405 = vadd.f32 %v2209, %v2299
      %v2406 = vadd.f32 %v2210, %v2304
      %v2407 = vadd.f32 %v2211, %v2307
      %v2408 = vadd.f32 %v2212, %v2312
      %v2409 = vadd.f32 %v2213, %v2315
      %v2410 = vadd.f32 %v2214, %v2320
      %v2411 = vadd.f32 %v2215, %v2323
      %v2412 = vadd.f32 %v2216, %v2328
      %v2413 = vadd.f32 %v2217, %v2331
      %v2414 = vadd.f32 %v2218, %v2336
      %v2415 = vadd.f32 %v2219, %v2339
      %v2416 = vadd.f32 %v2220, %v2344
      %v2417 = vadd.f32 %v2221, %v2347
      %v2418 = vadd.f32 %v2222, %v2352
      %v2419 = vadd.f32 %v2223, %v2355
      %v2420 = vadd.f32 %v2224, %v2360
      %v2421 = vadd.f32 %v2225, %v2363
      %v2422 = vadd.f32 %v2226, %v2368
      %v2423 = vadd.f32 %v2227, %v2371
      %v2424 = vadd.f32 %v2228, %v2376
      %v2425 = vadd.f32 %v2229, %v2379
      %v2426 = vadd.f32 %v2230, %v2384
      %v2427 = vadd.f32 %v2231, %v2387
      %v2428 = vadd.f32 %v2232, %v2392
      %v2429 = vadd.f32 %v2233, %v2395
      %v2431 = vlaneseq
      %v2432 = vshrl.u32 %v2431, 7
      %v2433 = vsub.s32 0, %v2432
      %v2434 = vrot.slane %v276, %v2433
      %v2436 = vadd.f32 %v2398, %v2434
      %v2437 = vadd.f32 %v2399, %v2434
      %v2438 = vadd.f32 %v2400, %v2434
      %v2439 = vadd.f32 %v2401, %v2434
      %v2440 = vadd.f32 %v2402, %v2434
      %v2441 = vadd.f32 %v2403, %v2434
      %v2442 = vadd.f32 %v2404, %v2434
      %v2443 = vadd.f32 %v2405, %v2434
      %v2444 = vadd.f32 %v2406, %v2434
      %v2445 = vadd.f32 %v2407, %v2434
      %v2446 = vadd.f32 %v2408, %v2434
      %v2447 = vadd.f32 %v2409, %v2434
      %v2448 = vadd.f32 %v2410, %v2434
      %v2449 = vadd.f32 %v2411, %v2434
      %v2450 = vadd.f32 %v2412, %v2434
      %v2451 = vadd.f32 %v2413, %v2434
      %v2452 = vadd.f32 %v2414, %v2434
      %v2453 = vadd.f32 %v2415, %v2434
      %v2454 = vadd.f32 %v2416, %v2434
      %v2455 = vadd.f32 %v2417, %v2434
      %v2456 = vadd.f32 %v2418, %v2434
      %v2457 = vadd.f32 %v2419, %v2434
      %v2458 = vadd.f32 %v2420, %v2434
      %v2459 = vadd.f32 %v2421, %v2434
      %v2460 = vadd.f32 %v2422, %v2434
      %v2461 = vadd.f32 %v2423, %v2434
      %v2462 = vadd.f32 %v2424, %v2434
      %v2463 = vadd.f32 %v2425, %v2434
      %v2464 = vadd.f32 %v2426, %v2434
      %v2465 = vadd.f32 %v2427, %v2434
      %v2466 = vadd.f32 %v2428, %v2434
      %v2467 = vadd.f32 %v2429, %v2434
      %v2468 = vmax.f32 %v2436, 0.0
      %v2469 = vmax.f32 %v2437, 0.0
      %v2470 = vmax.f32 %v2438, 0.0
      %v2471 = vmax.f32 %v2439, 0.0
      %v2472 = vmax.f32 %v2440, 0.0
      %v2473 = vmax.f32 %v2441, 0.0
      %v2474 = vmax.f32 %v2442, 0.0
      %v2475 = vmax.f32 %v2443, 0.0
      %v2476 = vmax.f32 %v2444, 0.0
      %v2477 = vmax.f32 %v2445, 0.0
      %v2478 = vmax.f32 %v2446, 0.0
      %v2479 = vmax.f32 %v2447, 0.0
      %v2480 = vmax.f32 %v2448, 0.0
      %v2481 = vmax.f32 %v2449, 0.0
      %v2482 = vmax.f32 %v2450, 0.0
      %v2483 = vmax.f32 %v2451, 0.0
      %v2484 = vmax.f32 %v2452, 0.0
      %v2485 = vmax.f32 %v2453, 0.0
      %v2486 = vmax.f32 %v2454, 0.0
      %v2487 = vmax.f32 %v2455, 0.0
      %v2488 = vmax.f32 %v2456, 0.0
      %v2489 = vmax.f32 %v2457, 0.0
      %v2490 = vmax.f32 %v2458, 0.0
      %v2491 = vmax.f32 %v2459, 0.0
      %v2492 = vmax.f32 %v2460, 0.0
      %v2493 = vmax.f32 %v2461, 0.0
      %v2494 = vmax.f32 %v2462, 0.0
      %v2495 = vmax.f32 %v2463, 0.0
      %v2496 = vmax.f32 %v2464, 0.0
      %v2497 = vmax.f32 %v2465, 0.0
      %v2498 = vmax.f32 %v2466, 0.0
      %v2499 = vmax.f32 %v2467, 0.0
      %v2516 = vrot.slane %v2499, 7
      %v2517 = vrot.slane %v2469, 7
      %v2518 = vrot.slane %v2471, 7
      %v2519 = vrot.slane %v2473, 7
      %v2520 = vrot.slane %v2475, 7
      %v2521 = vrot.slane %v2477, 7
      %v2522 = vrot.slane %v2479, 7
      %v2523 = vrot.slane %v2481, 7
      %v2524 = vrot.slane %v2483, 7
      %v2525 = vrot.slane %v2485, 7
      %v2526 = vrot.slane %v2487, 7
      %v2527 = vrot.slane %v2489, 7
      %v2528 = vrot.slane %v2491, 7
      %v2529 = vrot.slane %v2493, 7
      %v2530 = vrot.slane %v2495, 7
      %v2531 = vrot.slane %v2497, 7
      %v2564 = vrot.slane %v2498, 7
      %v2565 = vsel %vm342, %v2564, %v2516
      %v2566 = vrot.slane %v2468, 7
      %v2567 = vsel %vm342, %v2566, %v2517
      %v2568 = vrot.slane %v2470, 7
      %v2569 = vsel %vm342, %v2568, %v2518
      %v2570 = vrot.slane %v2472, 7
      %v2571 = vsel %vm342, %v2570, %v2519
      %v2572 = vrot.slane %v2474, 7
      %v2573 = vsel %vm342, %v2572, %v2520
      %v2574 = vrot.slane %v2476, 7
      %v2575 = vsel %vm342, %v2574, %v2521
      %v2576 = vrot.slane %v2478, 7
      %v2577 = vsel %vm342, %v2576, %v2522
      %v2578 = vrot.slane %v2480, 7
      %v2579 = vsel %vm342, %v2578, %v2523
      %v2580 = vrot.slane %v2482, 7
      %v2581 = vsel %vm342, %v2580, %v2524
      %v2582 = vrot.slane %v2484, 7
      %v2583 = vsel %vm342, %v2582, %v2525
      %v2584 = vrot.slane %v2486, 7
      %v2585 = vsel %vm342, %v2584, %v2526
      %v2586 = vrot.slane %v2488, 7
      %v2587 = vsel %vm342, %v2586, %v2527
      %v2588 = vrot.slane %v2490, 7
      %v2589 = vsel %vm342, %v2588, %v2528
      %v2590 = vrot.slane %v2492, 7
      %v2591 = vsel %vm342, %v2590, %v2529
      %v2592 = vrot.slane %v2494, 7
      %v2593 = vsel %vm342, %v2592, %v2530
      %v2594 = vrot.slane %v2496, 7
      %v2595 = vsel %vm342, %v2594, %v2531
      %v2628 = vsel %vm342, %v2516, %v2564
      %v2629 = vsel %vm342, %v2517, %v2566
      %v2630 = vsel %vm342, %v2518, %v2568
      %v2631 = vsel %vm342, %v2519, %v2570
      %v2632 = vsel %vm342, %v2520, %v2572
      %v2633 = vsel %vm342, %v2521, %v2574
      %v2634 = vsel %vm342, %v2522, %v2576
      %v2635 = vsel %vm342, %v2523, %v2578
      %v2636 = vsel %vm342, %v2524, %v2580
      %v2637 = vsel %vm342, %v2525, %v2582
      %v2638 = vsel %vm342, %v2526, %v2584
      %v2639 = vsel %vm342, %v2527, %v2586
      %v2640 = vsel %vm342, %v2528, %v2588
      %v2641 = vsel %vm342, %v2529, %v2590
      %v2642 = vsel %vm342, %v2530, %v2592
      %v2643 = vsel %vm342, %v2531, %v2594
      %v2644 = vpack.c.bf16 %v2565, %v2628
      %v2645 = vpack.c.bf16 %v2567, %v2629
      %v2646 = vpack.c.bf16 %v2569, %v2630
      %v2647 = vpack.c.bf16 %v2571, %v2631
      %v2648 = vpack.c.bf16 %v2573, %v2632
      %v2649 = vpack.c.bf16 %v2575, %v2633
      %v2650 = vpack.c.bf16 %v2577, %v2634
      %v2651 = vpack.c.bf16 %v2579, %v2635
      %v2652 = vpack.c.bf16 %v2581, %v2636
      %v2653 = vpack.c.bf16 %v2583, %v2637
      %v2654 = vpack.c.bf16 %v2585, %v2638
      %v2655 = vpack.c.bf16 %v2587, %v2639
      %v2656 = vpack.c.bf16 %v2589, %v2640
      %v2657 = vpack.c.bf16 %v2591, %v2641
      %v2658 = vpack.c.bf16 %v2593, %v2642
      %v2659 = vpack.c.bf16 %v2595, %v2643
      %v2660 = vpack.c.bf16 %v2499, %v2498
      %v2661 = vpack.c.bf16 %v2469, %v2468
      %v2662 = vpack.c.bf16 %v2471, %v2470
      %v2663 = vpack.c.bf16 %v2473, %v2472
      %v2664 = vpack.c.bf16 %v2475, %v2474
      %v2665 = vpack.c.bf16 %v2477, %v2476
      %v2666 = vpack.c.bf16 %v2479, %v2478
      %v2667 = vpack.c.bf16 %v2481, %v2480
      %v2668 = vpack.c.bf16 %v2483, %v2482
      %v2669 = vpack.c.bf16 %v2485, %v2484
      %v2670 = vpack.c.bf16 %v2487, %v2486
      %v2671 = vpack.c.bf16 %v2489, %v2488
      %v2672 = vpack.c.bf16 %v2491, %v2490
      %v2673 = vpack.c.bf16 %v2493, %v2492
      %v2674 = vpack.c.bf16 %v2495, %v2494
      %v2675 = vpack.c.bf16 %v2497, %v2496
      %v2677 = vsel %vm455, %v2660, 0
      %v2680 = vsel %vm455, %v2661, 0
      %v2683 = vsel %vm455, %v2662, 0
      %v2686 = vsel %vm455, %v2663, 0
      %v2689 = vsel %vm455, %v2664, 0
      %v2692 = vsel %vm455, %v2665, 0
      %v2695 = vsel %vm455, %v2666, 0
      %v2698 = vsel %vm455, %v2667, 0
      %v2701 = vsel %vm455, %v2668, 0
      %v2704 = vsel %vm455, %v2669, 0
      %v2707 = vsel %vm455, %v2670, 0
      %v2710 = vsel %vm455, %v2671, 0
      %v2713 = vsel %vm455, %v2672, 0
      %v2716 = vsel %vm455, %v2673, 0
      %v2719 = vsel %vm455, %v2674, 0
      %v2722 = vsel %vm455, %v2675, 0
      %v2725 = vsel %vm504, %v268, 0
      %2727 = vmatprep.subr.bf16.mxu0 0
      %2728 = vmatpush1.bf16.msra.mxu0 0
      %2729 = vmatprep.subr.bf16.mxu0 0
      %2730 = vmatpush1.bf16.msra.mxu0 0
      %2731 = vmatprep.subr.bf16.mxu0 0
      %2732 = vmatpush1.bf16.msra.mxu0 0
      %2733 = vmatprep.subr.bf16.mxu0 0
      %2734 = vmatpush1.bf16.msra.mxu0 0
      %2735 = vmatprep.subr.bf16.mxu0 0
      %2736 = vmatpush1.bf16.msra.mxu0 0
      %2737 = vmatprep.subr.bf16.mxu0 0
      %2738 = vmatpush1.bf16.msra.mxu0 0
      %2739 = vmatprep.subr.bf16.mxu0 0
      %2740 = vmatpush1.bf16.msra.mxu0 0
      %2741 = vmatprep.subr.bf16.mxu0 0
      %2742 = vmatpush1.bf16.msra.mxu0 %v2725
      %2743 = vmatprep.subr.bf16.mxu0 0
      %2744 = vmatpush2.bf16.msra.mxu0 0
      %2745 = vmatprep.subr.bf16.mxu0 0
      %2746 = vmatpush2.bf16.msra.mxu0 0
      %2747 = vmatprep.subr.bf16.mxu0 0
      %2748 = vmatpush2.bf16.msra.mxu0 0
      %2749 = vmatprep.subr.bf16.mxu0 0
      %2750 = vmatpush2.bf16.msra.mxu0 0
      %2751 = vmatprep.subr.bf16.mxu0 0
      %2752 = vmatpush2.bf16.msra.mxu0 0
      %2753 = vmatprep.subr.bf16.mxu0 0
      %2754 = vmatpush2.bf16.msra.mxu0 0
      %2755 = vmatprep.subr.bf16.mxu0 0
      %2756 = vmatpush2.bf16.msra.mxu0 0
      %2757 = vmatprep.subr.bf16.mxu0 0
      %2758 = vmatpush2.bf16.msra.mxu0 0
      %2759 = vmatprep.mubr.bf16.mxu0 0
      %2760 = vmatmul.mubr.bf16.gmra.mxu0 %v2677
      %v2761 = vpop.f32.mrf.mxu0
      %v2762 = vadd.f32 0.0, %v2761
      %v2763 = vpop.f32.mrf.mxu0
      %v2764 = vpop.f32.mrf.mxu0
      %v2765 = vadd.f32 0.0, %v2764
      %v2766 = vpop.f32.mrf.mxu0
      %2767 = vmatprep.mubr.bf16.mxu0 0
      %2768 = vmatmul.mubr.bf16.gmra.mxu0 %v2680
      %v2769 = vpop.f32.mrf.mxu0
      %v2770 = vadd.f32 0.0, %v2769
      %v2771 = vpop.f32.mrf.mxu0
      %v2772 = vpop.f32.mrf.mxu0
      %v2773 = vadd.f32 0.0, %v2772
      %v2774 = vpop.f32.mrf.mxu0
      %2775 = vmatprep.mubr.bf16.mxu0 0
      %2776 = vmatmul.mubr.bf16.gmra.mxu0 %v2683
      %v2777 = vpop.f32.mrf.mxu0
      %v2778 = vadd.f32 0.0, %v2777
      %v2779 = vpop.f32.mrf.mxu0
      %v2780 = vpop.f32.mrf.mxu0
      %v2781 = vadd.f32 0.0, %v2780
      %v2782 = vpop.f32.mrf.mxu0
      %2783 = vmatprep.mubr.bf16.mxu0 0
      %2784 = vmatmul.mubr.bf16.gmra.mxu0 %v2686
      %v2785 = vpop.f32.mrf.mxu0
      %v2786 = vadd.f32 0.0, %v2785
      %v2787 = vpop.f32.mrf.mxu0
      %v2788 = vpop.f32.mrf.mxu0
      %v2789 = vadd.f32 0.0, %v2788
      %v2790 = vpop.f32.mrf.mxu0
      %2791 = vmatprep.mubr.bf16.mxu0 0
      %2792 = vmatmul.mubr.bf16.gmra.mxu0 %v2689
      %v2793 = vpop.f32.mrf.mxu0
      %v2794 = vadd.f32 0.0, %v2793
      %v2795 = vpop.f32.mrf.mxu0
      %v2796 = vpop.f32.mrf.mxu0
      %v2797 = vadd.f32 0.0, %v2796
      %v2798 = vpop.f32.mrf.mxu0
      %2799 = vmatprep.mubr.bf16.mxu0 0
      %2800 = vmatmul.mubr.bf16.gmra.mxu0 %v2692
      %v2801 = vpop.f32.mrf.mxu0
      %v2802 = vadd.f32 0.0, %v2801
      %v2803 = vpop.f32.mrf.mxu0
      %v2804 = vpop.f32.mrf.mxu0
      %v2805 = vadd.f32 0.0, %v2804
      %v2806 = vpop.f32.mrf.mxu0
      %2807 = vmatprep.mubr.bf16.mxu0 0
      %2808 = vmatmul.mubr.bf16.gmra.mxu0 %v2695
      %v2809 = vpop.f32.mrf.mxu0
      %v2810 = vadd.f32 0.0, %v2809
      %v2811 = vpop.f32.mrf.mxu0
      %v2812 = vpop.f32.mrf.mxu0
      %v2813 = vadd.f32 0.0, %v2812
      %v2814 = vpop.f32.mrf.mxu0
      %2815 = vmatprep.mubr.bf16.mxu0 0
      %2816 = vmatmul.mubr.bf16.gmra.mxu0 %v2698
      %v2817 = vpop.f32.mrf.mxu0
      %v2818 = vadd.f32 0.0, %v2817
      %v2819 = vpop.f32.mrf.mxu0
      %v2820 = vpop.f32.mrf.mxu0
      %v2821 = vadd.f32 0.0, %v2820
      %v2822 = vpop.f32.mrf.mxu0
      %2823 = vmatprep.mubr.bf16.mxu0 0
      %2824 = vmatmul.mubr.bf16.gmra.mxu0 %v2701
      %v2825 = vpop.f32.mrf.mxu0
      %v2826 = vadd.f32 0.0, %v2825
      %v2827 = vpop.f32.mrf.mxu0
      %v2828 = vpop.f32.mrf.mxu0
      %v2829 = vadd.f32 0.0, %v2828
      %v2830 = vpop.f32.mrf.mxu0
      %2831 = vmatprep.mubr.bf16.mxu0 0
      %2832 = vmatmul.mubr.bf16.gmra.mxu0 %v2704
      %v2833 = vpop.f32.mrf.mxu0
      %v2834 = vadd.f32 0.0, %v2833
      %v2835 = vpop.f32.mrf.mxu0
      %v2836 = vpop.f32.mrf.mxu0
      %v2837 = vadd.f32 0.0, %v2836
      %v2838 = vpop.f32.mrf.mxu0
      %2839 = vmatprep.mubr.bf16.mxu0 0
      %2840 = vmatmul.mubr.bf16.gmra.mxu0 %v2707
      %v2841 = vpop.f32.mrf.mxu0
      %v2842 = vadd.f32 0.0, %v2841
      %v2843 = vpop.f32.mrf.mxu0
      %v2844 = vpop.f32.mrf.mxu0
      %v2845 = vadd.f32 0.0, %v2844
      %v2846 = vpop.f32.mrf.mxu0
      %2847 = vmatprep.mubr.bf16.mxu0 0
      %2848 = vmatmul.mubr.bf16.gmra.mxu0 %v2710
      %v2849 = vpop.f32.mrf.mxu0
      %v2850 = vadd.f32 0.0, %v2849
      %v2851 = vpop.f32.mrf.mxu0
      %v2852 = vpop.f32.mrf.mxu0
      %v2853 = vadd.f32 0.0, %v2852
      %v2854 = vpop.f32.mrf.mxu0
      %2855 = vmatprep.mubr.bf16.mxu0 0
      %2856 = vmatmul.mubr.bf16.gmra.mxu0 %v2713
      %v2857 = vpop.f32.mrf.mxu0
      %v2858 = vadd.f32 0.0, %v2857
      %v2859 = vpop.f32.mrf.mxu0
      %v2860 = vpop.f32.mrf.mxu0
      %v2861 = vadd.f32 0.0, %v2860
      %v2862 = vpop.f32.mrf.mxu0
      %2863 = vmatprep.mubr.bf16.mxu0 0
      %2864 = vmatmul.mubr.bf16.gmra.mxu0 %v2716
      %v2865 = vpop.f32.mrf.mxu0
      %v2866 = vadd.f32 0.0, %v2865
      %v2867 = vpop.f32.mrf.mxu0
      %v2868 = vpop.f32.mrf.mxu0
      %v2869 = vadd.f32 0.0, %v2868
      %v2870 = vpop.f32.mrf.mxu0
      %2871 = vmatprep.mubr.bf16.mxu0 0
      %2872 = vmatmul.mubr.bf16.gmra.mxu0 %v2719
      %v2873 = vpop.f32.mrf.mxu0
      %v2874 = vadd.f32 0.0, %v2873
      %v2875 = vpop.f32.mrf.mxu0
      %v2876 = vpop.f32.mrf.mxu0
      %v2877 = vadd.f32 0.0, %v2876
      %v2878 = vpop.f32.mrf.mxu0
      %2879 = vmatprep.mubr.bf16.mxu0 0
      %2880 = vmatmul.mubr.bf16.gmra.mxu0 %v2722
      %v2881 = vpop.f32.mrf.mxu0
      %v2882 = vadd.f32 0.0, %v2881
      %v2883 = vpop.f32.mrf.mxu0
      %v2884 = vpop.f32.mrf.mxu0
      %v2885 = vadd.f32 0.0, %v2884
      %v2886 = vpop.f32.mrf.mxu0
      %2887 = vdwg.mxu0
      %v2889 = vsel %vm455, %v2644, 0
      %v2892 = vsel %vm455, %v2645, 0
      %v2895 = vsel %vm455, %v2646, 0
      %v2898 = vsel %vm455, %v2647, 0
      %v2901 = vsel %vm455, %v2648, 0
      %v2904 = vsel %vm455, %v2649, 0
      %v2907 = vsel %vm455, %v2650, 0
      %v2910 = vsel %vm455, %v2651, 0
      %v2913 = vsel %vm455, %v2652, 0
      %v2916 = vsel %vm455, %v2653, 0
      %v2919 = vsel %vm455, %v2654, 0
      %v2922 = vsel %vm455, %v2655, 0
      %v2925 = vsel %vm455, %v2656, 0
      %v2928 = vsel %vm455, %v2657, 0
      %v2931 = vsel %vm455, %v2658, 0
      %v2934 = vsel %vm455, %v2659, 0
      %v2937 = vsel %vm504, %v267, 0
      %2939 = vmatprep.subr.bf16.mxu0 0
      %2940 = vmatpush1.bf16.msra.mxu0 0
      %2941 = vmatprep.subr.bf16.mxu0 0
      %2942 = vmatpush1.bf16.msra.mxu0 0
      %2943 = vmatprep.subr.bf16.mxu0 0
      %2944 = vmatpush1.bf16.msra.mxu0 0
      %2945 = vmatprep.subr.bf16.mxu0 0
      %2946 = vmatpush1.bf16.msra.mxu0 0
      %2947 = vmatprep.subr.bf16.mxu0 0
      %2948 = vmatpush1.bf16.msra.mxu0 0
      %2949 = vmatprep.subr.bf16.mxu0 0
      %2950 = vmatpush1.bf16.msra.mxu0 0
      %2951 = vmatprep.subr.bf16.mxu0 0
      %2952 = vmatpush1.bf16.msra.mxu0 0
      %2953 = vmatprep.subr.bf16.mxu0 0
      %2954 = vmatpush1.bf16.msra.mxu0 %v2937
      %2955 = vmatprep.subr.bf16.mxu0 0
      %2956 = vmatpush2.bf16.msra.mxu0 0
      %2957 = vmatprep.subr.bf16.mxu0 0
      %2958 = vmatpush2.bf16.msra.mxu0 0
      %2959 = vmatprep.subr.bf16.mxu0 0
      %2960 = vmatpush2.bf16.msra.mxu0 0
      %2961 = vmatprep.subr.bf16.mxu0 0
      %2962 = vmatpush2.bf16.msra.mxu0 0
      %2963 = vmatprep.subr.bf16.mxu0 0
      %2964 = vmatpush2.bf16.msra.mxu0 0
      %2965 = vmatprep.subr.bf16.mxu0 0
      %2966 = vmatpush2.bf16.msra.mxu0 0
      %2967 = vmatprep.subr.bf16.mxu0 0
      %2968 = vmatpush2.bf16.msra.mxu0 0
      %2969 = vmatprep.subr.bf16.mxu0 0
      %2970 = vmatpush2.bf16.msra.mxu0 0
      %2971 = vmatprep.mubr.bf16.mxu0 0
      %2972 = vmatmul.mubr.bf16.gmra.mxu0 %v2889
      %v2973 = vpop.f32.mrf.mxu0
      %v2974 = vadd.f32 %v2762, %v2973
      %v2975 = vpop.f32.mrf.mxu0
      %v2976 = vpop.f32.mrf.mxu0
      %v2977 = vadd.f32 %v2765, %v2976
      %v2978 = vpop.f32.mrf.mxu0
      %2979 = vmatprep.mubr.bf16.mxu0 0
      %2980 = vmatmul.mubr.bf16.gmra.mxu0 %v2892
      %v2981 = vpop.f32.mrf.mxu0
      %v2982 = vadd.f32 %v2770, %v2981
      %v2983 = vpop.f32.mrf.mxu0
      %v2984 = vpop.f32.mrf.mxu0
      %v2985 = vadd.f32 %v2773, %v2984
      %v2986 = vpop.f32.mrf.mxu0
      %2987 = vmatprep.mubr.bf16.mxu0 0
      %2988 = vmatmul.mubr.bf16.gmra.mxu0 %v2895
      %v2989 = vpop.f32.mrf.mxu0
      %v2990 = vadd.f32 %v2778, %v2989
      %v2991 = vpop.f32.mrf.mxu0
      %v2992 = vpop.f32.mrf.mxu0
      %v2993 = vadd.f32 %v2781, %v2992
      %v2994 = vpop.f32.mrf.mxu0
      %2995 = vmatprep.mubr.bf16.mxu0 0
      %2996 = vmatmul.mubr.bf16.gmra.mxu0 %v2898
      %v2997 = vpop.f32.mrf.mxu0
      %v2998 = vadd.f32 %v2786, %v2997
      %v2999 = vpop.f32.mrf.mxu0
      %v3000 = vpop.f32.mrf.mxu0
      %v3001 = vadd.f32 %v2789, %v3000
      %v3002 = vpop.f32.mrf.mxu0
      %3003 = vmatprep.mubr.bf16.mxu0 0
      %3004 = vmatmul.mubr.bf16.gmra.mxu0 %v2901
      %v3005 = vpop.f32.mrf.mxu0
      %v3006 = vadd.f32 %v2794, %v3005
      %v3007 = vpop.f32.mrf.mxu0
      %v3008 = vpop.f32.mrf.mxu0
      %v3009 = vadd.f32 %v2797, %v3008
      %v3010 = vpop.f32.mrf.mxu0
      %3011 = vmatprep.mubr.bf16.mxu0 0
      %3012 = vmatmul.mubr.bf16.gmra.mxu0 %v2904
      %v3013 = vpop.f32.mrf.mxu0
      %v3014 = vadd.f32 %v2802, %v3013
      %v3015 = vpop.f32.mrf.mxu0
      %v3016 = vpop.f32.mrf.mxu0
      %v3017 = vadd.f32 %v2805, %v3016
      %v3018 = vpop.f32.mrf.mxu0
      %3019 = vmatprep.mubr.bf16.mxu0 0
      %3020 = vmatmul.mubr.bf16.gmra.mxu0 %v2907
      %v3021 = vpop.f32.mrf.mxu0
      %v3022 = vadd.f32 %v2810, %v3021
      %v3023 = vpop.f32.mrf.mxu0
      %v3024 = vpop.f32.mrf.mxu0
      %v3025 = vadd.f32 %v2813, %v3024
      %v3026 = vpop.f32.mrf.mxu0
      %3027 = vmatprep.mubr.bf16.mxu0 0
      %3028 = vmatmul.mubr.bf16.gmra.mxu0 %v2910
      %v3029 = vpop.f32.mrf.mxu0
      %v3030 = vadd.f32 %v2818, %v3029
      %v3031 = vpop.f32.mrf.mxu0
      %v3032 = vpop.f32.mrf.mxu0
      %v3033 = vadd.f32 %v2821, %v3032
      %v3034 = vpop.f32.mrf.mxu0
      %3035 = vmatprep.mubr.bf16.mxu0 0
      %3036 = vmatmul.mubr.bf16.gmra.mxu0 %v2913
      %v3037 = vpop.f32.mrf.mxu0
      %v3038 = vadd.f32 %v2826, %v3037
      %v3039 = vpop.f32.mrf.mxu0
      %v3040 = vpop.f32.mrf.mxu0
      %v3041 = vadd.f32 %v2829, %v3040
      %v3042 = vpop.f32.mrf.mxu0
      %3043 = vmatprep.mubr.bf16.mxu0 0
      %3044 = vmatmul.mubr.bf16.gmra.mxu0 %v2916
      %v3045 = vpop.f32.mrf.mxu0
      %v3046 = vadd.f32 %v2834, %v3045
      %v3047 = vpop.f32.mrf.mxu0
      %v3048 = vpop.f32.mrf.mxu0
      %v3049 = vadd.f32 %v2837, %v3048
      %v3050 = vpop.f32.mrf.mxu0
      %3051 = vmatprep.mubr.bf16.mxu0 0
      %3052 = vmatmul.mubr.bf16.gmra.mxu0 %v2919
      %v3053 = vpop.f32.mrf.mxu0
      %v3054 = vadd.f32 %v2842, %v3053
      %v3055 = vpop.f32.mrf.mxu0
      %v3056 = vpop.f32.mrf.mxu0
      %v3057 = vadd.f32 %v2845, %v3056
      %v3058 = vpop.f32.mrf.mxu0
      %3059 = vmatprep.mubr.bf16.mxu0 0
      %3060 = vmatmul.mubr.bf16.gmra.mxu0 %v2922
      %v3061 = vpop.f32.mrf.mxu0
      %v3062 = vadd.f32 %v2850, %v3061
      %v3063 = vpop.f32.mrf.mxu0
      %v3064 = vpop.f32.mrf.mxu0
      %v3065 = vadd.f32 %v2853, %v3064
      %v3066 = vpop.f32.mrf.mxu0
      %3067 = vmatprep.mubr.bf16.mxu0 0
      %3068 = vmatmul.mubr.bf16.gmra.mxu0 %v2925
      %v3069 = vpop.f32.mrf.mxu0
      %v3070 = vadd.f32 %v2858, %v3069
      %v3071 = vpop.f32.mrf.mxu0
      %v3072 = vpop.f32.mrf.mxu0
      %v3073 = vadd.f32 %v2861, %v3072
      %v3074 = vpop.f32.mrf.mxu0
      %3075 = vmatprep.mubr.bf16.mxu0 0
      %3076 = vmatmul.mubr.bf16.gmra.mxu0 %v2928
      %v3077 = vpop.f32.mrf.mxu0
      %v3078 = vadd.f32 %v2866, %v3077
      %v3079 = vpop.f32.mrf.mxu0
      %v3080 = vpop.f32.mrf.mxu0
      %v3081 = vadd.f32 %v2869, %v3080
      %v3082 = vpop.f32.mrf.mxu0
      %3083 = vmatprep.mubr.bf16.mxu0 0
      %3084 = vmatmul.mubr.bf16.gmra.mxu0 %v2931
      %v3085 = vpop.f32.mrf.mxu0
      %v3086 = vadd.f32 %v2874, %v3085
      %v3087 = vpop.f32.mrf.mxu0
      %v3088 = vpop.f32.mrf.mxu0
      %v3089 = vadd.f32 %v2877, %v3088
      %v3090 = vpop.f32.mrf.mxu0
      %3091 = vmatprep.mubr.bf16.mxu0 0
      %3092 = vmatmul.mubr.bf16.gmra.mxu0 %v2934
      %v3093 = vpop.f32.mrf.mxu0
      %v3094 = vadd.f32 %v2882, %v3093
      %v3095 = vpop.f32.mrf.mxu0
      %v3096 = vpop.f32.mrf.mxu0
      %v3097 = vadd.f32 %v2885, %v3096
      %v3098 = vpop.f32.mrf.mxu0
      %3099 = vdwg.mxu0
      %v3100 = vrot.slane %v2498, 1
      %v3101 = vrot.slane %v2499, 1
      %v3102 = vsel %vm881, %v3100, %v3101
      %v3103 = vrot.slane %v2468, 1
      %v3104 = vrot.slane %v2469, 1
      %v3105 = vsel %vm881, %v3103, %v3104
      %v3106 = vrot.slane %v2470, 1
      %v3107 = vrot.slane %v2471, 1
      %v3108 = vsel %vm881, %v3106, %v3107
      %v3109 = vrot.slane %v2472, 1
      %v3110 = vrot.slane %v2473, 1
      %v3111 = vsel %vm881, %v3109, %v3110
      %v3112 = vrot.slane %v2474, 1
      %v3113 = vrot.slane %v2475, 1
      %v3114 = vsel %vm881, %v3112, %v3113
      %v3115 = vrot.slane %v2476, 1
      %v3116 = vrot.slane %v2477, 1
      %v3117 = vsel %vm881, %v3115, %v3116
      %v3118 = vrot.slane %v2478, 1
      %v3119 = vrot.slane %v2479, 1
      %v3120 = vsel %vm881, %v3118, %v3119
      %v3121 = vrot.slane %v2480, 1
      %v3122 = vrot.slane %v2481, 1
      %v3123 = vsel %vm881, %v3121, %v3122
      %v3124 = vrot.slane %v2482, 1
      %v3125 = vrot.slane %v2483, 1
      %v3126 = vsel %vm881, %v3124, %v3125
      %v3127 = vrot.slane %v2484, 1
      %v3128 = vrot.slane %v2485, 1
      %v3129 = vsel %vm881, %v3127, %v3128
      %v3130 = vrot.slane %v2486, 1
      %v3131 = vrot.slane %v2487, 1
      %v3132 = vsel %vm881, %v3130, %v3131
      %v3133 = vrot.slane %v2488, 1
      %v3134 = vrot.slane %v2489, 1
      %v3135 = vsel %vm881, %v3133, %v3134
      %v3136 = vrot.slane %v2490, 1
      %v3137 = vrot.slane %v2491, 1
      %v3138 = vsel %vm881, %v3136, %v3137
      %v3139 = vrot.slane %v2492, 1
      %v3140 = vrot.slane %v2493, 1
      %v3141 = vsel %vm881, %v3139, %v3140
      %v3142 = vrot.slane %v2494, 1
      %v3143 = vrot.slane %v2495, 1
      %v3144 = vsel %vm881, %v3142, %v3143
      %v3145 = vrot.slane %v2496, 1
      %v3146 = vrot.slane %v2497, 1
      %v3147 = vsel %vm881, %v3145, %v3146
      %v3196 = vsel %vm881, %v3101, %v3100
      %v3197 = vsel %vm881, %v3104, %v3103
      %v3198 = vsel %vm881, %v3107, %v3106
      %v3199 = vsel %vm881, %v3110, %v3109
      %v3200 = vsel %vm881, %v3113, %v3112
      %v3201 = vsel %vm881, %v3116, %v3115
      %v3202 = vsel %vm881, %v3119, %v3118
      %v3203 = vsel %vm881, %v3122, %v3121
      %v3204 = vsel %vm881, %v3125, %v3124
      %v3205 = vsel %vm881, %v3128, %v3127
      %v3206 = vsel %vm881, %v3131, %v3130
      %v3207 = vsel %vm881, %v3134, %v3133
      %v3208 = vsel %vm881, %v3137, %v3136
      %v3209 = vsel %vm881, %v3140, %v3139
      %v3210 = vsel %vm881, %v3143, %v3142
      %v3211 = vsel %vm881, %v3146, %v3145
      %v3212 = vpack.c.bf16 %v3196, %v3102
      %v3213 = vpack.c.bf16 %v3197, %v3105
      %v3214 = vpack.c.bf16 %v3198, %v3108
      %v3215 = vpack.c.bf16 %v3199, %v3111
      %v3216 = vpack.c.bf16 %v3200, %v3114
      %v3217 = vpack.c.bf16 %v3201, %v3117
      %v3218 = vpack.c.bf16 %v3202, %v3120
      %v3219 = vpack.c.bf16 %v3203, %v3123
      %v3220 = vpack.c.bf16 %v3204, %v3126
      %v3221 = vpack.c.bf16 %v3205, %v3129
      %v3222 = vpack.c.bf16 %v3206, %v3132
      %v3223 = vpack.c.bf16 %v3207, %v3135
      %v3224 = vpack.c.bf16 %v3208, %v3138
      %v3225 = vpack.c.bf16 %v3209, %v3141
      %v3226 = vpack.c.bf16 %v3210, %v3144
      %v3227 = vpack.c.bf16 %v3211, %v3147
      %v3229 = vsel %vm455, %v3212, 0
      %v3232 = vsel %vm455, %v3213, 0
      %v3235 = vsel %vm455, %v3214, 0
      %v3238 = vsel %vm455, %v3215, 0
      %v3241 = vsel %vm455, %v3216, 0
      %v3244 = vsel %vm455, %v3217, 0
      %v3247 = vsel %vm455, %v3218, 0
      %v3250 = vsel %vm455, %v3219, 0
      %v3253 = vsel %vm455, %v3220, 0
      %v3256 = vsel %vm455, %v3221, 0
      %v3259 = vsel %vm455, %v3222, 0
      %v3262 = vsel %vm455, %v3223, 0
      %v3265 = vsel %vm455, %v3224, 0
      %v3268 = vsel %vm455, %v3225, 0
      %v3271 = vsel %vm455, %v3226, 0
      %v3274 = vsel %vm455, %v3227, 0
      %v3277 = vsel %vm504, %v269, 0
      %3279 = vmatprep.subr.bf16.mxu0 0
      %3280 = vmatpush1.bf16.msra.mxu0 0
      %3281 = vmatprep.subr.bf16.mxu0 0
      %3282 = vmatpush1.bf16.msra.mxu0 0
      %3283 = vmatprep.subr.bf16.mxu0 0
      %3284 = vmatpush1.bf16.msra.mxu0 0
      %3285 = vmatprep.subr.bf16.mxu0 0
      %3286 = vmatpush1.bf16.msra.mxu0 0
      %3287 = vmatprep.subr.bf16.mxu0 0
      %3288 = vmatpush1.bf16.msra.mxu0 0
      %3289 = vmatprep.subr.bf16.mxu0 0
      %3290 = vmatpush1.bf16.msra.mxu0 0
      %3291 = vmatprep.subr.bf16.mxu0 0
      %3292 = vmatpush1.bf16.msra.mxu0 0
      %3293 = vmatprep.subr.bf16.mxu0 0
      %3294 = vmatpush1.bf16.msra.mxu0 %v3277
      %3295 = vmatprep.subr.bf16.mxu0 0
      %3296 = vmatpush2.bf16.msra.mxu0 0
      %3297 = vmatprep.subr.bf16.mxu0 0
      %3298 = vmatpush2.bf16.msra.mxu0 0
      %3299 = vmatprep.subr.bf16.mxu0 0
      %3300 = vmatpush2.bf16.msra.mxu0 0
      %3301 = vmatprep.subr.bf16.mxu0 0
      %3302 = vmatpush2.bf16.msra.mxu0 0
      %3303 = vmatprep.subr.bf16.mxu0 0
      %3304 = vmatpush2.bf16.msra.mxu0 0
      %3305 = vmatprep.subr.bf16.mxu0 0
      %3306 = vmatpush2.bf16.msra.mxu0 0
      %3307 = vmatprep.subr.bf16.mxu0 0
      %3308 = vmatpush2.bf16.msra.mxu0 0
      %3309 = vmatprep.subr.bf16.mxu0 0
      %3310 = vmatpush2.bf16.msra.mxu0 0
      %3311 = vmatprep.mubr.bf16.mxu0 0
      %3312 = vmatmul.mubr.bf16.gmra.mxu0 %v3229
      %v3313 = vpop.f32.mrf.mxu0
      %v3314 = vadd.f32 0.0, %v3313
      %v3315 = vpop.f32.mrf.mxu0
      %v3316 = vpop.f32.mrf.mxu0
      %v3317 = vadd.f32 0.0, %v3316
      %v3318 = vpop.f32.mrf.mxu0
      %3319 = vmatprep.mubr.bf16.mxu0 0
      %3320 = vmatmul.mubr.bf16.gmra.mxu0 %v3232
      %v3321 = vpop.f32.mrf.mxu0
      %v3322 = vadd.f32 0.0, %v3321
      %v3323 = vpop.f32.mrf.mxu0
      %v3324 = vpop.f32.mrf.mxu0
      %v3325 = vadd.f32 0.0, %v3324
      %v3326 = vpop.f32.mrf.mxu0
      %3327 = vmatprep.mubr.bf16.mxu0 0
      %3328 = vmatmul.mubr.bf16.gmra.mxu0 %v3235
      %v3329 = vpop.f32.mrf.mxu0
      %v3330 = vadd.f32 0.0, %v3329
      %v3331 = vpop.f32.mrf.mxu0
      %v3332 = vpop.f32.mrf.mxu0
      %v3333 = vadd.f32 0.0, %v3332
      %v3334 = vpop.f32.mrf.mxu0
      %3335 = vmatprep.mubr.bf16.mxu0 0
      %3336 = vmatmul.mubr.bf16.gmra.mxu0 %v3238
      %v3337 = vpop.f32.mrf.mxu0
      %v3338 = vadd.f32 0.0, %v3337
      %v3339 = vpop.f32.mrf.mxu0
      %v3340 = vpop.f32.mrf.mxu0
      %v3341 = vadd.f32 0.0, %v3340
      %v3342 = vpop.f32.mrf.mxu0
      %3343 = vmatprep.mubr.bf16.mxu0 0
      %3344 = vmatmul.mubr.bf16.gmra.mxu0 %v3241
      %v3345 = vpop.f32.mrf.mxu0
      %v3346 = vadd.f32 0.0, %v3345
      %v3347 = vpop.f32.mrf.mxu0
      %v3348 = vpop.f32.mrf.mxu0
      %v3349 = vadd.f32 0.0, %v3348
      %v3350 = vpop.f32.mrf.mxu0
      %3351 = vmatprep.mubr.bf16.mxu0 0
      %3352 = vmatmul.mubr.bf16.gmra.mxu0 %v3244
      %v3353 = vpop.f32.mrf.mxu0
      %v3354 = vadd.f32 0.0, %v3353
      %v3355 = vpop.f32.mrf.mxu0
      %v3356 = vpop.f32.mrf.mxu0
      %v3357 = vadd.f32 0.0, %v3356
      %v3358 = vpop.f32.mrf.mxu0
      %3359 = vmatprep.mubr.bf16.mxu0 0
      %3360 = vmatmul.mubr.bf16.gmra.mxu0 %v3247
      %v3361 = vpop.f32.mrf.mxu0
      %v3362 = vadd.f32 0.0, %v3361
      %v3363 = vpop.f32.mrf.mxu0
      %v3364 = vpop.f32.mrf.mxu0
      %v3365 = vadd.f32 0.0, %v3364
      %v3366 = vpop.f32.mrf.mxu0
      %3367 = vmatprep.mubr.bf16.mxu0 0
      %3368 = vmatmul.mubr.bf16.gmra.mxu0 %v3250
      %v3369 = vpop.f32.mrf.mxu0
      %v3370 = vadd.f32 0.0, %v3369
      %v3371 = vpop.f32.mrf.mxu0
      %v3372 = vpop.f32.mrf.mxu0
      %v3373 = vadd.f32 0.0, %v3372
      %v3374 = vpop.f32.mrf.mxu0
      %3375 = vmatprep.mubr.bf16.mxu0 0
      %3376 = vmatmul.mubr.bf16.gmra.mxu0 %v3253
      %v3377 = vpop.f32.mrf.mxu0
      %v3378 = vadd.f32 0.0, %v3377
      %v3379 = vpop.f32.mrf.mxu0
      %v3380 = vpop.f32.mrf.mxu0
      %v3381 = vadd.f32 0.0, %v3380
      %v3382 = vpop.f32.mrf.mxu0
      %3383 = vmatprep.mubr.bf16.mxu0 0
      %3384 = vmatmul.mubr.bf16.gmra.mxu0 %v3256
      %v3385 = vpop.f32.mrf.mxu0
      %v3386 = vadd.f32 0.0, %v3385
      %v3387 = vpop.f32.mrf.mxu0
      %v3388 = vpop.f32.mrf.mxu0
      %v3389 = vadd.f32 0.0, %v3388
      %v3390 = vpop.f32.mrf.mxu0
      %3391 = vmatprep.mubr.bf16.mxu0 0
      %3392 = vmatmul.mubr.bf16.gmra.mxu0 %v3259
      %v3393 = vpop.f32.mrf.mxu0
      %v3394 = vadd.f32 0.0, %v3393
      %v3395 = vpop.f32.mrf.mxu0
      %v3396 = vpop.f32.mrf.mxu0
      %v3397 = vadd.f32 0.0, %v3396
      %v3398 = vpop.f32.mrf.mxu0
      %3399 = vmatprep.mubr.bf16.mxu0 0
      %3400 = vmatmul.mubr.bf16.gmra.mxu0 %v3262
      %v3401 = vpop.f32.mrf.mxu0
      %v3402 = vadd.f32 0.0, %v3401
      %v3403 = vpop.f32.mrf.mxu0
      %v3404 = vpop.f32.mrf.mxu0
      %v3405 = vadd.f32 0.0, %v3404
      %v3406 = vpop.f32.mrf.mxu0
      %3407 = vmatprep.mubr.bf16.mxu0 0
      %3408 = vmatmul.mubr.bf16.gmra.mxu0 %v3265
      %v3409 = vpop.f32.mrf.mxu0
      %v3410 = vadd.f32 0.0, %v3409
      %v3411 = vpop.f32.mrf.mxu0
      %v3412 = vpop.f32.mrf.mxu0
      %v3413 = vadd.f32 0.0, %v3412
      %v3414 = vpop.f32.mrf.mxu0
      %3415 = vmatprep.mubr.bf16.mxu0 0
      %3416 = vmatmul.mubr.bf16.gmra.mxu0 %v3268
      %v3417 = vpop.f32.mrf.mxu0
      %v3418 = vadd.f32 0.0, %v3417
      %v3419 = vpop.f32.mrf.mxu0
      %v3420 = vpop.f32.mrf.mxu0
      %v3421 = vadd.f32 0.0, %v3420
      %v3422 = vpop.f32.mrf.mxu0
      %3423 = vmatprep.mubr.bf16.mxu0 0
      %3424 = vmatmul.mubr.bf16.gmra.mxu0 %v3271
      %v3425 = vpop.f32.mrf.mxu0
      %v3426 = vadd.f32 0.0, %v3425
      %v3427 = vpop.f32.mrf.mxu0
      %v3428 = vpop.f32.mrf.mxu0
      %v3429 = vadd.f32 0.0, %v3428
      %v3430 = vpop.f32.mrf.mxu0
      %3431 = vmatprep.mubr.bf16.mxu0 0
      %3432 = vmatmul.mubr.bf16.gmra.mxu0 %v3274
      %v3433 = vpop.f32.mrf.mxu0
      %v3434 = vadd.f32 0.0, %v3433
      %v3435 = vpop.f32.mrf.mxu0
      %v3436 = vpop.f32.mrf.mxu0
      %v3437 = vadd.f32 0.0, %v3436
      %v3438 = vpop.f32.mrf.mxu0
      %3439 = vdwg.mxu0
      %v3440 = vadd.f32 %v2974, %v3314
      %v3441 = vadd.f32 %v2977, %v3317
      %v3442 = vadd.f32 %v2982, %v3322
      %v3443 = vadd.f32 %v2985, %v3325
      %v3444 = vadd.f32 %v2990, %v3330
      %v3445 = vadd.f32 %v2993, %v3333
      %v3446 = vadd.f32 %v2998, %v3338
      %v3447 = vadd.f32 %v3001, %v3341
      %v3448 = vadd.f32 %v3006, %v3346
      %v3449 = vadd.f32 %v3009, %v3349
      %v3450 = vadd.f32 %v3014, %v3354
      %v3451 = vadd.f32 %v3017, %v3357
      %v3452 = vadd.f32 %v3022, %v3362
      %v3453 = vadd.f32 %v3025, %v3365
      %v3454 = vadd.f32 %v3030, %v3370
      %v3455 = vadd.f32 %v3033, %v3373
      %v3456 = vadd.f32 %v3038, %v3378
      %v3457 = vadd.f32 %v3041, %v3381
      %v3458 = vadd.f32 %v3046, %v3386
      %v3459 = vadd.f32 %v3049, %v3389
      %v3460 = vadd.f32 %v3054, %v3394
      %v3461 = vadd.f32 %v3057, %v3397
      %v3462 = vadd.f32 %v3062, %v3402
      %v3463 = vadd.f32 %v3065, %v3405
      %v3464 = vadd.f32 %v3070, %v3410
      %v3465 = vadd.f32 %v3073, %v3413
      %v3466 = vadd.f32 %v3078, %v3418
      %v3467 = vadd.f32 %v3081, %v3421
      %v3468 = vadd.f32 %v3086, %v3426
      %v3469 = vadd.f32 %v3089, %v3429
      %v3470 = vadd.f32 %v3094, %v3434
      %v3471 = vadd.f32 %v3097, %v3437
      %v3473 = vsel %vm504, %v270, 0
      %3475 = vmatprep.subr.bf16.mxu0 0
      %3476 = vmatpush1.bf16.msra.mxu0 0
      %3477 = vmatprep.subr.bf16.mxu0 0
      %3478 = vmatpush1.bf16.msra.mxu0 0
      %3479 = vmatprep.subr.bf16.mxu0 0
      %3480 = vmatpush1.bf16.msra.mxu0 0
      %3481 = vmatprep.subr.bf16.mxu0 0
      %3482 = vmatpush1.bf16.msra.mxu0 0
      %3483 = vmatprep.subr.bf16.mxu0 0
      %3484 = vmatpush1.bf16.msra.mxu0 0
      %3485 = vmatprep.subr.bf16.mxu0 0
      %3486 = vmatpush1.bf16.msra.mxu0 0
      %3487 = vmatprep.subr.bf16.mxu0 0
      %3488 = vmatpush1.bf16.msra.mxu0 0
      %3489 = vmatprep.subr.bf16.mxu0 0
      %3490 = vmatpush1.bf16.msra.mxu0 %v3473
      %3491 = vmatprep.subr.bf16.mxu0 0
      %3492 = vmatpush2.bf16.msra.mxu0 0
      %3493 = vmatprep.subr.bf16.mxu0 0
      %3494 = vmatpush2.bf16.msra.mxu0 0
      %3495 = vmatprep.subr.bf16.mxu0 0
      %3496 = vmatpush2.bf16.msra.mxu0 0
      %3497 = vmatprep.subr.bf16.mxu0 0
      %3498 = vmatpush2.bf16.msra.mxu0 0
      %3499 = vmatprep.subr.bf16.mxu0 0
      %3500 = vmatpush2.bf16.msra.mxu0 0
      %3501 = vmatprep.subr.bf16.mxu0 0
      %3502 = vmatpush2.bf16.msra.mxu0 0
      %3503 = vmatprep.subr.bf16.mxu0 0
      %3504 = vmatpush2.bf16.msra.mxu0 0
      %3505 = vmatprep.subr.bf16.mxu0 0
      %3506 = vmatpush2.bf16.msra.mxu0 0
      %3507 = vmatprep.mubr.bf16.mxu0 0
      %3508 = vmatmul.mubr.bf16.gmra.mxu0 %v2892
      %v3509 = vpop.f32.mrf.mxu0
      %v3510 = vadd.f32 0.0, %v3509
      %v3511 = vpop.f32.mrf.mxu0
      %v3512 = vpop.f32.mrf.mxu0
      %v3513 = vadd.f32 0.0, %v3512
      %v3514 = vpop.f32.mrf.mxu0
      %3515 = vmatprep.mubr.bf16.mxu0 0
      %3516 = vmatmul.mubr.bf16.gmra.mxu0 %v2895
      %v3517 = vpop.f32.mrf.mxu0
      %v3518 = vadd.f32 0.0, %v3517
      %v3519 = vpop.f32.mrf.mxu0
      %v3520 = vpop.f32.mrf.mxu0
      %v3521 = vadd.f32 0.0, %v3520
      %v3522 = vpop.f32.mrf.mxu0
      %3523 = vmatprep.mubr.bf16.mxu0 0
      %3524 = vmatmul.mubr.bf16.gmra.mxu0 %v2898
      %v3525 = vpop.f32.mrf.mxu0
      %v3526 = vadd.f32 0.0, %v3525
      %v3527 = vpop.f32.mrf.mxu0
      %v3528 = vpop.f32.mrf.mxu0
      %v3529 = vadd.f32 0.0, %v3528
      %v3530 = vpop.f32.mrf.mxu0
      %3531 = vmatprep.mubr.bf16.mxu0 0
      %3532 = vmatmul.mubr.bf16.gmra.mxu0 %v2901
      %v3533 = vpop.f32.mrf.mxu0
      %v3534 = vadd.f32 0.0, %v3533
      %v3535 = vpop.f32.mrf.mxu0
      %v3536 = vpop.f32.mrf.mxu0
      %v3537 = vadd.f32 0.0, %v3536
      %v3538 = vpop.f32.mrf.mxu0
      %3539 = vmatprep.mubr.bf16.mxu0 0
      %3540 = vmatmul.mubr.bf16.gmra.mxu0 %v2904
      %v3541 = vpop.f32.mrf.mxu0
      %v3542 = vadd.f32 0.0, %v3541
      %v3543 = vpop.f32.mrf.mxu0
      %v3544 = vpop.f32.mrf.mxu0
      %v3545 = vadd.f32 0.0, %v3544
      %v3546 = vpop.f32.mrf.mxu0
      %3547 = vmatprep.mubr.bf16.mxu0 0
      %3548 = vmatmul.mubr.bf16.gmra.mxu0 %v2907
      %v3549 = vpop.f32.mrf.mxu0
      %v3550 = vadd.f32 0.0, %v3549
      %v3551 = vpop.f32.mrf.mxu0
      %v3552 = vpop.f32.mrf.mxu0
      %v3553 = vadd.f32 0.0, %v3552
      %v3554 = vpop.f32.mrf.mxu0
      %3555 = vmatprep.mubr.bf16.mxu0 0
      %3556 = vmatmul.mubr.bf16.gmra.mxu0 %v2910
      %v3557 = vpop.f32.mrf.mxu0
      %v3558 = vadd.f32 0.0, %v3557
      %v3559 = vpop.f32.mrf.mxu0
      %v3560 = vpop.f32.mrf.mxu0
      %v3561 = vadd.f32 0.0, %v3560
      %v3562 = vpop.f32.mrf.mxu0
      %3563 = vmatprep.mubr.bf16.mxu0 0
      %3564 = vmatmul.mubr.bf16.gmra.mxu0 %v2913
      %v3565 = vpop.f32.mrf.mxu0
      %v3566 = vadd.f32 0.0, %v3565
      %v3567 = vpop.f32.mrf.mxu0
      %v3568 = vpop.f32.mrf.mxu0
      %v3569 = vadd.f32 0.0, %v3568
      %v3570 = vpop.f32.mrf.mxu0
      %3571 = vmatprep.mubr.bf16.mxu0 0
      %3572 = vmatmul.mubr.bf16.gmra.mxu0 %v2916
      %v3573 = vpop.f32.mrf.mxu0
      %v3574 = vadd.f32 0.0, %v3573
      %v3575 = vpop.f32.mrf.mxu0
      %v3576 = vpop.f32.mrf.mxu0
      %v3577 = vadd.f32 0.0, %v3576
      %v3578 = vpop.f32.mrf.mxu0
      %3579 = vmatprep.mubr.bf16.mxu0 0
      %3580 = vmatmul.mubr.bf16.gmra.mxu0 %v2919
      %v3581 = vpop.f32.mrf.mxu0
      %v3582 = vadd.f32 0.0, %v3581
      %v3583 = vpop.f32.mrf.mxu0
      %v3584 = vpop.f32.mrf.mxu0
      %v3585 = vadd.f32 0.0, %v3584
      %v3586 = vpop.f32.mrf.mxu0
      %3587 = vmatprep.mubr.bf16.mxu0 0
      %3588 = vmatmul.mubr.bf16.gmra.mxu0 %v2922
      %v3589 = vpop.f32.mrf.mxu0
      %v3590 = vadd.f32 0.0, %v3589
      %v3591 = vpop.f32.mrf.mxu0
      %v3592 = vpop.f32.mrf.mxu0
      %v3593 = vadd.f32 0.0, %v3592
      %v3594 = vpop.f32.mrf.mxu0
      %3595 = vmatprep.mubr.bf16.mxu0 0
      %3596 = vmatmul.mubr.bf16.gmra.mxu0 %v2925
      %v3597 = vpop.f32.mrf.mxu0
      %v3598 = vadd.f32 0.0, %v3597
      %v3599 = vpop.f32.mrf.mxu0
      %v3600 = vpop.f32.mrf.mxu0
      %v3601 = vadd.f32 0.0, %v3600
      %v3602 = vpop.f32.mrf.mxu0
      %3603 = vmatprep.mubr.bf16.mxu0 0
      %3604 = vmatmul.mubr.bf16.gmra.mxu0 %v2928
      %v3605 = vpop.f32.mrf.mxu0
      %v3606 = vadd.f32 0.0, %v3605
      %v3607 = vpop.f32.mrf.mxu0
      %v3608 = vpop.f32.mrf.mxu0
      %v3609 = vadd.f32 0.0, %v3608
      %v3610 = vpop.f32.mrf.mxu0
      %3611 = vmatprep.mubr.bf16.mxu0 0
      %3612 = vmatmul.mubr.bf16.gmra.mxu0 %v2931
      %v3613 = vpop.f32.mrf.mxu0
      %v3614 = vadd.f32 0.0, %v3613
      %v3615 = vpop.f32.mrf.mxu0
      %v3616 = vpop.f32.mrf.mxu0
      %v3617 = vadd.f32 0.0, %v3616
      %v3618 = vpop.f32.mrf.mxu0
      %3619 = vmatprep.mubr.bf16.mxu0 0
      %3620 = vmatmul.mubr.bf16.gmra.mxu0 %v2934
      %v3621 = vpop.f32.mrf.mxu0
      %v3622 = vadd.f32 0.0, %v3621
      %v3623 = vpop.f32.mrf.mxu0
      %v3624 = vpop.f32.mrf.mxu0
      %v3625 = vadd.f32 0.0, %v3624
      %v3626 = vpop.f32.mrf.mxu0
      %3627 = vmatprep.mubr.bf16.mxu0 0
      %3628 = vmatmul.mubr.bf16.gmra.mxu0 %v2889
      %v3629 = vpop.f32.mrf.mxu0
      %v3630 = vadd.f32 0.0, %v3629
      %v3631 = vpop.f32.mrf.mxu0
      %v3632 = vpop.f32.mrf.mxu0
      %v3633 = vadd.f32 0.0, %v3632
      %v3634 = vpop.f32.mrf.mxu0
      %3635 = vdwg.mxu0
      %v3636 = vadd.f32 %v3440, %v3510
      %v3637 = vadd.f32 %v3441, %v3513
      %v3638 = vadd.f32 %v3442, %v3518
      %v3639 = vadd.f32 %v3443, %v3521
      %v3640 = vadd.f32 %v3444, %v3526
      %v3641 = vadd.f32 %v3445, %v3529
      %v3642 = vadd.f32 %v3446, %v3534
      %v3643 = vadd.f32 %v3447, %v3537
      %v3644 = vadd.f32 %v3448, %v3542
      %v3645 = vadd.f32 %v3449, %v3545
      %v3646 = vadd.f32 %v3450, %v3550
      %v3647 = vadd.f32 %v3451, %v3553
      %v3648 = vadd.f32 %v3452, %v3558
      %v3649 = vadd.f32 %v3453, %v3561
      %v3650 = vadd.f32 %v3454, %v3566
      %v3651 = vadd.f32 %v3455, %v3569
      %v3652 = vadd.f32 %v3456, %v3574
      %v3653 = vadd.f32 %v3457, %v3577
      %v3654 = vadd.f32 %v3458, %v3582
      %v3655 = vadd.f32 %v3459, %v3585
      %v3656 = vadd.f32 %v3460, %v3590
      %v3657 = vadd.f32 %v3461, %v3593
      %v3658 = vadd.f32 %v3462, %v3598
      %v3659 = vadd.f32 %v3463, %v3601
      %v3660 = vadd.f32 %v3464, %v3606
      %v3661 = vadd.f32 %v3465, %v3609
      %v3662 = vadd.f32 %v3466, %v3614
      %v3663 = vadd.f32 %v3467, %v3617
      %v3664 = vadd.f32 %v3468, %v3622
      %v3665 = vadd.f32 %v3469, %v3625
      %v3666 = vadd.f32 %v3470, %v3630
      %v3667 = vadd.f32 %v3471, %v3633
      %v3669 = vsel %vm504, %v271, 0
      %3671 = vmatprep.subr.bf16.mxu0 0
      %3672 = vmatpush1.bf16.msra.mxu0 0
      %3673 = vmatprep.subr.bf16.mxu0 0
      %3674 = vmatpush1.bf16.msra.mxu0 0
      %3675 = vmatprep.subr.bf16.mxu0 0
      %3676 = vmatpush1.bf16.msra.mxu0 0
      %3677 = vmatprep.subr.bf16.mxu0 0
      %3678 = vmatpush1.bf16.msra.mxu0 0
      %3679 = vmatprep.subr.bf16.mxu0 0
      %3680 = vmatpush1.bf16.msra.mxu0 0
      %3681 = vmatprep.subr.bf16.mxu0 0
      %3682 = vmatpush1.bf16.msra.mxu0 0
      %3683 = vmatprep.subr.bf16.mxu0 0
      %3684 = vmatpush1.bf16.msra.mxu0 0
      %3685 = vmatprep.subr.bf16.mxu0 0
      %3686 = vmatpush1.bf16.msra.mxu0 %v3669
      %3687 = vmatprep.subr.bf16.mxu0 0
      %3688 = vmatpush2.bf16.msra.mxu0 0
      %3689 = vmatprep.subr.bf16.mxu0 0
      %3690 = vmatpush2.bf16.msra.mxu0 0
      %3691 = vmatprep.subr.bf16.mxu0 0
      %3692 = vmatpush2.bf16.msra.mxu0 0
      %3693 = vmatprep.subr.bf16.mxu0 0
      %3694 = vmatpush2.bf16.msra.mxu0 0
      %3695 = vmatprep.subr.bf16.mxu0 0
      %3696 = vmatpush2.bf16.msra.mxu0 0
      %3697 = vmatprep.subr.bf16.mxu0 0
      %3698 = vmatpush2.bf16.msra.mxu0 0
      %3699 = vmatprep.subr.bf16.mxu0 0
      %3700 = vmatpush2.bf16.msra.mxu0 0
      %3701 = vmatprep.subr.bf16.mxu0 0
      %3702 = vmatpush2.bf16.msra.mxu0 0
      %3703 = vmatprep.mubr.bf16.mxu0 0
      %3704 = vmatmul.mubr.bf16.gmra.mxu0 %v2680
      %v3705 = vpop.f32.mrf.mxu0
      %v3706 = vadd.f32 0.0, %v3705
      %v3707 = vpop.f32.mrf.mxu0
      %v3708 = vpop.f32.mrf.mxu0
      %v3709 = vadd.f32 0.0, %v3708
      %v3710 = vpop.f32.mrf.mxu0
      %3711 = vmatprep.mubr.bf16.mxu0 0
      %3712 = vmatmul.mubr.bf16.gmra.mxu0 %v2683
      %v3713 = vpop.f32.mrf.mxu0
      %v3714 = vadd.f32 0.0, %v3713
      %v3715 = vpop.f32.mrf.mxu0
      %v3716 = vpop.f32.mrf.mxu0
      %v3717 = vadd.f32 0.0, %v3716
      %v3718 = vpop.f32.mrf.mxu0
      %3719 = vmatprep.mubr.bf16.mxu0 0
      %3720 = vmatmul.mubr.bf16.gmra.mxu0 %v2686
      %v3721 = vpop.f32.mrf.mxu0
      %v3722 = vadd.f32 0.0, %v3721
      %v3723 = vpop.f32.mrf.mxu0
      %v3724 = vpop.f32.mrf.mxu0
      %v3725 = vadd.f32 0.0, %v3724
      %v3726 = vpop.f32.mrf.mxu0
      %3727 = vmatprep.mubr.bf16.mxu0 0
      %3728 = vmatmul.mubr.bf16.gmra.mxu0 %v2689
      %v3729 = vpop.f32.mrf.mxu0
      %v3730 = vadd.f32 0.0, %v3729
      %v3731 = vpop.f32.mrf.mxu0
      %v3732 = vpop.f32.mrf.mxu0
      %v3733 = vadd.f32 0.0, %v3732
      %v3734 = vpop.f32.mrf.mxu0
      %3735 = vmatprep.mubr.bf16.mxu0 0
      %3736 = vmatmul.mubr.bf16.gmra.mxu0 %v2692
      %v3737 = vpop.f32.mrf.mxu0
      %v3738 = vadd.f32 0.0, %v3737
      %v3739 = vpop.f32.mrf.mxu0
      %v3740 = vpop.f32.mrf.mxu0
      %v3741 = vadd.f32 0.0, %v3740
      %v3742 = vpop.f32.mrf.mxu0
      %3743 = vmatprep.mubr.bf16.mxu0 0
      %3744 = vmatmul.mubr.bf16.gmra.mxu0 %v2695
      %v3745 = vpop.f32.mrf.mxu0
      %v3746 = vadd.f32 0.0, %v3745
      %v3747 = vpop.f32.mrf.mxu0
      %v3748 = vpop.f32.mrf.mxu0
      %v3749 = vadd.f32 0.0, %v3748
      %v3750 = vpop.f32.mrf.mxu0
      %3751 = vmatprep.mubr.bf16.mxu0 0
      %3752 = vmatmul.mubr.bf16.gmra.mxu0 %v2698
      %v3753 = vpop.f32.mrf.mxu0
      %v3754 = vadd.f32 0.0, %v3753
      %v3755 = vpop.f32.mrf.mxu0
      %v3756 = vpop.f32.mrf.mxu0
      %v3757 = vadd.f32 0.0, %v3756
      %v3758 = vpop.f32.mrf.mxu0
      %3759 = vmatprep.mubr.bf16.mxu0 0
      %3760 = vmatmul.mubr.bf16.gmra.mxu0 %v2701
      %v3761 = vpop.f32.mrf.mxu0
      %v3762 = vadd.f32 0.0, %v3761
      %v3763 = vpop.f32.mrf.mxu0
      %v3764 = vpop.f32.mrf.mxu0
      %v3765 = vadd.f32 0.0, %v3764
      %v3766 = vpop.f32.mrf.mxu0
      %3767 = vmatprep.mubr.bf16.mxu0 0
      %3768 = vmatmul.mubr.bf16.gmra.mxu0 %v2704
      %v3769 = vpop.f32.mrf.mxu0
      %v3770 = vadd.f32 0.0, %v3769
      %v3771 = vpop.f32.mrf.mxu0
      %v3772 = vpop.f32.mrf.mxu0
      %v3773 = vadd.f32 0.0, %v3772
      %v3774 = vpop.f32.mrf.mxu0
      %3775 = vmatprep.mubr.bf16.mxu0 0
      %3776 = vmatmul.mubr.bf16.gmra.mxu0 %v2707
      %v3777 = vpop.f32.mrf.mxu0
      %v3778 = vadd.f32 0.0, %v3777
      %v3779 = vpop.f32.mrf.mxu0
      %v3780 = vpop.f32.mrf.mxu0
      %v3781 = vadd.f32 0.0, %v3780
      %v3782 = vpop.f32.mrf.mxu0
      %3783 = vmatprep.mubr.bf16.mxu0 0
      %3784 = vmatmul.mubr.bf16.gmra.mxu0 %v2710
      %v3785 = vpop.f32.mrf.mxu0
      %v3786 = vadd.f32 0.0, %v3785
      %v3787 = vpop.f32.mrf.mxu0
      %v3788 = vpop.f32.mrf.mxu0
      %v3789 = vadd.f32 0.0, %v3788
      %v3790 = vpop.f32.mrf.mxu0
      %3791 = vmatprep.mubr.bf16.mxu0 0
      %3792 = vmatmul.mubr.bf16.gmra.mxu0 %v2713
      %v3793 = vpop.f32.mrf.mxu0
      %v3794 = vadd.f32 0.0, %v3793
      %v3795 = vpop.f32.mrf.mxu0
      %v3796 = vpop.f32.mrf.mxu0
      %v3797 = vadd.f32 0.0, %v3796
      %v3798 = vpop.f32.mrf.mxu0
      %3799 = vmatprep.mubr.bf16.mxu0 0
      %3800 = vmatmul.mubr.bf16.gmra.mxu0 %v2716
      %v3801 = vpop.f32.mrf.mxu0
      %v3802 = vadd.f32 0.0, %v3801
      %v3803 = vpop.f32.mrf.mxu0
      %v3804 = vpop.f32.mrf.mxu0
      %v3805 = vadd.f32 0.0, %v3804
      %v3806 = vpop.f32.mrf.mxu0
      %3807 = vmatprep.mubr.bf16.mxu0 0
      %3808 = vmatmul.mubr.bf16.gmra.mxu0 %v2719
      %v3809 = vpop.f32.mrf.mxu0
      %v3810 = vadd.f32 0.0, %v3809
      %v3811 = vpop.f32.mrf.mxu0
      %v3812 = vpop.f32.mrf.mxu0
      %v3813 = vadd.f32 0.0, %v3812
      %v3814 = vpop.f32.mrf.mxu0
      %3815 = vmatprep.mubr.bf16.mxu0 0
      %3816 = vmatmul.mubr.bf16.gmra.mxu0 %v2722
      %v3817 = vpop.f32.mrf.mxu0
      %v3818 = vadd.f32 0.0, %v3817
      %v3819 = vpop.f32.mrf.mxu0
      %v3820 = vpop.f32.mrf.mxu0
      %v3821 = vadd.f32 0.0, %v3820
      %v3822 = vpop.f32.mrf.mxu0
      %3823 = vmatprep.mubr.bf16.mxu0 0
      %3824 = vmatmul.mubr.bf16.gmra.mxu0 %v2677
      %v3825 = vpop.f32.mrf.mxu0
      %v3826 = vadd.f32 0.0, %v3825
      %v3827 = vpop.f32.mrf.mxu0
      %v3828 = vpop.f32.mrf.mxu0
      %v3829 = vadd.f32 0.0, %v3828
      %v3830 = vpop.f32.mrf.mxu0
      %3831 = vdwg.mxu0
      %v3832 = vadd.f32 %v3636, %v3706
      %v3833 = vadd.f32 %v3637, %v3709
      %v3834 = vadd.f32 %v3638, %v3714
      %v3835 = vadd.f32 %v3639, %v3717
      %v3836 = vadd.f32 %v3640, %v3722
      %v3837 = vadd.f32 %v3641, %v3725
      %v3838 = vadd.f32 %v3642, %v3730
      %v3839 = vadd.f32 %v3643, %v3733
      %v3840 = vadd.f32 %v3644, %v3738
      %v3841 = vadd.f32 %v3645, %v3741
      %v3842 = vadd.f32 %v3646, %v3746
      %v3843 = vadd.f32 %v3647, %v3749
      %v3844 = vadd.f32 %v3648, %v3754
      %v3845 = vadd.f32 %v3649, %v3757
      %v3846 = vadd.f32 %v3650, %v3762
      %v3847 = vadd.f32 %v3651, %v3765
      %v3848 = vadd.f32 %v3652, %v3770
      %v3849 = vadd.f32 %v3653, %v3773
      %v3850 = vadd.f32 %v3654, %v3778
      %v3851 = vadd.f32 %v3655, %v3781
      %v3852 = vadd.f32 %v3656, %v3786
      %v3853 = vadd.f32 %v3657, %v3789
      %v3854 = vadd.f32 %v3658, %v3794
      %v3855 = vadd.f32 %v3659, %v3797
      %v3856 = vadd.f32 %v3660, %v3802
      %v3857 = vadd.f32 %v3661, %v3805
      %v3858 = vadd.f32 %v3662, %v3810
      %v3859 = vadd.f32 %v3663, %v3813
      %v3860 = vadd.f32 %v3664, %v3818
      %v3861 = vadd.f32 %v3665, %v3821
      %v3862 = vadd.f32 %v3666, %v3826
      %v3863 = vadd.f32 %v3667, %v3829
      %v3865 = vsel %vm504, %v272, 0
      %3867 = vmatprep.subr.bf16.mxu0 0
      %3868 = vmatpush1.bf16.msra.mxu0 0
      %3869 = vmatprep.subr.bf16.mxu0 0
      %3870 = vmatpush1.bf16.msra.mxu0 0
      %3871 = vmatprep.subr.bf16.mxu0 0
      %3872 = vmatpush1.bf16.msra.mxu0 0
      %3873 = vmatprep.subr.bf16.mxu0 0
      %3874 = vmatpush1.bf16.msra.mxu0 0
      %3875 = vmatprep.subr.bf16.mxu0 0
      %3876 = vmatpush1.bf16.msra.mxu0 0
      %3877 = vmatprep.subr.bf16.mxu0 0
      %3878 = vmatpush1.bf16.msra.mxu0 0
      %3879 = vmatprep.subr.bf16.mxu0 0
      %3880 = vmatpush1.bf16.msra.mxu0 0
      %3881 = vmatprep.subr.bf16.mxu0 0
      %3882 = vmatpush1.bf16.msra.mxu0 %v3865
      %3883 = vmatprep.subr.bf16.mxu0 0
      %3884 = vmatpush2.bf16.msra.mxu0 0
      %3885 = vmatprep.subr.bf16.mxu0 0
      %3886 = vmatpush2.bf16.msra.mxu0 0
      %3887 = vmatprep.subr.bf16.mxu0 0
      %3888 = vmatpush2.bf16.msra.mxu0 0
      %3889 = vmatprep.subr.bf16.mxu0 0
      %3890 = vmatpush2.bf16.msra.mxu0 0
      %3891 = vmatprep.subr.bf16.mxu0 0
      %3892 = vmatpush2.bf16.msra.mxu0 0
      %3893 = vmatprep.subr.bf16.mxu0 0
      %3894 = vmatpush2.bf16.msra.mxu0 0
      %3895 = vmatprep.subr.bf16.mxu0 0
      %3896 = vmatpush2.bf16.msra.mxu0 0
      %3897 = vmatprep.subr.bf16.mxu0 0
      %3898 = vmatpush2.bf16.msra.mxu0 0
      %3899 = vmatprep.mubr.bf16.mxu0 0
      %3900 = vmatmul.mubr.bf16.gmra.mxu0 %v3232
      %v3901 = vpop.f32.mrf.mxu0
      %v3902 = vadd.f32 0.0, %v3901
      %v3903 = vpop.f32.mrf.mxu0
      %v3904 = vpop.f32.mrf.mxu0
      %v3905 = vadd.f32 0.0, %v3904
      %v3906 = vpop.f32.mrf.mxu0
      %3907 = vmatprep.mubr.bf16.mxu0 0
      %3908 = vmatmul.mubr.bf16.gmra.mxu0 %v3235
      %v3909 = vpop.f32.mrf.mxu0
      %v3910 = vadd.f32 0.0, %v3909
      %v3911 = vpop.f32.mrf.mxu0
      %v3912 = vpop.f32.mrf.mxu0
      %v3913 = vadd.f32 0.0, %v3912
      %v3914 = vpop.f32.mrf.mxu0
      %3915 = vmatprep.mubr.bf16.mxu0 0
      %3916 = vmatmul.mubr.bf16.gmra.mxu0 %v3238
      %v3917 = vpop.f32.mrf.mxu0
      %v3918 = vadd.f32 0.0, %v3917
      %v3919 = vpop.f32.mrf.mxu0
      %v3920 = vpop.f32.mrf.mxu0
      %v3921 = vadd.f32 0.0, %v3920
      %v3922 = vpop.f32.mrf.mxu0
      %3923 = vmatprep.mubr.bf16.mxu0 0
      %3924 = vmatmul.mubr.bf16.gmra.mxu0 %v3241
      %v3925 = vpop.f32.mrf.mxu0
      %v3926 = vadd.f32 0.0, %v3925
      %v3927 = vpop.f32.mrf.mxu0
      %v3928 = vpop.f32.mrf.mxu0
      %v3929 = vadd.f32 0.0, %v3928
      %v3930 = vpop.f32.mrf.mxu0
      %3931 = vmatprep.mubr.bf16.mxu0 0
      %3932 = vmatmul.mubr.bf16.gmra.mxu0 %v3244
      %v3933 = vpop.f32.mrf.mxu0
      %v3934 = vadd.f32 0.0, %v3933
      %v3935 = vpop.f32.mrf.mxu0
      %v3936 = vpop.f32.mrf.mxu0
      %v3937 = vadd.f32 0.0, %v3936
      %v3938 = vpop.f32.mrf.mxu0
      %3939 = vmatprep.mubr.bf16.mxu0 0
      %3940 = vmatmul.mubr.bf16.gmra.mxu0 %v3247
      %v3941 = vpop.f32.mrf.mxu0
      %v3942 = vadd.f32 0.0, %v3941
      %v3943 = vpop.f32.mrf.mxu0
      %v3944 = vpop.f32.mrf.mxu0
      %v3945 = vadd.f32 0.0, %v3944
      %v3946 = vpop.f32.mrf.mxu0
      %3947 = vmatprep.mubr.bf16.mxu0 0
      %3948 = vmatmul.mubr.bf16.gmra.mxu0 %v3250
      %v3949 = vpop.f32.mrf.mxu0
      %v3950 = vadd.f32 0.0, %v3949
      %v3951 = vpop.f32.mrf.mxu0
      %v3952 = vpop.f32.mrf.mxu0
      %v3953 = vadd.f32 0.0, %v3952
      %v3954 = vpop.f32.mrf.mxu0
      %3955 = vmatprep.mubr.bf16.mxu0 0
      %3956 = vmatmul.mubr.bf16.gmra.mxu0 %v3253
      %v3957 = vpop.f32.mrf.mxu0
      %v3958 = vadd.f32 0.0, %v3957
      %v3959 = vpop.f32.mrf.mxu0
      %v3960 = vpop.f32.mrf.mxu0
      %v3961 = vadd.f32 0.0, %v3960
      %v3962 = vpop.f32.mrf.mxu0
      %3963 = vmatprep.mubr.bf16.mxu0 0
      %3964 = vmatmul.mubr.bf16.gmra.mxu0 %v3256
      %v3965 = vpop.f32.mrf.mxu0
      %v3966 = vadd.f32 0.0, %v3965
      %v3967 = vpop.f32.mrf.mxu0
      %v3968 = vpop.f32.mrf.mxu0
      %v3969 = vadd.f32 0.0, %v3968
      %v3970 = vpop.f32.mrf.mxu0
      %3971 = vmatprep.mubr.bf16.mxu0 0
      %3972 = vmatmul.mubr.bf16.gmra.mxu0 %v3259
      %v3973 = vpop.f32.mrf.mxu0
      %v3974 = vadd.f32 0.0, %v3973
      %v3975 = vpop.f32.mrf.mxu0
      %v3976 = vpop.f32.mrf.mxu0
      %v3977 = vadd.f32 0.0, %v3976
      %v3978 = vpop.f32.mrf.mxu0
      %3979 = vmatprep.mubr.bf16.mxu0 0
      %3980 = vmatmul.mubr.bf16.gmra.mxu0 %v3262
      %v3981 = vpop.f32.mrf.mxu0
      %v3982 = vadd.f32 0.0, %v3981
      %v3983 = vpop.f32.mrf.mxu0
      %v3984 = vpop.f32.mrf.mxu0
      %v3985 = vadd.f32 0.0, %v3984
      %v3986 = vpop.f32.mrf.mxu0
      %3987 = vmatprep.mubr.bf16.mxu0 0
      %3988 = vmatmul.mubr.bf16.gmra.mxu0 %v3265
      %v3989 = vpop.f32.mrf.mxu0
      %v3990 = vadd.f32 0.0, %v3989
      %v3991 = vpop.f32.mrf.mxu0
      %v3992 = vpop.f32.mrf.mxu0
      %v3993 = vadd.f32 0.0, %v3992
      %v3994 = vpop.f32.mrf.mxu0
      %3995 = vmatprep.mubr.bf16.mxu0 0
      %3996 = vmatmul.mubr.bf16.gmra.mxu0 %v3268
      %v3997 = vpop.f32.mrf.mxu0
      %v3998 = vadd.f32 0.0, %v3997
      %v3999 = vpop.f32.mrf.mxu0
      %v4000 = vpop.f32.mrf.mxu0
      %v4001 = vadd.f32 0.0, %v4000
      %v4002 = vpop.f32.mrf.mxu0
      %4003 = vmatprep.mubr.bf16.mxu0 0
      %4004 = vmatmul.mubr.bf16.gmra.mxu0 %v3271
      %v4005 = vpop.f32.mrf.mxu0
      %v4006 = vadd.f32 0.0, %v4005
      %v4007 = vpop.f32.mrf.mxu0
      %v4008 = vpop.f32.mrf.mxu0
      %v4009 = vadd.f32 0.0, %v4008
      %v4010 = vpop.f32.mrf.mxu0
      %4011 = vmatprep.mubr.bf16.mxu0 0
      %4012 = vmatmul.mubr.bf16.gmra.mxu0 %v3274
      %v4013 = vpop.f32.mrf.mxu0
      %v4014 = vadd.f32 0.0, %v4013
      %v4015 = vpop.f32.mrf.mxu0
      %v4016 = vpop.f32.mrf.mxu0
      %v4017 = vadd.f32 0.0, %v4016
      %v4018 = vpop.f32.mrf.mxu0
      %4019 = vmatprep.mubr.bf16.mxu0 0
      %4020 = vmatmul.mubr.bf16.gmra.mxu0 %v3229
      %v4021 = vpop.f32.mrf.mxu0
      %v4022 = vadd.f32 0.0, %v4021
      %v4023 = vpop.f32.mrf.mxu0
      %v4024 = vpop.f32.mrf.mxu0
      %v4025 = vadd.f32 0.0, %v4024
      %v4026 = vpop.f32.mrf.mxu0
      %4027 = vdwg.mxu0
      %v4028 = vadd.f32 %v3832, %v3902
      %v4029 = vadd.f32 %v3833, %v3905
      %v4030 = vadd.f32 %v3834, %v3910
      %v4031 = vadd.f32 %v3835, %v3913
      %v4032 = vadd.f32 %v3836, %v3918
      %v4033 = vadd.f32 %v3837, %v3921
      %v4034 = vadd.f32 %v3838, %v3926
      %v4035 = vadd.f32 %v3839, %v3929
      %v4036 = vadd.f32 %v3840, %v3934
      %v4037 = vadd.f32 %v3841, %v3937
      %v4038 = vadd.f32 %v3842, %v3942
      %v4039 = vadd.f32 %v3843, %v3945
      %v4040 = vadd.f32 %v3844, %v3950
      %v4041 = vadd.f32 %v3845, %v3953
      %v4042 = vadd.f32 %v3846, %v3958
      %v4043 = vadd.f32 %v3847, %v3961
      %v4044 = vadd.f32 %v3848, %v3966
      %v4045 = vadd.f32 %v3849, %v3969
      %v4046 = vadd.f32 %v3850, %v3974
      %v4047 = vadd.f32 %v3851, %v3977
      %v4048 = vadd.f32 %v3852, %v3982
      %v4049 = vadd.f32 %v3853, %v3985
      %v4050 = vadd.f32 %v3854, %v3990
      %v4051 = vadd.f32 %v3855, %v3993
      %v4052 = vadd.f32 %v3856, %v3998
      %v4053 = vadd.f32 %v3857, %v4001
      %v4054 = vadd.f32 %v3858, %v4006
      %v4055 = vadd.f32 %v3859, %v4009
      %v4056 = vadd.f32 %v3860, %v4014
      %v4057 = vadd.f32 %v3861, %v4017
      %v4058 = vadd.f32 %v3862, %v4022
      %v4059 = vadd.f32 %v3863, %v4025
      %v4061 = vsel %vm504, %v273, 0
      %4063 = vmatprep.subr.bf16.mxu0 0
      %4064 = vmatpush1.bf16.msra.mxu0 0
      %4065 = vmatprep.subr.bf16.mxu0 0
      %4066 = vmatpush1.bf16.msra.mxu0 0
      %4067 = vmatprep.subr.bf16.mxu0 0
      %4068 = vmatpush1.bf16.msra.mxu0 0
      %4069 = vmatprep.subr.bf16.mxu0 0
      %4070 = vmatpush1.bf16.msra.mxu0 0
      %4071 = vmatprep.subr.bf16.mxu0 0
      %4072 = vmatpush1.bf16.msra.mxu0 0
      %4073 = vmatprep.subr.bf16.mxu0 0
      %4074 = vmatpush1.bf16.msra.mxu0 0
      %4075 = vmatprep.subr.bf16.mxu0 0
      %4076 = vmatpush1.bf16.msra.mxu0 0
      %4077 = vmatprep.subr.bf16.mxu0 0
      %4078 = vmatpush1.bf16.msra.mxu0 %v4061
      %4079 = vmatprep.subr.bf16.mxu0 0
      %4080 = vmatpush2.bf16.msra.mxu0 0
      %4081 = vmatprep.subr.bf16.mxu0 0
      %4082 = vmatpush2.bf16.msra.mxu0 0
      %4083 = vmatprep.subr.bf16.mxu0 0
      %4084 = vmatpush2.bf16.msra.mxu0 0
      %4085 = vmatprep.subr.bf16.mxu0 0
      %4086 = vmatpush2.bf16.msra.mxu0 0
      %4087 = vmatprep.subr.bf16.mxu0 0
      %4088 = vmatpush2.bf16.msra.mxu0 0
      %4089 = vmatprep.subr.bf16.mxu0 0
      %4090 = vmatpush2.bf16.msra.mxu0 0
      %4091 = vmatprep.subr.bf16.mxu0 0
      %4092 = vmatpush2.bf16.msra.mxu0 0
      %4093 = vmatprep.subr.bf16.mxu0 0
      %4094 = vmatpush2.bf16.msra.mxu0 0
      %4095 = vmatprep.mubr.bf16.mxu0 0
      %4096 = vmatmul.mubr.bf16.gmra.mxu0 %v2895
      %v4097 = vpop.f32.mrf.mxu0
      %v4098 = vadd.f32 0.0, %v4097
      %v4099 = vpop.f32.mrf.mxu0
      %v4100 = vpop.f32.mrf.mxu0
      %v4101 = vadd.f32 0.0, %v4100
      %v4102 = vpop.f32.mrf.mxu0
      %4103 = vmatprep.mubr.bf16.mxu0 0
      %4104 = vmatmul.mubr.bf16.gmra.mxu0 %v2898
      %v4105 = vpop.f32.mrf.mxu0
      %v4106 = vadd.f32 0.0, %v4105
      %v4107 = vpop.f32.mrf.mxu0
      %v4108 = vpop.f32.mrf.mxu0
      %v4109 = vadd.f32 0.0, %v4108
      %v4110 = vpop.f32.mrf.mxu0
      %4111 = vmatprep.mubr.bf16.mxu0 0
      %4112 = vmatmul.mubr.bf16.gmra.mxu0 %v2901
      %v4113 = vpop.f32.mrf.mxu0
      %v4114 = vadd.f32 0.0, %v4113
      %v4115 = vpop.f32.mrf.mxu0
      %v4116 = vpop.f32.mrf.mxu0
      %v4117 = vadd.f32 0.0, %v4116
      %v4118 = vpop.f32.mrf.mxu0
      %4119 = vmatprep.mubr.bf16.mxu0 0
      %4120 = vmatmul.mubr.bf16.gmra.mxu0 %v2904
      %v4121 = vpop.f32.mrf.mxu0
      %v4122 = vadd.f32 0.0, %v4121
      %v4123 = vpop.f32.mrf.mxu0
      %v4124 = vpop.f32.mrf.mxu0
      %v4125 = vadd.f32 0.0, %v4124
      %v4126 = vpop.f32.mrf.mxu0
      %4127 = vmatprep.mubr.bf16.mxu0 0
      %4128 = vmatmul.mubr.bf16.gmra.mxu0 %v2907
      %v4129 = vpop.f32.mrf.mxu0
      %v4130 = vadd.f32 0.0, %v4129
      %v4131 = vpop.f32.mrf.mxu0
      %v4132 = vpop.f32.mrf.mxu0
      %v4133 = vadd.f32 0.0, %v4132
      %v4134 = vpop.f32.mrf.mxu0
      %4135 = vmatprep.mubr.bf16.mxu0 0
      %4136 = vmatmul.mubr.bf16.gmra.mxu0 %v2910
      %v4137 = vpop.f32.mrf.mxu0
      %v4138 = vadd.f32 0.0, %v4137
      %v4139 = vpop.f32.mrf.mxu0
      %v4140 = vpop.f32.mrf.mxu0
      %v4141 = vadd.f32 0.0, %v4140
      %v4142 = vpop.f32.mrf.mxu0
      %4143 = vmatprep.mubr.bf16.mxu0 0
      %4144 = vmatmul.mubr.bf16.gmra.mxu0 %v2913
      %v4145 = vpop.f32.mrf.mxu0
      %v4146 = vadd.f32 0.0, %v4145
      %v4147 = vpop.f32.mrf.mxu0
      %v4148 = vpop.f32.mrf.mxu0
      %v4149 = vadd.f32 0.0, %v4148
      %v4150 = vpop.f32.mrf.mxu0
      %4151 = vmatprep.mubr.bf16.mxu0 0
      %4152 = vmatmul.mubr.bf16.gmra.mxu0 %v2916
      %v4153 = vpop.f32.mrf.mxu0
      %v4154 = vadd.f32 0.0, %v4153
      %v4155 = vpop.f32.mrf.mxu0
      %v4156 = vpop.f32.mrf.mxu0
      %v4157 = vadd.f32 0.0, %v4156
      %v4158 = vpop.f32.mrf.mxu0
      %4159 = vmatprep.mubr.bf16.mxu0 0
      %4160 = vmatmul.mubr.bf16.gmra.mxu0 %v2919
      %v4161 = vpop.f32.mrf.mxu0
      %v4162 = vadd.f32 0.0, %v4161
      %v4163 = vpop.f32.mrf.mxu0
      %v4164 = vpop.f32.mrf.mxu0
      %v4165 = vadd.f32 0.0, %v4164
      %v4166 = vpop.f32.mrf.mxu0
      %4167 = vmatprep.mubr.bf16.mxu0 0
      %4168 = vmatmul.mubr.bf16.gmra.mxu0 %v2922
      %v4169 = vpop.f32.mrf.mxu0
      %v4170 = vadd.f32 0.0, %v4169
      %v4171 = vpop.f32.mrf.mxu0
      %v4172 = vpop.f32.mrf.mxu0
      %v4173 = vadd.f32 0.0, %v4172
      %v4174 = vpop.f32.mrf.mxu0
      %4175 = vmatprep.mubr.bf16.mxu0 0
      %4176 = vmatmul.mubr.bf16.gmra.mxu0 %v2925
      %v4177 = vpop.f32.mrf.mxu0
      %v4178 = vadd.f32 0.0, %v4177
      %v4179 = vpop.f32.mrf.mxu0
      %v4180 = vpop.f32.mrf.mxu0
      %v4181 = vadd.f32 0.0, %v4180
      %v4182 = vpop.f32.mrf.mxu0
      %4183 = vmatprep.mubr.bf16.mxu0 0
      %4184 = vmatmul.mubr.bf16.gmra.mxu0 %v2928
      %v4185 = vpop.f32.mrf.mxu0
      %v4186 = vadd.f32 0.0, %v4185
      %v4187 = vpop.f32.mrf.mxu0
      %v4188 = vpop.f32.mrf.mxu0
      %v4189 = vadd.f32 0.0, %v4188
      %v4190 = vpop.f32.mrf.mxu0
      %4191 = vmatprep.mubr.bf16.mxu0 0
      %4192 = vmatmul.mubr.bf16.gmra.mxu0 %v2931
      %v4193 = vpop.f32.mrf.mxu0
      %v4194 = vadd.f32 0.0, %v4193
      %v4195 = vpop.f32.mrf.mxu0
      %v4196 = vpop.f32.mrf.mxu0
      %v4197 = vadd.f32 0.0, %v4196
      %v4198 = vpop.f32.mrf.mxu0
      %4199 = vmatprep.mubr.bf16.mxu0 0
      %4200 = vmatmul.mubr.bf16.gmra.mxu0 %v2934
      %v4201 = vpop.f32.mrf.mxu0
      %v4202 = vadd.f32 0.0, %v4201
      %v4203 = vpop.f32.mrf.mxu0
      %v4204 = vpop.f32.mrf.mxu0
      %v4205 = vadd.f32 0.0, %v4204
      %v4206 = vpop.f32.mrf.mxu0
      %4207 = vmatprep.mubr.bf16.mxu0 0
      %4208 = vmatmul.mubr.bf16.gmra.mxu0 %v2889
      %v4209 = vpop.f32.mrf.mxu0
      %v4210 = vadd.f32 0.0, %v4209
      %v4211 = vpop.f32.mrf.mxu0
      %v4212 = vpop.f32.mrf.mxu0
      %v4213 = vadd.f32 0.0, %v4212
      %v4214 = vpop.f32.mrf.mxu0
      %4215 = vmatprep.mubr.bf16.mxu0 0
      %4216 = vmatmul.mubr.bf16.gmra.mxu0 %v2892
      %v4217 = vpop.f32.mrf.mxu0
      %v4218 = vadd.f32 0.0, %v4217
      %v4219 = vpop.f32.mrf.mxu0
      %v4220 = vpop.f32.mrf.mxu0
      %v4221 = vadd.f32 0.0, %v4220
      %v4222 = vpop.f32.mrf.mxu0
      %4223 = vdwg.mxu0
      %v4224 = vadd.f32 %v4028, %v4098
      %v4225 = vadd.f32 %v4029, %v4101
      %v4226 = vadd.f32 %v4030, %v4106
      %v4227 = vadd.f32 %v4031, %v4109
      %v4228 = vadd.f32 %v4032, %v4114
      %v4229 = vadd.f32 %v4033, %v4117
      %v4230 = vadd.f32 %v4034, %v4122
      %v4231 = vadd.f32 %v4035, %v4125
      %v4232 = vadd.f32 %v4036, %v4130
      %v4233 = vadd.f32 %v4037, %v4133
      %v4234 = vadd.f32 %v4038, %v4138
      %v4235 = vadd.f32 %v4039, %v4141
      %v4236 = vadd.f32 %v4040, %v4146
      %v4237 = vadd.f32 %v4041, %v4149
      %v4238 = vadd.f32 %v4042, %v4154
      %v4239 = vadd.f32 %v4043, %v4157
      %v4240 = vadd.f32 %v4044, %v4162
      %v4241 = vadd.f32 %v4045, %v4165
      %v4242 = vadd.f32 %v4046, %v4170
      %v4243 = vadd.f32 %v4047, %v4173
      %v4244 = vadd.f32 %v4048, %v4178
      %v4245 = vadd.f32 %v4049, %v4181
      %v4246 = vadd.f32 %v4050, %v4186
      %v4247 = vadd.f32 %v4051, %v4189
      %v4248 = vadd.f32 %v4052, %v4194
      %v4249 = vadd.f32 %v4053, %v4197
      %v4250 = vadd.f32 %v4054, %v4202
      %v4251 = vadd.f32 %v4055, %v4205
      %v4252 = vadd.f32 %v4056, %v4210
      %v4253 = vadd.f32 %v4057, %v4213
      %v4254 = vadd.f32 %v4058, %v4218
      %v4255 = vadd.f32 %v4059, %v4221
      %v4257 = vsel %vm504, %v274, 0
      %4259 = vmatprep.subr.bf16.mxu0 0
      %4260 = vmatpush1.bf16.msra.mxu0 0
      %4261 = vmatprep.subr.bf16.mxu0 0
      %4262 = vmatpush1.bf16.msra.mxu0 0
      %4263 = vmatprep.subr.bf16.mxu0 0
      %4264 = vmatpush1.bf16.msra.mxu0 0
      %4265 = vmatprep.subr.bf16.mxu0 0
      %4266 = vmatpush1.bf16.msra.mxu0 0
      %4267 = vmatprep.subr.bf16.mxu0 0
      %4268 = vmatpush1.bf16.msra.mxu0 0
      %4269 = vmatprep.subr.bf16.mxu0 0
      %4270 = vmatpush1.bf16.msra.mxu0 0
      %4271 = vmatprep.subr.bf16.mxu0 0
      %4272 = vmatpush1.bf16.msra.mxu0 0
      %4273 = vmatprep.subr.bf16.mxu0 0
      %4274 = vmatpush1.bf16.msra.mxu0 %v4257
      %4275 = vmatprep.subr.bf16.mxu0 0
      %4276 = vmatpush2.bf16.msra.mxu0 0
      %4277 = vmatprep.subr.bf16.mxu0 0
      %4278 = vmatpush2.bf16.msra.mxu0 0
      %4279 = vmatprep.subr.bf16.mxu0 0
      %4280 = vmatpush2.bf16.msra.mxu0 0
      %4281 = vmatprep.subr.bf16.mxu0 0
      %4282 = vmatpush2.bf16.msra.mxu0 0
      %4283 = vmatprep.subr.bf16.mxu0 0
      %4284 = vmatpush2.bf16.msra.mxu0 0
      %4285 = vmatprep.subr.bf16.mxu0 0
      %4286 = vmatpush2.bf16.msra.mxu0 0
      %4287 = vmatprep.subr.bf16.mxu0 0
      %4288 = vmatpush2.bf16.msra.mxu0 0
      %4289 = vmatprep.subr.bf16.mxu0 0
      %4290 = vmatpush2.bf16.msra.mxu0 0
      %4291 = vmatprep.mubr.bf16.mxu0 0
      %4292 = vmatmul.mubr.bf16.gmra.mxu0 %v2683
      %v4293 = vpop.f32.mrf.mxu0
      %v4294 = vadd.f32 0.0, %v4293
      %v4295 = vpop.f32.mrf.mxu0
      %v4296 = vpop.f32.mrf.mxu0
      %v4297 = vadd.f32 0.0, %v4296
      %v4298 = vpop.f32.mrf.mxu0
      %4299 = vmatprep.mubr.bf16.mxu0 0
      %4300 = vmatmul.mubr.bf16.gmra.mxu0 %v2686
      %v4301 = vpop.f32.mrf.mxu0
      %v4302 = vadd.f32 0.0, %v4301
      %v4303 = vpop.f32.mrf.mxu0
      %v4304 = vpop.f32.mrf.mxu0
      %v4305 = vadd.f32 0.0, %v4304
      %v4306 = vpop.f32.mrf.mxu0
      %4307 = vmatprep.mubr.bf16.mxu0 0
      %4308 = vmatmul.mubr.bf16.gmra.mxu0 %v2689
      %v4309 = vpop.f32.mrf.mxu0
      %v4310 = vadd.f32 0.0, %v4309
      %v4311 = vpop.f32.mrf.mxu0
      %v4312 = vpop.f32.mrf.mxu0
      %v4313 = vadd.f32 0.0, %v4312
      %v4314 = vpop.f32.mrf.mxu0
      %4315 = vmatprep.mubr.bf16.mxu0 0
      %4316 = vmatmul.mubr.bf16.gmra.mxu0 %v2692
      %v4317 = vpop.f32.mrf.mxu0
      %v4318 = vadd.f32 0.0, %v4317
      %v4319 = vpop.f32.mrf.mxu0
      %v4320 = vpop.f32.mrf.mxu0
      %v4321 = vadd.f32 0.0, %v4320
      %v4322 = vpop.f32.mrf.mxu0
      %4323 = vmatprep.mubr.bf16.mxu0 0
      %4324 = vmatmul.mubr.bf16.gmra.mxu0 %v2695
      %v4325 = vpop.f32.mrf.mxu0
      %v4326 = vadd.f32 0.0, %v4325
      %v4327 = vpop.f32.mrf.mxu0
      %v4328 = vpop.f32.mrf.mxu0
      %v4329 = vadd.f32 0.0, %v4328
      %v4330 = vpop.f32.mrf.mxu0
      %4331 = vmatprep.mubr.bf16.mxu0 0
      %4332 = vmatmul.mubr.bf16.gmra.mxu0 %v2698
      %v4333 = vpop.f32.mrf.mxu0
      %v4334 = vadd.f32 0.0, %v4333
      %v4335 = vpop.f32.mrf.mxu0
      %v4336 = vpop.f32.mrf.mxu0
      %v4337 = vadd.f32 0.0, %v4336
      %v4338 = vpop.f32.mrf.mxu0
      %4339 = vmatprep.mubr.bf16.mxu0 0
      %4340 = vmatmul.mubr.bf16.gmra.mxu0 %v2701
      %v4341 = vpop.f32.mrf.mxu0
      %v4342 = vadd.f32 0.0, %v4341
      %v4343 = vpop.f32.mrf.mxu0
      %v4344 = vpop.f32.mrf.mxu0
      %v4345 = vadd.f32 0.0, %v4344
      %v4346 = vpop.f32.mrf.mxu0
      %4347 = vmatprep.mubr.bf16.mxu0 0
      %4348 = vmatmul.mubr.bf16.gmra.mxu0 %v2704
      %v4349 = vpop.f32.mrf.mxu0
      %v4350 = vadd.f32 0.0, %v4349
      %v4351 = vpop.f32.mrf.mxu0
      %v4352 = vpop.f32.mrf.mxu0
      %v4353 = vadd.f32 0.0, %v4352
      %v4354 = vpop.f32.mrf.mxu0
      %4355 = vmatprep.mubr.bf16.mxu0 0
      %4356 = vmatmul.mubr.bf16.gmra.mxu0 %v2707
      %v4357 = vpop.f32.mrf.mxu0
      %v4358 = vadd.f32 0.0, %v4357
      %v4359 = vpop.f32.mrf.mxu0
      %v4360 = vpop.f32.mrf.mxu0
      %v4361 = vadd.f32 0.0, %v4360
      %v4362 = vpop.f32.mrf.mxu0
      %4363 = vmatprep.mubr.bf16.mxu0 0
      %4364 = vmatmul.mubr.bf16.gmra.mxu0 %v2710
      %v4365 = vpop.f32.mrf.mxu0
      %v4366 = vadd.f32 0.0, %v4365
      %v4367 = vpop.f32.mrf.mxu0
      %v4368 = vpop.f32.mrf.mxu0
      %v4369 = vadd.f32 0.0, %v4368
      %v4370 = vpop.f32.mrf.mxu0
      %4371 = vmatprep.mubr.bf16.mxu0 0
      %4372 = vmatmul.mubr.bf16.gmra.mxu0 %v2713
      %v4373 = vpop.f32.mrf.mxu0
      %v4374 = vadd.f32 0.0, %v4373
      %v4375 = vpop.f32.mrf.mxu0
      %v4376 = vpop.f32.mrf.mxu0
      %v4377 = vadd.f32 0.0, %v4376
      %v4378 = vpop.f32.mrf.mxu0
      %4379 = vmatprep.mubr.bf16.mxu0 0
      %4380 = vmatmul.mubr.bf16.gmra.mxu0 %v2716
      %v4381 = vpop.f32.mrf.mxu0
      %v4382 = vadd.f32 0.0, %v4381
      %v4383 = vpop.f32.mrf.mxu0
      %v4384 = vpop.f32.mrf.mxu0
      %v4385 = vadd.f32 0.0, %v4384
      %v4386 = vpop.f32.mrf.mxu0
      %4387 = vmatprep.mubr.bf16.mxu0 0
      %4388 = vmatmul.mubr.bf16.gmra.mxu0 %v2719
      %v4389 = vpop.f32.mrf.mxu0
      %v4390 = vadd.f32 0.0, %v4389
      %v4391 = vpop.f32.mrf.mxu0
      %v4392 = vpop.f32.mrf.mxu0
      %v4393 = vadd.f32 0.0, %v4392
      %v4394 = vpop.f32.mrf.mxu0
      %4395 = vmatprep.mubr.bf16.mxu0 0
      %4396 = vmatmul.mubr.bf16.gmra.mxu0 %v2722
      %v4397 = vpop.f32.mrf.mxu0
      %v4398 = vadd.f32 0.0, %v4397
      %v4399 = vpop.f32.mrf.mxu0
      %v4400 = vpop.f32.mrf.mxu0
      %v4401 = vadd.f32 0.0, %v4400
      %v4402 = vpop.f32.mrf.mxu0
      %4403 = vmatprep.mubr.bf16.mxu0 0
      %4404 = vmatmul.mubr.bf16.gmra.mxu0 %v2677
      %v4405 = vpop.f32.mrf.mxu0
      %v4406 = vadd.f32 0.0, %v4405
      %v4407 = vpop.f32.mrf.mxu0
      %v4408 = vpop.f32.mrf.mxu0
      %v4409 = vadd.f32 0.0, %v4408
      %v4410 = vpop.f32.mrf.mxu0
      %4411 = vmatprep.mubr.bf16.mxu0 0
      %4412 = vmatmul.mubr.bf16.gmra.mxu0 %v2680
      %v4413 = vpop.f32.mrf.mxu0
      %v4414 = vadd.f32 0.0, %v4413
      %v4415 = vpop.f32.mrf.mxu0
      %v4416 = vpop.f32.mrf.mxu0
      %v4417 = vadd.f32 0.0, %v4416
      %v4418 = vpop.f32.mrf.mxu0
      %4419 = vdwg.mxu0
      %v4420 = vadd.f32 %v4224, %v4294
      %v4421 = vadd.f32 %v4225, %v4297
      %v4422 = vadd.f32 %v4226, %v4302
      %v4423 = vadd.f32 %v4227, %v4305
      %v4424 = vadd.f32 %v4228, %v4310
      %v4425 = vadd.f32 %v4229, %v4313
      %v4426 = vadd.f32 %v4230, %v4318
      %v4427 = vadd.f32 %v4231, %v4321
      %v4428 = vadd.f32 %v4232, %v4326
      %v4429 = vadd.f32 %v4233, %v4329
      %v4430 = vadd.f32 %v4234, %v4334
      %v4431 = vadd.f32 %v4235, %v4337
      %v4432 = vadd.f32 %v4236, %v4342
      %v4433 = vadd.f32 %v4237, %v4345
      %v4434 = vadd.f32 %v4238, %v4350
      %v4435 = vadd.f32 %v4239, %v4353
      %v4436 = vadd.f32 %v4240, %v4358
      %v4437 = vadd.f32 %v4241, %v4361
      %v4438 = vadd.f32 %v4242, %v4366
      %v4439 = vadd.f32 %v4243, %v4369
      %v4440 = vadd.f32 %v4244, %v4374
      %v4441 = vadd.f32 %v4245, %v4377
      %v4442 = vadd.f32 %v4246, %v4382
      %v4443 = vadd.f32 %v4247, %v4385
      %v4444 = vadd.f32 %v4248, %v4390
      %v4445 = vadd.f32 %v4249, %v4393
      %v4446 = vadd.f32 %v4250, %v4398
      %v4447 = vadd.f32 %v4251, %v4401
      %v4448 = vadd.f32 %v4252, %v4406
      %v4449 = vadd.f32 %v4253, %v4409
      %v4450 = vadd.f32 %v4254, %v4414
      %v4451 = vadd.f32 %v4255, %v4417
      %v4453 = vsel %vm504, %v275, 0
      %4455 = vmatprep.subr.bf16.mxu0 0
      %4456 = vmatpush1.bf16.msra.mxu0 0
      %4457 = vmatprep.subr.bf16.mxu0 0
      %4458 = vmatpush1.bf16.msra.mxu0 0
      %4459 = vmatprep.subr.bf16.mxu0 0
      %4460 = vmatpush1.bf16.msra.mxu0 0
      %4461 = vmatprep.subr.bf16.mxu0 0
      %4462 = vmatpush1.bf16.msra.mxu0 0
      %4463 = vmatprep.subr.bf16.mxu0 0
      %4464 = vmatpush1.bf16.msra.mxu0 0
      %4465 = vmatprep.subr.bf16.mxu0 0
      %4466 = vmatpush1.bf16.msra.mxu0 0
      %4467 = vmatprep.subr.bf16.mxu0 0
      %4468 = vmatpush1.bf16.msra.mxu0 0
      %4469 = vmatprep.subr.bf16.mxu0 0
      %4470 = vmatpush1.bf16.msra.mxu0 %v4453
      %4471 = vmatprep.subr.bf16.mxu0 0
      %4472 = vmatpush2.bf16.msra.mxu0 0
      %4473 = vmatprep.subr.bf16.mxu0 0
      %4474 = vmatpush2.bf16.msra.mxu0 0
      %4475 = vmatprep.subr.bf16.mxu0 0
      %4476 = vmatpush2.bf16.msra.mxu0 0
      %4477 = vmatprep.subr.bf16.mxu0 0
      %4478 = vmatpush2.bf16.msra.mxu0 0
      %4479 = vmatprep.subr.bf16.mxu0 0
      %4480 = vmatpush2.bf16.msra.mxu0 0
      %4481 = vmatprep.subr.bf16.mxu0 0
      %4482 = vmatpush2.bf16.msra.mxu0 0
      %4483 = vmatprep.subr.bf16.mxu0 0
      %4484 = vmatpush2.bf16.msra.mxu0 0
      %4485 = vmatprep.subr.bf16.mxu0 0
      %4486 = vmatpush2.bf16.msra.mxu0 0
      %4487 = vmatprep.mubr.bf16.mxu0 0
      %4488 = vmatmul.mubr.bf16.gmra.mxu0 %v3235
      %v4489 = vpop.f32.mrf.mxu0
      %v4490 = vadd.f32 0.0, %v4489
      %v4491 = vpop.f32.mrf.mxu0
      %v4492 = vpop.f32.mrf.mxu0
      %v4493 = vadd.f32 0.0, %v4492
      %v4494 = vpop.f32.mrf.mxu0
      %4495 = vmatprep.mubr.bf16.mxu0 0
      %4496 = vmatmul.mubr.bf16.gmra.mxu0 %v3238
      %v4497 = vpop.f32.mrf.mxu0
      %v4498 = vadd.f32 0.0, %v4497
      %v4499 = vpop.f32.mrf.mxu0
      %v4500 = vpop.f32.mrf.mxu0
      %v4501 = vadd.f32 0.0, %v4500
      %v4502 = vpop.f32.mrf.mxu0
      %4503 = vmatprep.mubr.bf16.mxu0 0
      %4504 = vmatmul.mubr.bf16.gmra.mxu0 %v3241
      %v4505 = vpop.f32.mrf.mxu0
      %v4506 = vadd.f32 0.0, %v4505
      %v4507 = vpop.f32.mrf.mxu0
      %v4508 = vpop.f32.mrf.mxu0
      %v4509 = vadd.f32 0.0, %v4508
      %v4510 = vpop.f32.mrf.mxu0
      %4511 = vmatprep.mubr.bf16.mxu0 0
      %4512 = vmatmul.mubr.bf16.gmra.mxu0 %v3244
      %v4513 = vpop.f32.mrf.mxu0
      %v4514 = vadd.f32 0.0, %v4513
      %v4515 = vpop.f32.mrf.mxu0
      %v4516 = vpop.f32.mrf.mxu0
      %v4517 = vadd.f32 0.0, %v4516
      %v4518 = vpop.f32.mrf.mxu0
      %4519 = vmatprep.mubr.bf16.mxu0 0
      %4520 = vmatmul.mubr.bf16.gmra.mxu0 %v3247
      %v4521 = vpop.f32.mrf.mxu0
      %v4522 = vadd.f32 0.0, %v4521
      %v4523 = vpop.f32.mrf.mxu0
      %v4524 = vpop.f32.mrf.mxu0
      %v4525 = vadd.f32 0.0, %v4524
      %v4526 = vpop.f32.mrf.mxu0
      %4527 = vmatprep.mubr.bf16.mxu0 0
      %4528 = vmatmul.mubr.bf16.gmra.mxu0 %v3250
      %v4529 = vpop.f32.mrf.mxu0
      %v4530 = vadd.f32 0.0, %v4529
      %v4531 = vpop.f32.mrf.mxu0
      %v4532 = vpop.f32.mrf.mxu0
      %v4533 = vadd.f32 0.0, %v4532
      %v4534 = vpop.f32.mrf.mxu0
      %4535 = vmatprep.mubr.bf16.mxu0 0
      %4536 = vmatmul.mubr.bf16.gmra.mxu0 %v3253
      %v4537 = vpop.f32.mrf.mxu0
      %v4538 = vadd.f32 0.0, %v4537
      %v4539 = vpop.f32.mrf.mxu0
      %v4540 = vpop.f32.mrf.mxu0
      %v4541 = vadd.f32 0.0, %v4540
      %v4542 = vpop.f32.mrf.mxu0
      %4543 = vmatprep.mubr.bf16.mxu0 0
      %4544 = vmatmul.mubr.bf16.gmra.mxu0 %v3256
      %v4545 = vpop.f32.mrf.mxu0
      %v4546 = vadd.f32 0.0, %v4545
      %v4547 = vpop.f32.mrf.mxu0
      %v4548 = vpop.f32.mrf.mxu0
      %v4549 = vadd.f32 0.0, %v4548
      %v4550 = vpop.f32.mrf.mxu0
      %4551 = vmatprep.mubr.bf16.mxu0 0
      %4552 = vmatmul.mubr.bf16.gmra.mxu0 %v3259
      %v4553 = vpop.f32.mrf.mxu0
      %v4554 = vadd.f32 0.0, %v4553
      %v4555 = vpop.f32.mrf.mxu0
      %v4556 = vpop.f32.mrf.mxu0
      %v4557 = vadd.f32 0.0, %v4556
      %v4558 = vpop.f32.mrf.mxu0
      %4559 = vmatprep.mubr.bf16.mxu0 0
      %4560 = vmatmul.mubr.bf16.gmra.mxu0 %v3262
      %v4561 = vpop.f32.mrf.mxu0
      %v4562 = vadd.f32 0.0, %v4561
      %v4563 = vpop.f32.mrf.mxu0
      %v4564 = vpop.f32.mrf.mxu0
      %v4565 = vadd.f32 0.0, %v4564
      %v4566 = vpop.f32.mrf.mxu0
      %4567 = vmatprep.mubr.bf16.mxu0 0
      %4568 = vmatmul.mubr.bf16.gmra.mxu0 %v3265
      %v4569 = vpop.f32.mrf.mxu0
      %v4570 = vadd.f32 0.0, %v4569
      %v4571 = vpop.f32.mrf.mxu0
      %v4572 = vpop.f32.mrf.mxu0
      %v4573 = vadd.f32 0.0, %v4572
      %v4574 = vpop.f32.mrf.mxu0
      %4575 = vmatprep.mubr.bf16.mxu0 0
      %4576 = vmatmul.mubr.bf16.gmra.mxu0 %v3268
      %v4577 = vpop.f32.mrf.mxu0
      %v4578 = vadd.f32 0.0, %v4577
      %v4579 = vpop.f32.mrf.mxu0
      %v4580 = vpop.f32.mrf.mxu0
      %v4581 = vadd.f32 0.0, %v4580
      %v4582 = vpop.f32.mrf.mxu0
      %4583 = vmatprep.mubr.bf16.mxu0 0
      %4584 = vmatmul.mubr.bf16.gmra.mxu0 %v3271
      %v4585 = vpop.f32.mrf.mxu0
      %v4586 = vadd.f32 0.0, %v4585
      %v4587 = vpop.f32.mrf.mxu0
      %v4588 = vpop.f32.mrf.mxu0
      %v4589 = vadd.f32 0.0, %v4588
      %v4590 = vpop.f32.mrf.mxu0
      %4591 = vmatprep.mubr.bf16.mxu0 0
      %4592 = vmatmul.mubr.bf16.gmra.mxu0 %v3274
      %v4593 = vpop.f32.mrf.mxu0
      %v4594 = vadd.f32 0.0, %v4593
      %v4595 = vpop.f32.mrf.mxu0
      %v4596 = vpop.f32.mrf.mxu0
      %v4597 = vadd.f32 0.0, %v4596
      %v4598 = vpop.f32.mrf.mxu0
      %4599 = vmatprep.mubr.bf16.mxu0 0
      %4600 = vmatmul.mubr.bf16.gmra.mxu0 %v3229
      %v4601 = vpop.f32.mrf.mxu0
      %v4602 = vadd.f32 0.0, %v4601
      %v4603 = vpop.f32.mrf.mxu0
      %v4604 = vpop.f32.mrf.mxu0
      %v4605 = vadd.f32 0.0, %v4604
      %v4606 = vpop.f32.mrf.mxu0
      %4607 = vmatprep.mubr.bf16.mxu0 0
      %4608 = vmatmul.mubr.bf16.gmra.mxu0 %v3232
      %v4609 = vpop.f32.mrf.mxu0
      %v4610 = vadd.f32 0.0, %v4609
      %v4611 = vpop.f32.mrf.mxu0
      %v4612 = vpop.f32.mrf.mxu0
      %v4613 = vadd.f32 0.0, %v4612
      %v4614 = vpop.f32.mrf.mxu0
      %4615 = vdwg.mxu0
      %v4616 = vadd.f32 %v4420, %v4490
      %v4617 = vadd.f32 %v4421, %v4493
      %v4618 = vadd.f32 %v4422, %v4498
      %v4619 = vadd.f32 %v4423, %v4501
      %v4620 = vadd.f32 %v4424, %v4506
      %v4621 = vadd.f32 %v4425, %v4509
      %v4622 = vadd.f32 %v4426, %v4514
      %v4623 = vadd.f32 %v4427, %v4517
      %v4624 = vadd.f32 %v4428, %v4522
      %v4625 = vadd.f32 %v4429, %v4525
      %v4626 = vadd.f32 %v4430, %v4530
      %v4627 = vadd.f32 %v4431, %v4533
      %v4628 = vadd.f32 %v4432, %v4538
      %v4629 = vadd.f32 %v4433, %v4541
      %v4630 = vadd.f32 %v4434, %v4546
      %v4631 = vadd.f32 %v4435, %v4549
      %v4632 = vadd.f32 %v4436, %v4554
      %v4633 = vadd.f32 %v4437, %v4557
      %v4634 = vadd.f32 %v4438, %v4562
      %v4635 = vadd.f32 %v4439, %v4565
      %v4636 = vadd.f32 %v4440, %v4570
      %v4637 = vadd.f32 %v4441, %v4573
      %v4638 = vadd.f32 %v4442, %v4578
      %v4639 = vadd.f32 %v4443, %v4581
      %v4640 = vadd.f32 %v4444, %v4586
      %v4641 = vadd.f32 %v4445, %v4589
      %v4642 = vadd.f32 %v4446, %v4594
      %v4643 = vadd.f32 %v4447, %v4597
      %v4644 = vadd.f32 %v4448, %v4602
      %v4645 = vadd.f32 %v4449, %v4605
      %v4646 = vadd.f32 %v4450, %v4610
      %v4647 = vadd.f32 %v4451, %v4613
      %v4649 = vlaneseq
      %v4650 = vshrl.u32 %v4649, 7
      %v4651 = vsub.s32 0, %v4650
      %v4652 = vrot.slane %v277, %v4651
      %v4654 = vadd.f32 %v4616, %v4652
      %v4655 = vadd.f32 %v4617, %v4652
      %v4656 = vadd.f32 %v4618, %v4652
      %v4657 = vadd.f32 %v4619, %v4652
      %v4658 = vadd.f32 %v4620, %v4652
      %v4659 = vadd.f32 %v4621, %v4652
      %v4660 = vadd.f32 %v4622, %v4652
      %v4661 = vadd.f32 %v4623, %v4652
      %v4662 = vadd.f32 %v4624, %v4652
      %v4663 = vadd.f32 %v4625, %v4652
      %v4664 = vadd.f32 %v4626, %v4652
      %v4665 = vadd.f32 %v4627, %v4652
      %v4666 = vadd.f32 %v4628, %v4652
      %v4667 = vadd.f32 %v4629, %v4652
      %v4668 = vadd.f32 %v4630, %v4652
      %v4669 = vadd.f32 %v4631, %v4652
      %v4670 = vadd.f32 %v4632, %v4652
      %v4671 = vadd.f32 %v4633, %v4652
      %v4672 = vadd.f32 %v4634, %v4652
      %v4673 = vadd.f32 %v4635, %v4652
      %v4674 = vadd.f32 %v4636, %v4652
      %v4675 = vadd.f32 %v4637, %v4652
      %v4676 = vadd.f32 %v4638, %v4652
      %v4677 = vadd.f32 %v4639, %v4652
      %v4678 = vadd.f32 %v4640, %v4652
      %v4679 = vadd.f32 %v4641, %v4652
      %v4680 = vadd.f32 %v4642, %v4652
      %v4681 = vadd.f32 %v4643, %v4652
      %v4682 = vadd.f32 %v4644, %v4652
      %v4683 = vadd.f32 %v4645, %v4652
      %v4684 = vadd.f32 %v4646, %v4652
      %v4685 = vadd.f32 %v4647, %v4652
      %v4686 = vadd.f32 %v4654, %v226
      %v4687 = vadd.f32 %v4655, %v227
      %v4688 = vadd.f32 %v4656, %v228
      %v4689 = vadd.f32 %v4657, %v229
      %v4690 = vadd.f32 %v4658, %v230
      %v4691 = vadd.f32 %v4659, %v231
      %v4692 = vadd.f32 %v4660, %v232
      %v4693 = vadd.f32 %v4661, %v233
      %v4694 = vadd.f32 %v4662, %v234
      %v4695 = vadd.f32 %v4663, %v235
      %v4696 = vadd.f32 %v4664, %v236
      %v4697 = vadd.f32 %v4665, %v237
      %v4698 = vadd.f32 %v4666, %v238
      %v4699 = vadd.f32 %v4667, %v239
      %v4700 = vadd.f32 %v4668, %v240
      %v4701 = vadd.f32 %v4669, %v241
      %v4702 = vadd.f32 %v4670, %v242
      %v4703 = vadd.f32 %v4671, %v243
      %v4704 = vadd.f32 %v4672, %v244
      %v4705 = vadd.f32 %v4673, %v245
      %v4706 = vadd.f32 %v4674, %v246
      %v4707 = vadd.f32 %v4675, %v247
      %v4708 = vadd.f32 %v4676, %v248
      %v4709 = vadd.f32 %v4677, %v249
      %v4710 = vadd.f32 %v4678, %v250
      %v4711 = vadd.f32 %v4679, %v251
      %v4712 = vadd.f32 %v4680, %v252
      %v4713 = vadd.f32 %v4681, %v253
      %v4714 = vadd.f32 %v4682, %v254
      %v4715 = vadd.f32 %v4683, %v255
      %v4716 = vadd.f32 %v4684, %v256
      %v4717 = vadd.f32 %v4685, %v257
      %v4718 = vmax.f32 %v4686, 0.0
      %v4719 = vmax.f32 %v4687, 0.0
      %v4720 = vmax.f32 %v4688, 0.0
      %v4721 = vmax.f32 %v4689, 0.0
      %v4722 = vmax.f32 %v4690, 0.0
      %v4723 = vmax.f32 %v4691, 0.0
      %v4724 = vmax.f32 %v4692, 0.0
      %v4725 = vmax.f32 %v4693, 0.0
      %v4726 = vmax.f32 %v4694, 0.0
      %v4727 = vmax.f32 %v4695, 0.0
      %v4728 = vmax.f32 %v4696, 0.0
      %v4729 = vmax.f32 %v4697, 0.0
      %v4730 = vmax.f32 %v4698, 0.0
      %v4731 = vmax.f32 %v4699, 0.0
      %v4732 = vmax.f32 %v4700, 0.0
      %v4733 = vmax.f32 %v4701, 0.0
      %v4734 = vmax.f32 %v4702, 0.0
      %v4735 = vmax.f32 %v4703, 0.0
      %v4736 = vmax.f32 %v4704, 0.0
      %v4737 = vmax.f32 %v4705, 0.0
      %v4738 = vmax.f32 %v4706, 0.0
      %v4739 = vmax.f32 %v4707, 0.0
      %v4740 = vmax.f32 %v4708, 0.0
      %v4741 = vmax.f32 %v4709, 0.0
      %v4742 = vmax.f32 %v4710, 0.0
      %v4743 = vmax.f32 %v4711, 0.0
      %v4744 = vmax.f32 %v4712, 0.0
      %v4745 = vmax.f32 %v4713, 0.0
      %v4746 = vmax.f32 %v4714, 0.0
      %v4747 = vmax.f32 %v4715, 0.0
      %v4748 = vmax.f32 %v4716, 0.0
      %v4749 = vmax.f32 %v4717, 0.0
      %4750 = vst.msk [vmem:[%s224] sm:$0xff] %vm455, %v4718
      %4751 = vst.msk [vmem:[%s224 + $0x8] sm:$0xff] %vm455, %v4719
      %4752 = vst.msk [vmem:[%s224 + $0x10] sm:$0xff] %vm455, %v4720
      %4753 = vst.msk [vmem:[%s224 + $0x18] sm:$0xff] %vm455, %v4721
      %4754 = vst.msk [vmem:[%s224 + $0x20] sm:$0xff] %vm455, %v4722
      %4755 = vst.msk [vmem:[%s224 + $0x28] sm:$0xff] %vm455, %v4723
      %4756 = vst.msk [vmem:[%s224 + $0x30] sm:$0xff] %vm455, %v4724
      %4757 = vst.msk [vmem:[%s224 + $0x38] sm:$0xff] %vm455, %v4725
      %4758 = vst.msk [vmem:[%s224 + $0x40] sm:$0xff] %vm455, %v4726
      %4759 = vst.msk [vmem:[%s224 + $0x48] sm:$0xff] %vm455, %v4727
      %4760 = vst.msk [vmem:[%s224 + $0x50] sm:$0xff] %vm455, %v4728
      %4761 = vst.msk [vmem:[%s224 + $0x58] sm:$0xff] %vm455, %v4729
      %4762 = vst.msk [vmem:[%s224 + $0x60] sm:$0xff] %vm455, %v4730
      %4763 = vst.msk [vmem:[%s224 + $0x68] sm:$0xff] %vm455, %v4731
      %4764 = vst.msk [vmem:[%s224 + $0x70] sm:$0xff] %vm455, %v4732
      %4765 = vst.msk [vmem:[%s224 + $0x78] sm:$0xff] %vm455, %v4733
      %4766 = vst.msk [vmem:[%s224 + $0x80] sm:$0xff] %vm455, %v4734
      %4767 = vst.msk [vmem:[%s224 + $0x88] sm:$0xff] %vm455, %v4735
      %4768 = vst.msk [vmem:[%s224 + $0x90] sm:$0xff] %vm455, %v4736
      %4769 = vst.msk [vmem:[%s224 + $0x98] sm:$0xff] %vm455, %v4737
      %4770 = vst.msk [vmem:[%s224 + $0xa0] sm:$0xff] %vm455, %v4738
      %4771 = vst.msk [vmem:[%s224 + $0xa8] sm:$0xff] %vm455, %v4739
      %4772 = vst.msk [vmem:[%s224 + $0xb0] sm:$0xff] %vm455, %v4740
      %4773 = vst.msk [vmem:[%s224 + $0xb8] sm:$0xff] %vm455, %v4741
      %4774 = vst.msk [vmem:[%s224 + $0xc0] sm:$0xff] %vm455, %v4742
      %4775 = vst.msk [vmem:[%s224 + $0xc8] sm:$0xff] %vm455, %v4743
      %4776 = vst.msk [vmem:[%s224 + $0xd0] sm:$0xff] %vm455, %v4744
      %4777 = vst.msk [vmem:[%s224 + $0xd8] sm:$0xff] %vm455, %v4745
      %4778 = vst.msk [vmem:[%s224 + $0xe0] sm:$0xff] %vm455, %v4746
      %4779 = vst.msk [vmem:[%s224 + $0xe8] sm:$0xff] %vm455, %v4747
      %4780 = vst.msk [vmem:[%s224 + $0xf0] sm:$0xff] %vm455, %v4748
      %4781 = vst.msk [vmem:[%s224 + $0xf8] sm:$0xff] %vm455, %v4749
      %p4782 = scmp.lt.s32.totalorder %s16, 1
      %s4783 = scalar_select %p4782, %s16, 1
      %s4784 = smul.addr %s4783, 32
      %s4785 = smul.addr %s4784, 8
      %s4786 = scalar_lea.vmem %s5, %s4785
      // Predicated region
      $region41: #{tpu_custom_call.1} parent=39 // pred_check
        %p4787 = pneg %p144
      $region42: #{tpu_custom_call.1} parent=39 // pred_check_branch
        %4789 = sbr.rel (%p4787) target = $region44
      $region43: #{tpu_custom_call.1} parent=39 // pred_region
        _
      $region44: #{tpu_custom_call.1} parent=39 // pred_fallthru
        _
    $region40: #{tpu_custom_call.1} parent=5 // pred_fallthru
      _
    %p4790 = scmp.le.s32.totalorder 2, %s11
    // Predicated region
    $region45: #{tpu_custom_call.1} parent=5 // pred_check
      %p4791 = pneg %p4790
    $region46: #{tpu_custom_call.1} parent=5 // pred_check_branch
      %4793 = sbr.rel (%p4791) target = $region48
    $region47: #{tpu_custom_call.1} parent=5 // pred_region
      %s4794 = ssub.s32 %s11, 2
      // Predicated region
      $region49: #{tpu_custom_call.1} parent=47 // pred_check
        %p4795 = pneg %p150
      $region50: #{tpu_custom_call.1} parent=47 // pred_check_branch
        %4797 = sbr.rel (%p4795) target = $region52
      $region51: #{tpu_custom_call.1} parent=47 // pred_region
        %p4798 = scmp.lt.s32.totalorder %s17, 1
        %s4799 = scalar_select %p4798, %s17, 1
        %s4800 = smul.addr %s4799, 32
        %s4801 = smul.addr %s4800, 8
        %s4802 = scalar_lea.vmem %s5, %s4801
      $region52: #{tpu_custom_call.1} parent=47 // pred_fallthru
        _
    $region48: #{tpu_custom_call.1} parent=5 // pred_fallthru
      _
  $region6: #{tpu_custom_call.1} parent=0 // loop_footer
    %s15 = sadd.s32 1, %s11
  $region7: #{tpu_custom_call.1} parent=0 // loop_footer_branch
    %10 = sbr.rel target = $region3
  $region8: #{tpu_custom_call.1} parent=0 // loop_exit
    _

</llo_original>
